<compile_context>
chip_gen: v7x
topology: tpu7x:2x2x1
jax: 0.10.0
libtpu: 0.0.40
codegen_flags: <defaults>
</compile_context>

<pallas_src>
import functools

import jax
import jax.numpy as jnp
import numpy as np
from jax import lax
from jax.experimental import pallas as pl
from jax.experimental.pallas import tpu as pltpu


def _round_up(x, m):
    return (x + m - 1) // m * m


# ----------------------------- Pallas kernels ------------------------------ #

def _matmul_bias_act_kernel(a_ref, w_ref, b_ref, o_ref, *, relu):
    # out = maybe_relu( a @ w + b ), bf16 operands, f32 accumulation.
    y = jnp.dot(a_ref[...], w_ref[...], preferred_element_type=jnp.float32)
    y = y + b_ref[...]
    if relu:
        y = jnp.maximum(y, 0.0)
    o_ref[...] = y.astype(o_ref.dtype)


def dense(a, w, b, *, relu, out_dtype, tile_m=512):
    """a: [M, K] bf16, w: [K, N] bf16, b: [1, N] f32 -> [M, N] out_dtype.

    M-tiled ("parallel") grid; weight/bias blocks stay VMEM-resident across
    grid steps (constant index_map). M is padded to a tile multiple so block
    shapes always divide exactly.
    """
    M, K = a.shape
    Kw, N = w.shape
    assert K == Kw, (K, Kw)
    tm = min(tile_m, _round_up(M, 16))       # multiple of 16: ok for bf16 & f32
    Mp = _round_up(M, tm)
    if Mp != M:
        a = jnp.pad(a, ((0, Mp - M), (0, 0)))
    out = pl.pallas_call(
        functools.partial(_matmul_bias_act_kernel, relu=relu),
        out_shape=jax.ShapeDtypeStruct((Mp, N), out_dtype),
        grid=(Mp // tm,),
        in_specs=[
            pl.BlockSpec((tm, K), lambda i: (i, 0)),
            pl.BlockSpec((K, N), lambda i: (0, 0)),   # resident weight block
            pl.BlockSpec((1, N), lambda i: (0, 0)),   # resident bias block
        ],
        out_specs=pl.BlockSpec((tm, N), lambda i: (i, 0)),
        compiler_params=pltpu.CompilerParams(
            dimension_semantics=("parallel",)),
    )(a, w, b)
    return out[:M] if Mp != M else out


def _head_kernel(x_ref, w1_ref, b1_ref, w2_ref, b2_ref, feat_ref, val_ref):
    # Fused linear1 (+ReLU) and critic_linear: features never leave VMEM
    # between the two matmuls.
    h = jnp.dot(x_ref[...], w1_ref[...], preferred_element_type=jnp.float32)
    h = jnp.maximum(h + b1_ref[...], 0.0)
    feat_ref[...] = h
    v = jnp.dot(h.astype(w2_ref.dtype), w2_ref[...],
                preferred_element_type=jnp.float32)
    val_ref[...] = v + b2_ref[...]


def head(x, w1, b1, w2, b2, *, tile_b=256):
    """x: [N, 1568] bf16 -> (features [N, 512] f32, value [N, 1] f32)."""
    M, K = x.shape
    _, H = w1.shape
    tb = min(tile_b, _round_up(M, 16))
    Mp = _round_up(M, tb)
    if Mp != M:
        x = jnp.pad(x, ((0, Mp - M), (0, 0)))
    feats, value = pl.pallas_call(
        _head_kernel,
        out_shape=(jax.ShapeDtypeStruct((Mp, H), jnp.float32),
                   jax.ShapeDtypeStruct((Mp, 1), jnp.float32)),
        grid=(Mp // tb,),
        in_specs=[
            pl.BlockSpec((tb, K), lambda i: (i, 0)),
            pl.BlockSpec((K, H), lambda i: (0, 0)),
            pl.BlockSpec((1, H), lambda i: (0, 0)),
            pl.BlockSpec((H, 1), lambda i: (0, 0)),
            pl.BlockSpec((1, 1), lambda i: (0, 0)),
        ],
        out_specs=(pl.BlockSpec((tb, H), lambda i: (i, 0)),
                   pl.BlockSpec((tb, 1), lambda i: (i, 0))),
        compiler_params=pltpu.CompilerParams(
            dimension_semantics=("parallel",)),
    )(x, w1, b1, w2, b2)
    if Mp != M:
        feats, value = feats[:M], value[:M]
    return feats, value


# --------------------------- conv via im2col glue -------------------------- #

def im2col_nhwc(x, kh, kw, stride):
    """x: NHWC -> patches [N*OH*OW, kh*kw*C] (ordering ki, kj, c) + (OH, OW)."""
    N, H, W, C = x.shape
    OH = (H - kh) // stride + 1
    OW = (W - kw) // stride + 1
    cols = []
    for i in range(kh):
        for j in range(kw):
            cols.append(x[:, i:i + stride * OH:stride,
                          j:j + stride * OW:stride, :])
    p = jnp.stack(cols, axis=3)                      # [N, OH, OW, kh*kw, C]
    return p.reshape(N * OH * OW, kh * kw * C), OH, OW


# ----------------------- parameter init & packing -------------------------- #

def init_params(key, num_inputs):
    """Deterministic synthetic init (shapes follow CNNPolicy.__init__), f32,
    PyTorch layouts (OIHW convs, (out,in) linears)."""
    ks = jax.random.split(key, 5)

    def w(k, shape, std=0.05):
        return jax.random.normal(k, shape, jnp.float32) * std

    return dict(
        conv1_w=w(ks[0], (32, num_inputs, 8, 8)),
        conv1_b=jnp.zeros((32,), jnp.float32),
        conv2_w=w(ks[1], (64, 32, 4, 4)),
        conv2_b=jnp.zeros((64,), jnp.float32),
        conv3_w=w(ks[2], (32, 64, 3, 3)),
        conv3_b=jnp.zeros((32,), jnp.float32),
        lin1_w=w(ks[3], (512, 32 * 7 * 7)),
        lin1_b=jnp.zeros((512,), jnp.float32),
        crit_w=w(ks[4], (1, 512)),
        crit_b=jnp.zeros((1,), jnp.float32),
    )


def pack_params(params):
    """One-time weight repack: im2col layout, /255 folded, bf16 matmul operands."""
    def conv_pack(w, scale=1.0):
        o, c, kh, kw = w.shape
        m = (w * scale).transpose(2, 3, 1, 0).reshape(kh * kw * c, o)
        return m.astype(jnp.bfloat16)

    # lin1 columns are indexed (c, h, w) in PyTorch (NCHW flatten); re-order to
    # (h, w, c) so our NHWC flatten needs no activation transpose.
    lin1 = params["lin1_w"].reshape(512, 32, 7, 7)
    lin1 = lin1.transpose(0, 2, 3, 1).reshape(512, 32 * 7 * 7)

    return dict(
        conv1_w=conv_pack(params["conv1_w"], 1.0 / 255.0),   # /255 folded in
        conv1_b=params["conv1_b"].reshape(1, -1).astype(jnp.float32),
        conv2_w=conv_pack(params["conv2_w"]),
        conv2_b=params["conv2_b"].reshape(1, -1).astype(jnp.float32),
        conv3_w=conv_pack(params["conv3_w"]),
        conv3_b=params["conv3_b"].reshape(1, -1).astype(jnp.float32),
        lin1_w=lin1.T.astype(jnp.bfloat16),                  # [1568, 512]
        lin1_b=params["lin1_b"].reshape(1, -1).astype(jnp.float32),
        crit_w=params["crit_w"].T.astype(jnp.bfloat16),      # [512, 1]
        crit_b=params["crit_b"].reshape(1, -1).astype(jnp.float32),
    )


# ------------------------------ CNNPolicy ---------------------------------- #

def cnn_policy_forward(packed, inputs):
    """forward(inputs NCHW f32) -> (critic_value [N,1] f32, features [N,512] f32)."""
    n = inputs.shape[0]
    x = jnp.transpose(inputs, (0, 2, 3, 1)).astype(jnp.bfloat16)  # NCHW -> NHWC once
    for name, k, s in (("conv1", 8, 4), ("conv2", 4, 2), ("conv3", 3, 1)):
        w, b = packed[name + "_w"], packed[name + "_b"]
        patches, oh, ow = im2col_nhwc(x, k, k, s)
        y = dense(patches, w, b, relu=True, out_dtype=jnp.bfloat16)
        x = y.reshape(n, oh, ow, w.shape[1])                      # stays NHWC
    x = x.reshape(n, 7 * 7 * 32)          # (h,w,c) flatten; lin1_w repacked to match
    feats, value = head(x, packed["lin1_w"], packed["lin1_b"],
                        packed["crit_w"], packed["crit_b"])
    return value, feats


# --------------------------- pure-JAX references ---------------------------- #

def ref_forward_packed(packed, inputs):
    """Same mixed-precision policy as the Pallas path (bf16 operands, f32 acc)."""
    x = jnp.transpose(inputs, (0, 2, 3, 1)).astype(jnp.bfloat16)

    def conv(x, wmat, b, k, s):
        C = x.shape[-1]
        O = wmat.shape[1]
        w = wmat.reshape(k, k, C, O)                       # HWIO
        y = lax.conv_general_dilated(
            x, w, (s, s), 'VALID',
            dimension_numbers=('NHWC', 'HWIO', 'NHWC'),
            preferred_element_type=jnp.float32)
        return jnp.maximum(y + b.reshape(1, 1, 1, -1), 0.0).astype(jnp.bfloat16)

    x = conv(x, packed["conv1_w"], packed["conv1_b"], 8, 4)
    x = conv(x, packed["conv2_w"], packed["conv2_b"], 4, 2)
    x = conv(x, packed["conv3_w"], packed["conv3_b"], 3, 1)
    x2 = x.reshape(x.shape[0], -1)
    h = jnp.maximum(
        jnp.dot(x2, packed["lin1_w"], preferred_element_type=jnp.float32)
        + packed["lin1_b"], 0.0)
    v = jnp.dot(h.astype(jnp.bfloat16), packed["crit_w"],
                preferred_element_type=jnp.float32) + packed["crit_b"]
    return v, h


def ref_forward_f32(params, inputs):
    """Original full-f32 NCHW semantics (PyTorch CNNPolicy.forward)."""
    def conv(x, w, b, s):
        y = lax.conv_general_dilated(
            x, w, (s, s), 'VALID',
            dimension_numbers=('NCHW', 'OIHW', 'NCHW'))
        return y + b[None, :, None, None]

    x = jax.nn.relu(conv(inputs / 255.0, params['conv1_w'], params['conv1_b'], 4))
    x = jax.nn.relu(conv(x, params['conv2_w'], params['conv2_b'], 2))
    x = jax.nn.relu(conv(x, params['conv3_w'], params['conv3_b'], 1))
    x = x.reshape(inputs.shape[0], -1)
    x = jax.nn.relu(x @ params['lin1_w'].T + params['lin1_b'])
    v = x @ params['crit_w'].T + params['crit_b']
    return v, x


# ---------------------------------- main ------------------------------------ #

if __name__ == "__main__":
    key = jax.random.PRNGKey(0)
    k_param, k_in = jax.random.split(key)

    batch, num_inputs = 2, 4
    # 84x84 spatial is implied by the x.view(-1, 32*7*7) flatten in forward().
    params = init_params(k_param, num_inputs)
    packed = pack_params(params)          # one-time weight repack (outside jit)
    inputs = jax.random.uniform(k_in, (batch, num_inputs, 84, 84),
                                dtype=jnp.float32, minval=0.0, maxval=255.0)

    fwd = jax.jit(cnn_policy_forward)
    value, feats = fwd(packed, inputs)
    jax.block_until_ready((value, feats))

    # Strict check vs a pure-JAX reference using the identical bf16/f32
    # mixed-precision policy (validates the kernels / layouts / packing).
    rv, rf = jax.jit(ref_forward_packed)(packed, inputs)
    np.testing.assert_allclose(np.asarray(value), np.asarray(rv), rtol=5e-3, atol=5e-3)
    np.testing.assert_allclose(np.asarray(feats), np.asarray(rf), rtol=5e-3, atol=5e-3)

    # Loose check vs the original full-f32 PyTorch semantics (bounds the bf16
    # mixed-precision deviation).
    rv32, rf32 = ref_forward_f32(params, inputs)
    np.testing.assert_allclose(np.asarray(value), np.asarray(rv32), rtol=5e-2, atol=5e-2)
    np.testing.assert_allclose(np.asarray(feats), np.asarray(rf32), rtol=5e-2, atol=5e-2)

    assert value.shape == (batch, 1) and feats.shape == (batch, 512)
    print("KERNEL_OK")
</pallas_src>

<mosaic_0001>
module attributes {stable_mosaic.version = 11 : i64} {
  func.func @_matmul_bias_act_kernel(%arg0: i32, %arg1: memref<512x256xbf16, #tpu.memory_space<vmem>>, %arg2: memref<256x32xbf16, #tpu.memory_space<vmem>>, %arg3: memref<1x32xf32, #tpu.memory_space<vmem>>, %arg4: memref<512x32xbf16, #tpu.memory_space<vmem>>) attributes {dimension_semantics = [#tpu.dimension_semantics<parallel>], iteration_bounds = array<i64: 2>, scalar_prefetch = 0 : i64, scratch_operands = 0 : i64, tpu.core_type = #tpu.core_type<tc>, window_params = [{transform_indices = @transform_0, window_bounds = array<i64: 512, 256>}, {pipeline_mode = #tpu.pipeline_mode<synchronous>, transform_indices = @transform_1, window_bounds = array<i64: 256, 32>}, {pipeline_mode = #tpu.pipeline_mode<synchronous>, transform_indices = @transform_2, window_bounds = array<i64: 1, 32>}, {transform_indices = @transform_3, window_bounds = array<i64: 512, 32>}]} {
    %c0 = arith.constant 0 : index
    %c0_0 = arith.constant 0 : index
    %0 = vector.load %arg1[%c0, %c0_0] : memref<512x256xbf16, #tpu.memory_space<vmem>>, vector<512x256xbf16>
    %c0_1 = arith.constant 0 : index
    %c0_2 = arith.constant 0 : index
    %1 = vector.load %arg2[%c0_1, %c0_2] : memref<256x32xbf16, #tpu.memory_space<vmem>>, vector<256x32xbf16>
    %cst = arith.constant dense<0.000000e+00> : vector<512x32xf32>
    %2 = tpu.matmul %0, %1, %cst {dimension_numbers = #tpu.dot_dimension_numbers<[1], [0], [0], [1], [0, 0, 1, 1], [], []>} : vector<512x256xbf16>, vector<256x32xbf16>, vector<512x32xf32> -> vector<512x32xf32>
    %c0_3 = arith.constant 0 : index
    %c0_4 = arith.constant 0 : index
    %3 = vector.load %arg3[%c0_3, %c0_4] : memref<1x32xf32, #tpu.memory_space<vmem>>, vector<1x32xf32>
    %4 = vector.broadcast %3 : vector<1x32xf32> to vector<512x32xf32>
    %5 = arith.addf %2, %4 : vector<512x32xf32>
    %cst_5 = arith.constant 0.000000e+00 : f32
    %6 = vector.broadcast %cst_5 : f32 to vector<512x32xf32>
    %7 = arith.maximumf %5, %6 : vector<512x32xf32>
    %8 = arith.truncf %7 : vector<512x32xf32> to vector<512x32xbf16>
    %c0_6 = arith.constant 0 : index
    %c0_7 = arith.constant 0 : index
    %9 = vector.load %arg4[%c0_6, %c0_7] : memref<512x32xbf16, #tpu.memory_space<vmem>>, vector<512x32xbf16>
    tpu.vector_store %arg4[%c0_6, %c0_7], %8 {strides = array<i32>} : memref<512x32xbf16, #tpu.memory_space<vmem>>, vector<512x32xbf16>,
    return
  }
  func.func @transform_0(%arg0: i32) -> (i32, i32) {
    %c0_i32 = arith.constant 0 : i32
    %c0_i32_0 = arith.constant 0 : i32
    return %arg0, %c0_i32 : i32, i32
  }
  func.func @transform_1(%arg0: i32) -> (i32, i32) {
    %c0_i32 = arith.constant 0 : i32
    %c0_i32_0 = arith.constant 0 : i32
    %c0_i32_1 = arith.constant 0 : i32
    return %c0_i32, %c0_i32_0 : i32, i32
  }
  func.func @transform_2(%arg0: i32) -> (i32, i32) {
    %c0_i32 = arith.constant 0 : i32
    %c0_i32_0 = arith.constant 0 : i32
    %c0_i32_1 = arith.constant 0 : i32
    return %c0_i32, %c0_i32_0 : i32, i32
  }
  func.func @transform_3(%arg0: i32) -> (i32, i32) {
    %c0_i32 = arith.constant 0 : i32
    %c0_i32_0 = arith.constant 0 : i32
    return %arg0, %c0_i32 : i32, i32
  }
}

module attributes {stable_mosaic.version = 11 : i64} {
  func.func @_matmul_bias_act_kernel(%arg0: i32, %arg1: memref<176x512xbf16, #tpu.memory_space<vmem>>, %arg2: memref<512x64xbf16, #tpu.memory_space<vmem>>, %arg3: memref<1x64xf32, #tpu.memory_space<vmem>>, %arg4: memref<176x64xbf16, #tpu.memory_space<vmem>>) attributes {dimension_semantics = [#tpu.dimension_semantics<parallel>], iteration_bounds = array<i64: 1>, scalar_prefetch = 0 : i64, scratch_operands = 0 : i64, tpu.core_type = #tpu.core_type<tc>, window_params = [{transform_indices = @transform_0, window_bounds = array<i64: 176, 512>}, {pipeline_mode = #tpu.pipeline_mode<synchronous>, transform_indices = @transform_1, window_bounds = array<i64: 512, 64>}, {pipeline_mode = #tpu.pipeline_mode<synchronous>, transform_indices = @transform_2, window_bounds = array<i64: 1, 64>}, {transform_indices = @transform_3, window_bounds = array<i64: 176, 64>}]} {
    %c0 = arith.constant 0 : index
    %c0_0 = arith.constant 0 : index
    %0 = vector.load %arg1[%c0, %c0_0] : memref<176x512xbf16, #tpu.memory_space<vmem>>, vector<176x512xbf16>
    %c0_1 = arith.constant 0 : index
    %c0_2 = arith.constant 0 : index
    %1 = vector.load %arg2[%c0_1, %c0_2] : memref<512x64xbf16, #tpu.memory_space<vmem>>, vector<512x64xbf16>
    %cst = arith.constant dense<0.000000e+00> : vector<176x64xf32>
    %2 = tpu.matmul %0, %1, %cst {dimension_numbers = #tpu.dot_dimension_numbers<[1], [0], [0], [1], [0, 0, 1, 1], [], []>} : vector<176x512xbf16>, vector<512x64xbf16>, vector<176x64xf32> -> vector<176x64xf32>
    %c0_3 = arith.constant 0 : index
    %c0_4 = arith.constant 0 : index
    %3 = vector.load %arg3[%c0_3, %c0_4] : memref<1x64xf32, #tpu.memory_space<vmem>>, vector<1x64xf32>
    %4 = vector.broadcast %3 : vector<1x64xf32> to vector<176x64xf32>
    %5 = arith.addf %2, %4 : vector<176x64xf32>
    %cst_5 = arith.constant 0.000000e+00 : f32
    %6 = vector.broadcast %cst_5 : f32 to vector<176x64xf32>
    %7 = arith.maximumf %5, %6 : vector<176x64xf32>
    %8 = arith.truncf %7 : vector<176x64xf32> to vector<176x64xbf16>
    %c0_6 = arith.constant 0 : index
    %c0_7 = arith.constant 0 : index
    %9 = vector.load %arg4[%c0_6, %c0_7] : memref<176x64xbf16, #tpu.memory_space<vmem>>, vector<176x64xbf16>
    tpu.vector_store %arg4[%c0_6, %c0_7], %8 {strides = array<i32>} : memref<176x64xbf16, #tpu.memory_space<vmem>>, vector<176x64xbf16>,
    return
  }
  func.func @transform_0(%arg0: i32) -> (i32, i32) {
    %c0_i32 = arith.constant 0 : i32
    %c0_i32_0 = arith.constant 0 : i32
    return %arg0, %c0_i32 : i32, i32
  }
  func.func @transform_1(%arg0: i32) -> (i32, i32) {
    %c0_i32 = arith.constant 0 : i32
    %c0_i32_0 = arith.constant 0 : i32
    %c0_i32_1 = arith.constant 0 : i32
    return %c0_i32, %c0_i32_0 : i32, i32
  }
  func.func @transform_2(%arg0: i32) -> (i32, i32) {
    %c0_i32 = arith.constant 0 : i32
    %c0_i32_0 = arith.constant 0 : i32
    %c0_i32_1 = arith.constant 0 : i32
    return %c0_i32, %c0_i32_0 : i32, i32
  }
  func.func @transform_3(%arg0: i32) -> (i32, i32) {
    %c0_i32 = arith.constant 0 : i32
    %c0_i32_0 = arith.constant 0 : i32
    return %arg0, %c0_i32 : i32, i32
  }
}

module attributes {stable_mosaic.version = 11 : i64} {
  func.func @_matmul_bias_act_kernel(%arg0: i32, %arg1: memref<112x576xbf16, #tpu.memory_space<vmem>>, %arg2: memref<576x32xbf16, #tpu.memory_space<vmem>>, %arg3: memref<1x32xf32, #tpu.memory_space<vmem>>, %arg4: memref<112x32xbf16, #tpu.memory_space<vmem>>) attributes {dimension_semantics = [#tpu.dimension_semantics<parallel>], iteration_bounds = array<i64: 1>, scalar_prefetch = 0 : i64, scratch_operands = 0 : i64, tpu.core_type = #tpu.core_type<tc>, window_params = [{transform_indices = @transform_0, window_bounds = array<i64: 112, 576>}, {pipeline_mode = #tpu.pipeline_mode<synchronous>, transform_indices = @transform_1, window_bounds = array<i64: 576, 32>}, {pipeline_mode = #tpu.pipeline_mode<synchronous>, transform_indices = @transform_2, window_bounds = array<i64: 1, 32>}, {transform_indices = @transform_3, window_bounds = array<i64: 112, 32>}]} {
    %c0 = arith.constant 0 : index
    %c0_0 = arith.constant 0 : index
    %0 = vector.load %arg1[%c0, %c0_0] : memref<112x576xbf16, #tpu.memory_space<vmem>>, vector<112x576xbf16>
    %c0_1 = arith.constant 0 : index
    %c0_2 = arith.constant 0 : index
    %1 = vector.load %arg2[%c0_1, %c0_2] : memref<576x32xbf16, #tpu.memory_space<vmem>>, vector<576x32xbf16>
    %cst = arith.constant dense<0.000000e+00> : vector<112x32xf32>
    %2 = tpu.matmul %0, %1, %cst {dimension_numbers = #tpu.dot_dimension_numbers<[1], [0], [0], [1], [0, 0, 1, 1], [], []>} : vector<112x576xbf16>, vector<576x32xbf16>, vector<112x32xf32> -> vector<112x32xf32>
    %c0_3 = arith.constant 0 : index
    %c0_4 = arith.constant 0 : index
    %3 = vector.load %arg3[%c0_3, %c0_4] : memref<1x32xf32, #tpu.memory_space<vmem>>, vector<1x32xf32>
    %4 = vector.broadcast %3 : vector<1x32xf32> to vector<112x32xf32>
    %5 = arith.addf %2, %4 : vector<112x32xf32>
    %cst_5 = arith.constant 0.000000e+00 : f32
    %6 = vector.broadcast %cst_5 : f32 to vector<112x32xf32>
    %7 = arith.maximumf %5, %6 : vector<112x32xf32>
    %8 = arith.truncf %7 : vector<112x32xf32> to vector<112x32xbf16>
    %c0_6 = arith.constant 0 : index
    %c0_7 = arith.constant 0 : index
    %9 = vector.load %arg4[%c0_6, %c0_7] : memref<112x32xbf16, #tpu.memory_space<vmem>>, vector<112x32xbf16>
    tpu.vector_store %arg4[%c0_6, %c0_7], %8 {strides = array<i32>} : memref<112x32xbf16, #tpu.memory_space<vmem>>, vector<112x32xbf16>,
    return
  }
  func.func @transform_0(%arg0: i32) -> (i32, i32) {
    %c0_i32 = arith.constant 0 : i32
    %c0_i32_0 = arith.constant 0 : i32
    return %arg0, %c0_i32 : i32, i32
  }
  func.func @transform_1(%arg0: i32) -> (i32, i32) {
    %c0_i32 = arith.constant 0 : i32
    %c0_i32_0 = arith.constant 0 : i32
    %c0_i32_1 = arith.constant 0 : i32
    return %c0_i32, %c0_i32_0 : i32, i32
  }
  func.func @transform_2(%arg0: i32) -> (i32, i32) {
    %c0_i32 = arith.constant 0 : i32
    %c0_i32_0 = arith.constant 0 : i32
    %c0_i32_1 = arith.constant 0 : i32
    return %c0_i32, %c0_i32_0 : i32, i32
  }
  func.func @transform_3(%arg0: i32) -> (i32, i32) {
    %c0_i32 = arith.constant 0 : i32
    %c0_i32_0 = arith.constant 0 : i32
    return %arg0, %c0_i32 : i32, i32
  }
}

module attributes {stable_mosaic.version = 11 : i64} {
  func.func @_head_kernel(%arg0: i32, %arg1: memref<16x1568xbf16, #tpu.memory_space<vmem>>, %arg2: memref<1568x512xbf16, #tpu.memory_space<vmem>>, %arg3: memref<1x512xf32, #tpu.memory_space<vmem>>, %arg4: memref<512x1xbf16, #tpu.memory_space<vmem>>, %arg5: memref<1x1xf32, #tpu.memory_space<vmem>>, %arg6: memref<16x512xf32, #tpu.memory_space<vmem>>, %arg7: memref<16x1xf32, #tpu.memory_space<vmem>>) attributes {dimension_semantics = [#tpu.dimension_semantics<parallel>], iteration_bounds = array<i64: 1>, scalar_prefetch = 0 : i64, scratch_operands = 0 : i64, tpu.core_type = #tpu.core_type<tc>, window_params = [{transform_indices = @transform_0, window_bounds = array<i64: 16, 1568>}, {pipeline_mode = #tpu.pipeline_mode<synchronous>, transform_indices = @transform_1, window_bounds = array<i64: 1568, 512>}, {pipeline_mode = #tpu.pipeline_mode<synchronous>, transform_indices = @transform_2, window_bounds = array<i64: 1, 512>}, {pipeline_mode = #tpu.pipeline_mode<synchronous>, transform_indices = @transform_3, window_bounds = array<i64: 512, 1>}, {pipeline_mode = #tpu.pipeline_mode<synchronous>, transform_indices = @transform_4, window_bounds = array<i64: 1, 1>}, {transform_indices = @transform_5, window_bounds = array<i64: 16, 512>}, {transform_indices = @transform_6, window_bounds = array<i64: 16, 1>}]} {
    %c0 = arith.constant 0 : index
    %c0_0 = arith.constant 0 : index
    %0 = vector.load %arg1[%c0, %c0_0] : memref<16x1568xbf16, #tpu.memory_space<vmem>>, vector<16x1568xbf16>
    %c0_1 = arith.constant 0 : index
    %c0_2 = arith.constant 0 : index
    %1 = vector.load %arg2[%c0_1, %c0_2] : memref<1568x512xbf16, #tpu.memory_space<vmem>>, vector<1568x512xbf16>
    %cst = arith.constant dense<0.000000e+00> : vector<16x512xf32>
    %2 = tpu.matmul %0, %1, %cst {dimension_numbers = #tpu.dot_dimension_numbers<[1], [0], [0], [1], [0, 0, 1, 1], [], []>} : vector<16x1568xbf16>, vector<1568x512xbf16>, vector<16x512xf32> -> vector<16x512xf32>
    %c0_3 = arith.constant 0 : index
    %c0_4 = arith.constant 0 : index
    %3 = vector.load %arg3[%c0_3, %c0_4] : memref<1x512xf32, #tpu.memory_space<vmem>>, vector<1x512xf32>
    %4 = vector.broadcast %3 : vector<1x512xf32> to vector<16x512xf32>
    %5 = arith.addf %2, %4 : vector<16x512xf32>
    %cst_5 = arith.constant 0.000000e+00 : f32
    %6 = vector.broadcast %cst_5 : f32 to vector<16x512xf32>
    %7 = arith.maximumf %5, %6 : vector<16x512xf32>
    %c0_6 = arith.constant 0 : index
    %c0_7 = arith.constant 0 : index
    %8 = vector.load %arg6[%c0_6, %c0_7] : memref<16x512xf32, #tpu.memory_space<vmem>>, vector<16x512xf32>
    tpu.vector_store %arg6[%c0_6, %c0_7], %7 {strides = array<i32>} : memref<16x512xf32, #tpu.memory_space<vmem>>, vector<16x512xf32>,
    %9 = arith.truncf %7 : vector<16x512xf32> to vector<16x512xbf16>
    %c0_8 = arith.constant 0 : index
    %c0_9 = arith.constant 0 : index
    %10 = vector.load %arg4[%c0_8, %c0_9] : memref<512x1xbf16, #tpu.memory_space<vmem>>, vector<512x1xbf16>
    %cst_10 = arith.constant dense<0.000000e+00> : vector<16x1xf32>
    %11 = tpu.matmul %9, %10, %cst_10 {dimension_numbers = #tpu.dot_dimension_numbers<[1], [0], [0], [1], [0, 0, 1, 1], [], []>} : vector<16x512xbf16>, vector<512x1xbf16>, vector<16x1xf32> -> vector<16x1xf32>
    %c0_11 = arith.constant 0 : index
    %c0_12 = arith.constant 0 : index
    %12 = vector.load %arg5[%c0_11, %c0_12] : memref<1x1xf32, #tpu.memory_space<vmem>>, vector<1x1xf32>
    %13 = vector.broadcast %12 : vector<1x1xf32> to vector<16x1xf32>
    %14 = arith.addf %11, %13 : vector<16x1xf32>
    %c0_13 = arith.constant 0 : index
    %c0_14 = arith.constant 0 : index
    %15 = vector.load %arg7[%c0_13, %c0_14] : memref<16x1xf32, #tpu.memory_space<vmem>>, vector<16x1xf32>
    tpu.vector_store %arg7[%c0_13, %c0_14], %14 {strides = array<i32>} : memref<16x1xf32, #tpu.memory_space<vmem>>, vector<16x1xf32>,
    return
  }
  func.func @transform_0(%arg0: i32) -> (i32, i32) {
    %c0_i32 = arith.constant 0 : i32
    %c0_i32_0 = arith.constant 0 : i32
    return %arg0, %c0_i32 : i32, i32
  }
  func.func @transform_1(%arg0: i32) -> (i32, i32) {
    %c0_i32 = arith.constant 0 : i32
    %c0_i32_0 = arith.constant 0 : i32
    %c0_i32_1 = arith.constant 0 : i32
    return %c0_i32, %c0_i32_0 : i32, i32
  }
  func.func @transform_2(%arg0: i32) -> (i32, i32) {
    %c0_i32 = arith.constant 0 : i32
    %c0_i32_0 = arith.constant 0 : i32
    %c0_i32_1 = arith.constant 0 : i32
    return %c0_i32, %c0_i32_0 : i32, i32
  }
  func.func @transform_3(%arg0: i32) -> (i32, i32) {
    %c0_i32 = arith.constant 0 : i32
    %c0_i32_0 = arith.constant 0 : i32
    %c0_i32_1 = arith.constant 0 : i32
    return %c0_i32, %c0_i32_0 : i32, i32
  }
  func.func @transform_4(%arg0: i32) -> (i32, i32) {
    %c0_i32 = arith.constant 0 : i32
    %c0_i32_0 = arith.constant 0 : i32
    %c0_i32_1 = arith.constant 0 : i32
    return %c0_i32, %c0_i32_0 : i32, i32
  }
  func.func @transform_5(%arg0: i32) -> (i32, i32) {
    %c0_i32 = arith.constant 0 : i32
    %c0_i32_0 = arith.constant 0 : i32
    return %arg0, %c0_i32 : i32, i32
  }
  func.func @transform_6(%arg0: i32) -> (i32, i32) {
    %c0_i32 = arith.constant 0 : i32
    %c0_i32_0 = arith.constant 0 : i32
    return %arg0, %c0_i32 : i32, i32
  }
}

</mosaic_0001>

<llo_original>
// kernel: cnn_policy_forward.4
$region0: #{cnn_policy_forward.4}
  #allocation0 [shape = 'u32[]', space=smem, size = 0x4, offset = 0x4, fixed_abs, tag = 'smem constant byte address 0x4 - core index']
  #allocation1 [shape = 'u32[144,128]{1,0:T(1,128)}', space=vmem, size = 0x12000, scoped, tag = 'internal scratch']
  %s0 = inlined_call_operand.vmem [shape: bf16[1024,256], index: 0, kind: input, shape index: {}]
  %s1 = inlined_call_operand.vmem [shape: bf16[256,32], index: 1, kind: input, shape index: {}]
  %s2 = inlined_call_operand.vmem [shape: f32[1,32], index: 2, kind: input, shape index: {}]
  %s3 = inlined_call_operand.vmem [shape: bf16[1024,32], index: 3, kind: output, shape index: {}]
  %s4 = sld [smem:[#allocation0]]
  $region45: #{cnn_policy_forward.4} parent=0
    _
  %s6 = ssub.s32 1, %s4
  %s7 = scalar_select 0, %s6, %s4
  loop: start=0, step=1, limit=4
  $region2: #{cnn_policy_forward.4} parent=0 // loop_pre_header
    _
  $region3: #{cnn_policy_forward.4} parent=0 // loop_header
    %s9 = sphi 0, %s13
    %p10 = scmp.ge.s32.totalorder %s9, 4
    %s19 = sphi 0, %s21
    %s22 = sphi 0, %s19
    %s23 = sphi 0, %s22
    %s39 = sphi 0, %s23
    %s43 = sphi 0, %s43
    %s45 = sphi 0, %s43
    %s46 = sphi 0, %s45
    %s60 = sphi 0, %s46
    %s64 = sphi 0, %s64
    %s66 = sphi 0, %s64
    %s67 = sphi 0, %s66
    %s81 = sphi 0, %s67
    %s87 = sphi 0, %s89
    %s90 = sphi 0, %s87
    %s91 = sphi 0, %s90
    %s107 = sphi 0, %s91
  $region4: #{cnn_policy_forward.4} parent=0 // loop_header_branch
    %12 = sbr.rel (%p10) target = $region8
  $region5: #{cnn_policy_forward.4} parent=0 // loop_body
    %s14 = ssub.s32 %s9, 1
    %s15 = ssub.s32 %s9, 2
    %s16 = sadd.s32 %s9, 1
    %s17 = ssub.s32 %s9, %s16
    %p18 = scmp.eq.s32.totalorder %s17, 0
    %s20 = sadd.s32 %s19, 1
    %s21 = scalar_select %p18, %s19, %s20
    %p24 = pneg %p18
    %p25 = scmp.eq.s32.totalorder %s9, 1
    %p26 = por %p24, %p25
    %p27 = scmp.ne.s32.totalorder %s19, %s22
    %p28 = scmp.eq.s32.totalorder %s9, 0
    %p29 = por %p27, %p28
    %p30 = scmp.ne.s32.totalorder %s19, %s22
    %p31 = scmp.eq.s32.totalorder %s14, 1
    %p32 = por %p30, %p31
    %p33 = scmp.ne.s32.totalorder %s22, %s23
    %p34 = scmp.eq.s32.totalorder %s14, 0
    %p35 = por %p33, %p34
    %p36 = scmp.ne.s32.totalorder %s22, %s23
    %p37 = scmp.eq.s32.totalorder %s15, 1
    %p38 = por %p36, %p37
    %p40 = scmp.ne.s32.totalorder %s23, %s39
    %p41 = scmp.eq.s32.totalorder %s15, 0
    %p42 = por %p40, %p41
    %s44 = sadd.s32 %s43, 1
    %p47 = scmp.eq.s32.totalorder %s9, 1
    %p48 = scmp.ne.s32.totalorder %s43, %s45
    %p49 = scmp.eq.s32.totalorder %s9, 0
    %p50 = por %p48, %p49
    %p51 = scmp.ne.s32.totalorder %s43, %s45
    %p52 = scmp.eq.s32.totalorder %s14, 1
    %p53 = por %p51, %p52
    %p54 = scmp.ne.s32.totalorder %s45, %s46
    %p55 = scmp.eq.s32.totalorder %s14, 0
    %p56 = por %p54, %p55
    %p57 = scmp.ne.s32.totalorder %s45, %s46
    %p58 = scmp.eq.s32.totalorder %s15, 1
    %p59 = por %p57, %p58
    %p61 = scmp.ne.s32.totalorder %s46, %s60
    %p62 = scmp.eq.s32.totalorder %s15, 0
    %p63 = por %p61, %p62
    %s65 = sadd.s32 %s64, 1
    %p68 = scmp.eq.s32.totalorder %s9, 1
    %p69 = scmp.ne.s32.totalorder %s64, %s66
    %p70 = scmp.eq.s32.totalorder %s9, 0
    %p71 = por %p69, %p70
    %p72 = scmp.ne.s32.totalorder %s64, %s66
    %p73 = scmp.eq.s32.totalorder %s14, 1
    %p74 = por %p72, %p73
    %p75 = scmp.ne.s32.totalorder %s66, %s67
    %p76 = scmp.eq.s32.totalorder %s14, 0
    %p77 = por %p75, %p76
    %p78 = scmp.ne.s32.totalorder %s66, %s67
    %p79 = scmp.eq.s32.totalorder %s15, 1
    %p80 = por %p78, %p79
    %p82 = scmp.ne.s32.totalorder %s67, %s81
    %p83 = scmp.eq.s32.totalorder %s15, 0
    %p84 = por %p82, %p83
    %s85 = ssub.s32 %s9, %s16
    %p86 = scmp.eq.s32.totalorder %s85, 0
    %s88 = sadd.s32 %s87, 1
    %s89 = scalar_select %p86, %s87, %s88
    %p92 = pneg %p86
    %p93 = scmp.eq.s32.totalorder %s9, 1
    %p94 = por %p92, %p93
    %p95 = scmp.ne.s32.totalorder %s87, %s90
    %p96 = scmp.eq.s32.totalorder %s9, 0
    %p97 = por %p95, %p96
    %p98 = scmp.ne.s32.totalorder %s87, %s90
    %p99 = scmp.eq.s32.totalorder %s14, 1
    %p100 = por %p98, %p99
    %p101 = scmp.ne.s32.totalorder %s90, %s91
    %p102 = scmp.eq.s32.totalorder %s14, 0
    %p103 = por %p101, %p102
    %p104 = scmp.ne.s32.totalorder %s90, %s91
    %p105 = scmp.eq.s32.totalorder %s15, 1
    %p106 = por %p104, %p105
    %p108 = scmp.ne.s32.totalorder %s91, %s107
    %p109 = scmp.eq.s32.totalorder %s15, 0
    %p110 = por %p108, %p109
    %p111 = scmp.le.s32.totalorder 1, %s9
    %p112 = scmp.lt.s32.totalorder %s9, 3
    %p113 = pnand %p111, %p112
    %p114 = pneg %p113
    // Predicated region
    $region9: #{cnn_policy_forward.4} parent=5 // pred_check
      _
    $region10: #{cnn_policy_forward.4} parent=5 // pred_check_branch
      %116 = sbr.rel (%p113) target = $region12
    $region11: #{cnn_policy_forward.4} parent=5 // pred_region
      %s117 = ssub.s32 %s9, 1
      // Predicated region
      $region13: #{cnn_policy_forward.4} parent=11 // pred_check
        %p118 = pneg %p56
      $region14: #{cnn_policy_forward.4} parent=11 // pred_check_branch
        %120 = sbr.rel (%p118) target = $region16
      $region15: #{cnn_policy_forward.4} parent=11 // pred_region
        _
      $region16: #{cnn_policy_forward.4} parent=11 // pred_fallthru
        _
      // Predicated region
      $region17: #{cnn_policy_forward.4} parent=11 // pred_check
        %p121 = pneg %p77
      $region18: #{cnn_policy_forward.4} parent=11 // pred_check_branch
        %123 = sbr.rel (%p121) target = $region20
      $region19: #{cnn_policy_forward.4} parent=11 // pred_region
        _
      $region20: #{cnn_policy_forward.4} parent=11 // pred_fallthru
        _
    $region12: #{cnn_policy_forward.4} parent=5 // pred_fallthru
      _
    %p124 = scmp.lt.s32.totalorder %s9, 2
    // Predicated region
    $region21: #{cnn_policy_forward.4} parent=5 // pred_check
      %p125 = pneg %p124
    $region22: #{cnn_policy_forward.4} parent=5 // pred_check_branch
      %127 = sbr.rel (%p125) target = $region24
    $region23: #{cnn_policy_forward.4} parent=5 // pred_region
      // Predicated region
      $region25: #{cnn_policy_forward.4} parent=23 // pred_check
        %p128 = pneg %p29
      $region26: #{cnn_policy_forward.4} parent=23 // pred_check_branch
        %130 = sbr.rel (%p128) target = $region28
      $region27: #{cnn_policy_forward.4} parent=23 // pred_region
        %s131 = smul.u32 64, %s9
        %p132 = scmp.lt.s32.totalorder %s131, 127
        %s133 = scalar_select %p132, %s131, 127
        %s134 = smul.addr %s133, 2
        %s135 = smul.addr %s134, 4
        %s136 = scalar_lea.vmem %s0, %s135
        %s137 = smul.u32 64, %s9
      $region28: #{cnn_policy_forward.4} parent=23 // pred_fallthru
        _
    $region24: #{cnn_policy_forward.4} parent=5 // pred_fallthru
      _
    %p138 = scmp.le.s32.totalorder 1, %s9
    %p139 = scmp.lt.s32.totalorder %s9, 3
    %p140 = pnand %p138, %p139
    %p141 = pneg %p140
    // Predicated region
    $region29: #{cnn_policy_forward.4} parent=5 // pred_check
      _
    $region30: #{cnn_policy_forward.4} parent=5 // pred_check_branch
      %143 = sbr.rel (%p140) target = $region32
    $region31: #{cnn_policy_forward.4} parent=5 // pred_region
      %s144 = ssub.s32 %s9, 1
      %s145 = smul.u32 64, %s14
      %p146 = scmp.lt.s32.totalorder %s145, 127
      %s147 = scalar_select %p146, %s145, 127
      %s148 = smul.addr %s147, 2
      %s149 = smul.addr %s148, 4
      %s150 = scalar_lea.vmem %s0, %s149
      %p151 = pneg %p35
      %p152 = pneg %p32
      %p153 = pneg %p56
      %p154 = pneg %p53
      %p155 = pneg %p77
      %p156 = pneg %p74
      %p157 = pneg %p103
      %p158 = pneg %p100
      %s159 = smul.u32 64, %s14
      %p160 = scmp.lt.s32.totalorder %s159, 127
      %s161 = scalar_select %p160, %s159, 127
      %s162 = smul.addr %s161, 4
      %s163 = scalar_lea.vmem %s3, %s162
      %s164 = smul.u32 64, %s14
      %p165 = scmp.lt.s32.totalorder %s164, 127
      %s166 = scalar_select %p165, %s164, 127
      %s167 = smul.addr %s166, 2
      %s168 = smul.addr %s167, 4
      %s169 = scalar_lea.vmem %s0, %s168
      %s170 = smul.u32 64, %s14
      %s171 = smul.u32 64, %s14
      %p172 = scmp.lt.s32.totalorder %s171, 127
      %s173 = scalar_select %p172, %s171, 127
      %s174 = smul.addr %s173, 4
      %s175 = scalar_lea.vmem %s3, %s174
      %s176 = smul.u32 64, %s14
      %v178 = vld [vmem:[%s169] sm:$0xff]
      %v179 = vld [vmem:[%s169 + $0x8] sm:$0xff]
      %v180 = vld [vmem:[%s169 + $0x10] sm:$0xff]
      %v181 = vld [vmem:[%s169 + $0x18] sm:$0xff]
      %v182 = vld [vmem:[%s169 + $0x20] sm:$0xff]
      %v183 = vld [vmem:[%s169 + $0x28] sm:$0xff]
      %v184 = vld [vmem:[%s169 + $0x30] sm:$0xff]
      %v185 = vld [vmem:[%s169 + $0x38] sm:$0xff]
      %v186 = vld [vmem:[%s169 + $0x40] sm:$0xff]
      %v187 = vld [vmem:[%s169 + $0x48] sm:$0xff]
      %v188 = vld [vmem:[%s169 + $0x50] sm:$0xff]
      %v189 = vld [vmem:[%s169 + $0x58] sm:$0xff]
      %v190 = vld [vmem:[%s169 + $0x60] sm:$0xff]
      %v191 = vld [vmem:[%s169 + $0x68] sm:$0xff]
      %v192 = vld [vmem:[%s169 + $0x70] sm:$0xff]
      %v193 = vld [vmem:[%s169 + $0x78] sm:$0xff]
      %v194 = vld [vmem:[%s169 + $0x80] sm:$0xff]
      %v195 = vld [vmem:[%s169 + $0x88] sm:$0xff]
      %v196 = vld [vmem:[%s169 + $0x90] sm:$0xff]
      %v197 = vld [vmem:[%s169 + $0x98] sm:$0xff]
      %v198 = vld [vmem:[%s169 + $0xa0] sm:$0xff]
      %v199 = vld [vmem:[%s169 + $0xa8] sm:$0xff]
      %v200 = vld [vmem:[%s169 + $0xb0] sm:$0xff]
      %v201 = vld [vmem:[%s169 + $0xb8] sm:$0xff]
      %v202 = vld [vmem:[%s169 + $0xc0] sm:$0xff]
      %v203 = vld [vmem:[%s169 + $0xc8] sm:$0xff]
      %v204 = vld [vmem:[%s169 + $0xd0] sm:$0xff]
      %v205 = vld [vmem:[%s169 + $0xd8] sm:$0xff]
      %v206 = vld [vmem:[%s169 + $0xe0] sm:$0xff]
      %v207 = vld [vmem:[%s169 + $0xe8] sm:$0xff]
      %v208 = vld [vmem:[%s169 + $0xf0] sm:$0xff]
      %v209 = vld [vmem:[%s169 + $0xf8] sm:$0xff]
      %v210 = vld [vmem:[%s169 + $0x100] sm:$0xff]
      %v211 = vld [vmem:[%s169 + $0x108] sm:$0xff]
      %v212 = vld [vmem:[%s169 + $0x110] sm:$0xff]
      %v213 = vld [vmem:[%s169 + $0x118] sm:$0xff]
      %v214 = vld [vmem:[%s169 + $0x120] sm:$0xff]
      %v215 = vld [vmem:[%s169 + $0x128] sm:$0xff]
      %v216 = vld [vmem:[%s169 + $0x130] sm:$0xff]
      %v217 = vld [vmem:[%s169 + $0x138] sm:$0xff]
      %v218 = vld [vmem:[%s169 + $0x140] sm:$0xff]
      %v219 = vld [vmem:[%s169 + $0x148] sm:$0xff]
      %v220 = vld [vmem:[%s169 + $0x150] sm:$0xff]
      %v221 = vld [vmem:[%s169 + $0x158] sm:$0xff]
      %v222 = vld [vmem:[%s169 + $0x160] sm:$0xff]
      %v223 = vld [vmem:[%s169 + $0x168] sm:$0xff]
      %v224 = vld [vmem:[%s169 + $0x170] sm:$0xff]
      %v225 = vld [vmem:[%s169 + $0x178] sm:$0xff]
      %v226 = vld [vmem:[%s169 + $0x180] sm:$0xff]
      %v227 = vld [vmem:[%s169 + $0x188] sm:$0xff]
      %v228 = vld [vmem:[%s169 + $0x190] sm:$0xff]
      %v229 = vld [vmem:[%s169 + $0x198] sm:$0xff]
      %v230 = vld [vmem:[%s169 + $0x1a0] sm:$0xff]
      %v231 = vld [vmem:[%s169 + $0x1a8] sm:$0xff]
      %v232 = vld [vmem:[%s169 + $0x1b0] sm:$0xff]
      %v233 = vld [vmem:[%s169 + $0x1b8] sm:$0xff]
      %v234 = vld [vmem:[%s169 + $0x1c0] sm:$0xff]
      %v235 = vld [vmem:[%s169 + $0x1c8] sm:$0xff]
      %v236 = vld [vmem:[%s169 + $0x1d0] sm:$0xff]
      %v237 = vld [vmem:[%s169 + $0x1d8] sm:$0xff]
      %v238 = vld [vmem:[%s169 + $0x1e0] sm:$0xff]
      %v239 = vld [vmem:[%s169 + $0x1e8] sm:$0xff]
      %v240 = vld [vmem:[%s169 + $0x1f0] sm:$0xff]
      %v241 = vld [vmem:[%s169 + $0x1f8] sm:$0xff]
      %v242 = vld [vmem:[%s1] sm:$0xf]
      %v243 = vld [vmem:[%s1 + $0x4] sm:$0xf]
      %v244 = vld [vmem:[%s1 + $0x8] sm:$0xf]
      %v245 = vld [vmem:[%s1 + $0xc] sm:$0xf]
      %v246 = vld [vmem:[%s1 + $0x10] sm:$0xf]
      %v247 = vld [vmem:[%s1 + $0x14] sm:$0xf]
      %v248 = vld [vmem:[%s1 + $0x18] sm:$0xf]
      %v249 = vld [vmem:[%s1 + $0x1c] sm:$0xf]
      %v250 = vld [vmem:[%s1 + $0x20] sm:$0xf]
      %v251 = vld [vmem:[%s1 + $0x24] sm:$0xf]
      %v252 = vld [vmem:[%s1 + $0x28] sm:$0xf]
      %v253 = vld [vmem:[%s1 + $0x2c] sm:$0xf]
      %v254 = vld [vmem:[%s1 + $0x30] sm:$0xf]
      %v255 = vld [vmem:[%s1 + $0x34] sm:$0xf]
      %v256 = vld [vmem:[%s1 + $0x38] sm:$0xf]
      %v257 = vld [vmem:[%s1 + $0x3c] sm:$0xf]
      %v258 = vld [vmem:[%s1 + $0x40] sm:$0xf]
      %v259 = vld [vmem:[%s1 + $0x44] sm:$0xf]
      %v260 = vld [vmem:[%s1 + $0x48] sm:$0xf]
      %v261 = vld [vmem:[%s1 + $0x4c] sm:$0xf]
      %v262 = vld [vmem:[%s1 + $0x50] sm:$0xf]
      %v263 = vld [vmem:[%s1 + $0x54] sm:$0xf]
      %v264 = vld [vmem:[%s1 + $0x58] sm:$0xf]
      %v265 = vld [vmem:[%s1 + $0x5c] sm:$0xf]
      %v266 = vld [vmem:[%s1 + $0x60] sm:$0xf]
      %v267 = vld [vmem:[%s1 + $0x64] sm:$0xf]
      %v268 = vld [vmem:[%s1 + $0x68] sm:$0xf]
      %v269 = vld [vmem:[%s1 + $0x6c] sm:$0xf]
      %v270 = vld [vmem:[%s1 + $0x70] sm:$0xf]
      %v271 = vld [vmem:[%s1 + $0x74] sm:$0xf]
      %v272 = vld [vmem:[%s1 + $0x78] sm:$0xf]
      %v273 = vld [vmem:[%s1 + $0x7c] sm:$0xf]
      %v274 = vld [vmem:[%s2] sm:$0x1]
      %v276 = vlaneseq
      %v277 = vshrl.u32 %v276, 7
      %v278 = vsub.s32 0, %v277
      %v279 = vrot.slane %v274, %v278
      %v345 = vunpack.c.l.b16 %v178
      %v346 = vunpack.c.h.b16 %v178
      %v347 = vunpack.c.l.b16 %v179
      %v348 = vunpack.c.h.b16 %v179
      %v349 = vunpack.c.l.b16 %v180
      %v350 = vunpack.c.h.b16 %v180
      %v351 = vunpack.c.l.b16 %v181
      %v352 = vunpack.c.h.b16 %v181
      %v353 = vunpack.c.l.b16 %v182
      %v354 = vunpack.c.h.b16 %v182
      %v355 = vunpack.c.l.b16 %v183
      %v356 = vunpack.c.h.b16 %v183
      %v357 = vunpack.c.l.b16 %v184
      %v358 = vunpack.c.h.b16 %v184
      %v359 = vunpack.c.l.b16 %v185
      %v360 = vunpack.c.h.b16 %v185
      %v361 = vunpack.c.l.b16 %v186
      %v362 = vunpack.c.h.b16 %v186
      %v363 = vunpack.c.l.b16 %v187
      %v364 = vunpack.c.h.b16 %v187
      %v365 = vunpack.c.l.b16 %v188
      %v366 = vunpack.c.h.b16 %v188
      %v367 = vunpack.c.l.b16 %v189
      %v368 = vunpack.c.h.b16 %v189
      %v369 = vunpack.c.l.b16 %v190
      %v370 = vunpack.c.h.b16 %v190
      %v371 = vunpack.c.l.b16 %v191
      %v372 = vunpack.c.h.b16 %v191
      %v373 = vunpack.c.l.b16 %v192
      %v374 = vunpack.c.h.b16 %v192
      %v375 = vunpack.c.l.b16 %v193
      %v376 = vunpack.c.h.b16 %v193
      %v377 = vunpack.c.l.b16 %v194
      %v378 = vunpack.c.h.b16 %v194
      %v379 = vunpack.c.l.b16 %v195
      %v380 = vunpack.c.h.b16 %v195
      %v381 = vunpack.c.l.b16 %v196
      %v382 = vunpack.c.h.b16 %v196
      %v383 = vunpack.c.l.b16 %v197
      %v384 = vunpack.c.h.b16 %v197
      %v385 = vunpack.c.l.b16 %v198
      %v386 = vunpack.c.h.b16 %v198
      %v387 = vunpack.c.l.b16 %v199
      %v388 = vunpack.c.h.b16 %v199
      %v389 = vunpack.c.l.b16 %v200
      %v390 = vunpack.c.h.b16 %v200
      %v391 = vunpack.c.l.b16 %v201
      %v392 = vunpack.c.h.b16 %v201
      %v393 = vunpack.c.l.b16 %v202
      %v394 = vunpack.c.h.b16 %v202
      %v395 = vunpack.c.l.b16 %v203
      %v396 = vunpack.c.h.b16 %v203
      %v397 = vunpack.c.l.b16 %v204
      %v398 = vunpack.c.h.b16 %v204
      %v399 = vunpack.c.l.b16 %v205
      %v400 = vunpack.c.h.b16 %v205
      %v401 = vunpack.c.l.b16 %v206
      %v402 = vunpack.c.h.b16 %v206
      %v403 = vunpack.c.l.b16 %v207
      %v404 = vunpack.c.h.b16 %v207
      %v405 = vunpack.c.l.b16 %v208
      %v406 = vunpack.c.h.b16 %v208
      %v407 = vunpack.c.l.b16 %v209
      %v408 = vunpack.c.h.b16 %v209
      %v409 = vunpack.c.l.b16 %v210
      %v410 = vunpack.c.h.b16 %v210
      %v411 = vunpack.c.l.b16 %v211
      %v412 = vunpack.c.h.b16 %v211
      %v413 = vunpack.c.l.b16 %v212
      %v414 = vunpack.c.h.b16 %v212
      %v415 = vunpack.c.l.b16 %v213
      %v416 = vunpack.c.h.b16 %v213
      %v417 = vunpack.c.l.b16 %v214
      %v418 = vunpack.c.h.b16 %v214
      %v419 = vunpack.c.l.b16 %v215
      %v420 = vunpack.c.h.b16 %v215
      %v421 = vunpack.c.l.b16 %v216
      %v422 = vunpack.c.h.b16 %v216
      %v423 = vunpack.c.l.b16 %v217
      %v424 = vunpack.c.h.b16 %v217
      %v425 = vunpack.c.l.b16 %v218
      %v426 = vunpack.c.h.b16 %v218
      %v427 = vunpack.c.l.b16 %v219
      %v428 = vunpack.c.h.b16 %v219
      %v429 = vunpack.c.l.b16 %v220
      %v430 = vunpack.c.h.b16 %v220
      %v431 = vunpack.c.l.b16 %v221
      %v432 = vunpack.c.h.b16 %v221
      %v433 = vunpack.c.l.b16 %v222
      %v434 = vunpack.c.h.b16 %v222
      %v435 = vunpack.c.l.b16 %v223
      %v436 = vunpack.c.h.b16 %v223
      %v437 = vunpack.c.l.b16 %v224
      %v438 = vunpack.c.h.b16 %v224
      %v439 = vunpack.c.l.b16 %v225
      %v440 = vunpack.c.h.b16 %v225
      %v441 = vunpack.c.l.b16 %v226
      %v442 = vunpack.c.h.b16 %v226
      %v443 = vunpack.c.l.b16 %v227
      %v444 = vunpack.c.h.b16 %v227
      %v445 = vunpack.c.l.b16 %v228
      %v446 = vunpack.c.h.b16 %v228
      %v447 = vunpack.c.l.b16 %v229
      %v448 = vunpack.c.h.b16 %v229
      %v449 = vunpack.c.l.b16 %v230
      %v450 = vunpack.c.h.b16 %v230
      %v451 = vunpack.c.l.b16 %v231
      %v452 = vunpack.c.h.b16 %v231
      %v453 = vunpack.c.l.b16 %v232
      %v454 = vunpack.c.h.b16 %v232
      %v455 = vunpack.c.l.b16 %v233
      %v456 = vunpack.c.h.b16 %v233
      %v457 = vunpack.c.l.b16 %v234
      %v458 = vunpack.c.h.b16 %v234
      %v459 = vunpack.c.l.b16 %v235
      %v460 = vunpack.c.h.b16 %v235
      %v461 = vunpack.c.l.b16 %v236
      %v462 = vunpack.c.h.b16 %v236
      %v463 = vunpack.c.l.b16 %v237
      %v464 = vunpack.c.h.b16 %v237
      %v465 = vunpack.c.l.b16 %v238
      %v466 = vunpack.c.h.b16 %v238
      %v467 = vunpack.c.l.b16 %v239
      %v468 = vunpack.c.h.b16 %v239
      %v469 = vunpack.c.l.b16 %v240
      %v470 = vunpack.c.h.b16 %v240
      %v471 = vunpack.c.l.b16 %v241
      %v472 = vunpack.c.h.b16 %v241
      %v473 = vpack.c.b16 %v347, %v345
      %v474 = vpack.c.b16 %v348, %v346
      %v475 = vpack.c.b16 %v351, %v349
      %v476 = vpack.c.b16 %v352, %v350
      %v477 = vpack.c.b16 %v355, %v353
      %v478 = vpack.c.b16 %v356, %v354
      %v479 = vpack.c.b16 %v359, %v357
      %v480 = vpack.c.b16 %v360, %v358
      %v481 = vpack.c.b16 %v363, %v361
      %v482 = vpack.c.b16 %v364, %v362
      %v483 = vpack.c.b16 %v367, %v365
      %v484 = vpack.c.b16 %v368, %v366
      %v485 = vpack.c.b16 %v371, %v369
      %v486 = vpack.c.b16 %v372, %v370
      %v487 = vpack.c.b16 %v375, %v373
      %v488 = vpack.c.b16 %v376, %v374
      %v489 = vpack.c.b16 %v379, %v377
      %v490 = vpack.c.b16 %v380, %v378
      %v491 = vpack.c.b16 %v383, %v381
      %v492 = vpack.c.b16 %v384, %v382
      %v493 = vpack.c.b16 %v387, %v385
      %v494 = vpack.c.b16 %v388, %v386
      %v495 = vpack.c.b16 %v391, %v389
      %v496 = vpack.c.b16 %v392, %v390
      %v497 = vpack.c.b16 %v395, %v393
      %v498 = vpack.c.b16 %v396, %v394
      %v499 = vpack.c.b16 %v399, %v397
      %v500 = vpack.c.b16 %v400, %v398
      %v501 = vpack.c.b16 %v403, %v401
      %v502 = vpack.c.b16 %v404, %v402
      %v503 = vpack.c.b16 %v407, %v405
      %v504 = vpack.c.b16 %v408, %v406
      %v505 = vpack.c.b16 %v411, %v409
      %v506 = vpack.c.b16 %v412, %v410
      %v507 = vpack.c.b16 %v415, %v413
      %v508 = vpack.c.b16 %v416, %v414
      %v509 = vpack.c.b16 %v419, %v417
      %v510 = vpack.c.b16 %v420, %v418
      %v511 = vpack.c.b16 %v423, %v421
      %v512 = vpack.c.b16 %v424, %v422
      %v513 = vpack.c.b16 %v427, %v425
      %v514 = vpack.c.b16 %v428, %v426
      %v515 = vpack.c.b16 %v431, %v429
      %v516 = vpack.c.b16 %v432, %v430
      %v517 = vpack.c.b16 %v435, %v433
      %v518 = vpack.c.b16 %v436, %v434
      %v519 = vpack.c.b16 %v439, %v437
      %v520 = vpack.c.b16 %v440, %v438
      %v521 = vpack.c.b16 %v443, %v441
      %v522 = vpack.c.b16 %v444, %v442
      %v523 = vpack.c.b16 %v447, %v445
      %v524 = vpack.c.b16 %v448, %v446
      %v525 = vpack.c.b16 %v451, %v449
      %v526 = vpack.c.b16 %v452, %v450
      %v527 = vpack.c.b16 %v455, %v453
      %v528 = vpack.c.b16 %v456, %v454
      %v529 = vpack.c.b16 %v459, %v457
      %v530 = vpack.c.b16 %v460, %v458
      %v531 = vpack.c.b16 %v463, %v461
      %v532 = vpack.c.b16 %v464, %v462
      %v533 = vpack.c.b16 %v467, %v465
      %v534 = vpack.c.b16 %v468, %v466
      %v535 = vpack.c.b16 %v471, %v469
      %v536 = vpack.c.b16 %v472, %v470
      %v633 = vunpack.c.l.b16 %v242
      %v634 = vunpack.c.l.b16 %v243
      %v635 = vunpack.c.l.b16 %v244
      %v636 = vunpack.c.l.b16 %v245
      %v637 = vunpack.c.l.b16 %v246
      %v638 = vunpack.c.l.b16 %v247
      %v639 = vunpack.c.l.b16 %v248
      %v640 = vunpack.c.l.b16 %v249
      %v641 = vunpack.c.l.b16 %v250
      %v642 = vunpack.c.l.b16 %v251
      %v643 = vunpack.c.l.b16 %v252
      %v644 = vunpack.c.l.b16 %v253
      %v645 = vunpack.c.l.b16 %v254
      %v646 = vunpack.c.l.b16 %v255
      %v647 = vunpack.c.l.b16 %v256
      %v648 = vunpack.c.l.b16 %v257
      %v649 = vunpack.c.l.b16 %v258
      %v650 = vunpack.c.l.b16 %v259
      %v651 = vunpack.c.l.b16 %v260
      %v652 = vunpack.c.l.b16 %v261
      %v653 = vunpack.c.l.b16 %v262
      %v654 = vunpack.c.l.b16 %v263
      %v655 = vunpack.c.l.b16 %v264
      %v656 = vunpack.c.l.b16 %v265
      %v657 = vunpack.c.l.b16 %v266
      %v658 = vunpack.c.l.b16 %v267
      %v659 = vunpack.c.l.b16 %v268
      %v660 = vunpack.c.l.b16 %v269
      %v661 = vunpack.c.l.b16 %v270
      %v662 = vunpack.c.l.b16 %v271
      %v663 = vunpack.c.l.b16 %v272
      %v664 = vunpack.c.l.b16 %v273
      %v665 = vpack.c.b16 %v634, %v633
      %v666 = vpack.c.b16 %v636, %v635
      %v667 = vpack.c.b16 %v638, %v637
      %v668 = vpack.c.b16 %v640, %v639
      %v669 = vpack.c.b16 %v642, %v641
      %v670 = vpack.c.b16 %v644, %v643
      %v671 = vpack.c.b16 %v646, %v645
      %v672 = vpack.c.b16 %v648, %v647
      %v673 = vpack.c.b16 %v650, %v649
      %v674 = vpack.c.b16 %v652, %v651
      %v675 = vpack.c.b16 %v654, %v653
      %v676 = vpack.c.b16 %v656, %v655
      %v677 = vpack.c.b16 %v658, %v657
      %v678 = vpack.c.b16 %v660, %v659
      %v679 = vpack.c.b16 %v662, %v661
      %v680 = vpack.c.b16 %v664, %v663
      %697 = vmatprep.subr.bf16.mxu0 0
      %698 = vmatpush1.bf16.msra.mxu0 %v665
      %699 = vmatprep.subr.bf16.mxu0 0
      %700 = vmatpush1.bf16.msra.mxu0 %v666
      %701 = vmatprep.subr.bf16.mxu0 0
      %702 = vmatpush1.bf16.msra.mxu0 %v667
      %703 = vmatprep.subr.bf16.mxu0 0
      %704 = vmatpush1.bf16.msra.mxu0 %v668
      %705 = vmatprep.subr.bf16.mxu0 0
      %706 = vmatpush1.bf16.msra.mxu0 %v669
      %707 = vmatprep.subr.bf16.mxu0 0
      %708 = vmatpush1.bf16.msra.mxu0 %v670
      %709 = vmatprep.subr.bf16.mxu0 0
      %710 = vmatpush1.bf16.msra.mxu0 %v671
      %711 = vmatprep.subr.bf16.mxu0 0
      %712 = vmatpush1.bf16.msra.mxu0 %v672
      %713 = vmatprep.subr.bf16.mxu0 0
      %714 = vmatpush1.bf16.msra.mxu0 %v673
      %715 = vmatprep.subr.bf16.mxu0 0
      %716 = vmatpush1.bf16.msra.mxu0 %v674
      %717 = vmatprep.subr.bf16.mxu0 0
      %718 = vmatpush1.bf16.msra.mxu0 %v675
      %719 = vmatprep.subr.bf16.mxu0 0
      %720 = vmatpush1.bf16.msra.mxu0 %v676
      %721 = vmatprep.subr.bf16.mxu0 0
      %722 = vmatpush1.bf16.msra.mxu0 %v677
      %723 = vmatprep.subr.bf16.mxu0 0
      %724 = vmatpush1.bf16.msra.mxu0 %v678
      %725 = vmatprep.subr.bf16.mxu0 0
      %726 = vmatpush1.bf16.msra.mxu0 %v679
      %727 = vmatprep.subr.bf16.mxu0 0
      %728 = vmatpush1.bf16.msra.mxu0 %v680
      %729 = vmatprep.mubr.bf16.mxu0 %v474
      %730 = vmatmul.mubr.bf16.gmra.mrb[0].mxu0 %v473
      %v731 = vpop.f32.mrb[0].mxu0
      %v732 = vadd.f32 %v279, %v731
      %v733 = vpop.f32.mrb[0].mxu0
      %v734 = vpop.f32.mrb[0].mxu0
      %v735 = vadd.f32 %v279, %v734
      %v736 = vpop.f32.mrb[0].mxu0
      %737 = vmatprep.mubr.bf16.mxu0 %v476
      %738 = vmatmul.mubr.bf16.gmra.mrb[0].mxu0 %v475
      %v739 = vpop.f32.mrb[0].mxu0
      %v740 = vadd.f32 %v279, %v739
      %v741 = vpop.f32.mrb[0].mxu0
      %v742 = vpop.f32.mrb[0].mxu0
      %v743 = vadd.f32 %v279, %v742
      %v744 = vpop.f32.mrb[0].mxu0
      %745 = vmatprep.mubr.bf16.mxu0 %v478
      %746 = vmatmul.mubr.bf16.gmra.mrb[0].mxu0 %v477
      %v747 = vpop.f32.mrb[0].mxu0
      %v748 = vadd.f32 %v279, %v747
      %v749 = vpop.f32.mrb[0].mxu0
      %v750 = vpop.f32.mrb[0].mxu0
      %v751 = vadd.f32 %v279, %v750
      %v752 = vpop.f32.mrb[0].mxu0
      %753 = vmatprep.mubr.bf16.mxu0 %v480
      %754 = vmatmul.mubr.bf16.gmra.mrb[0].mxu0 %v479
      %v755 = vpop.f32.mrb[0].mxu0
      %v756 = vadd.f32 %v279, %v755
      %v757 = vpop.f32.mrb[0].mxu0
      %v758 = vpop.f32.mrb[0].mxu0
      %v759 = vadd.f32 %v279, %v758
      %v760 = vpop.f32.mrb[0].mxu0
      %761 = vmatprep.mubr.bf16.mxu0 %v482
      %762 = vmatmul.mubr.bf16.gmra.mrb[0].mxu0 %v481
      %v763 = vpop.f32.mrb[0].mxu0
      %v764 = vadd.f32 %v279, %v763
      %v765 = vpop.f32.mrb[0].mxu0
      %v766 = vpop.f32.mrb[0].mxu0
      %v767 = vadd.f32 %v279, %v766
      %v768 = vpop.f32.mrb[0].mxu0
      %769 = vmatprep.mubr.bf16.mxu0 %v484
      %770 = vmatmul.mubr.bf16.gmra.mrb[0].mxu0 %v483
      %v771 = vpop.f32.mrb[0].mxu0
      %v772 = vadd.f32 %v279, %v771
      %v773 = vpop.f32.mrb[0].mxu0
      %v774 = vpop.f32.mrb[0].mxu0
      %v775 = vadd.f32 %v279, %v774
      %v776 = vpop.f32.mrb[0].mxu0
      %777 = vmatprep.mubr.bf16.mxu0 %v486
      %778 = vmatmul.mubr.bf16.gmra.mrb[0].mxu0 %v485
      %v779 = vpop.f32.mrb[0].mxu0
      %v780 = vadd.f32 %v279, %v779
      %v781 = vpop.f32.mrb[0].mxu0
      %v782 = vpop.f32.mrb[0].mxu0
      %v783 = vadd.f32 %v279, %v782
      %v784 = vpop.f32.mrb[0].mxu0
      %785 = vmatprep.mubr.bf16.mxu0 %v488
      %786 = vmatmul.mubr.bf16.gmra.mrb[0].mxu0 %v487
      %v787 = vpop.f32.mrb[0].mxu0
      %v788 = vadd.f32 %v279, %v787
      %v789 = vpop.f32.mrb[0].mxu0
      %v790 = vpop.f32.mrb[0].mxu0
      %v791 = vadd.f32 %v279, %v790
      %v792 = vpop.f32.mrb[0].mxu0
      %793 = vmatprep.mubr.bf16.mxu0 %v490
      %794 = vmatmul.mubr.bf16.gmra.mrb[0].mxu0 %v489
      %v795 = vpop.f32.mrb[0].mxu0
      %v796 = vadd.f32 %v279, %v795
      %v797 = vpop.f32.mrb[0].mxu0
      %v798 = vpop.f32.mrb[0].mxu0
      %v799 = vadd.f32 %v279, %v798
      %v800 = vpop.f32.mrb[0].mxu0
      %801 = vmatprep.mubr.bf16.mxu0 %v492
      %802 = vmatmul.mubr.bf16.gmra.mrb[0].mxu0 %v491
      %v803 = vpop.f32.mrb[0].mxu0
      %v804 = vadd.f32 %v279, %v803
      %v805 = vpop.f32.mrb[0].mxu0
      %v806 = vpop.f32.mrb[0].mxu0
      %v807 = vadd.f32 %v279, %v806
      %v808 = vpop.f32.mrb[0].mxu0
      %809 = vmatprep.mubr.bf16.mxu0 %v494
      %810 = vmatmul.mubr.bf16.gmra.mrb[0].mxu0 %v493
      %v811 = vpop.f32.mrb[0].mxu0
      %v812 = vadd.f32 %v279, %v811
      %v813 = vpop.f32.mrb[0].mxu0
      %v814 = vpop.f32.mrb[0].mxu0
      %v815 = vadd.f32 %v279, %v814
      %v816 = vpop.f32.mrb[0].mxu0
      %817 = vmatprep.mubr.bf16.mxu0 %v496
      %818 = vmatmul.mubr.bf16.gmra.mrb[0].mxu0 %v495
      %v819 = vpop.f32.mrb[0].mxu0
      %v820 = vadd.f32 %v279, %v819
      %v821 = vpop.f32.mrb[0].mxu0
      %v822 = vpop.f32.mrb[0].mxu0
      %v823 = vadd.f32 %v279, %v822
      %v824 = vpop.f32.mrb[0].mxu0
      %825 = vmatprep.mubr.bf16.mxu0 %v498
      %826 = vmatmul.mubr.bf16.gmra.mrb[0].mxu0 %v497
      %v827 = vpop.f32.mrb[0].mxu0
      %v828 = vadd.f32 %v279, %v827
      %v829 = vpop.f32.mrb[0].mxu0
      %v830 = vpop.f32.mrb[0].mxu0
      %v831 = vadd.f32 %v279, %v830
      %v832 = vpop.f32.mrb[0].mxu0
      %833 = vmatprep.mubr.bf16.mxu0 %v500
      %834 = vmatmul.mubr.bf16.gmra.mrb[0].mxu0 %v499
      %v835 = vpop.f32.mrb[0].mxu0
      %v836 = vadd.f32 %v279, %v835
      %v837 = vpop.f32.mrb[0].mxu0
      %v838 = vpop.f32.mrb[0].mxu0
      %v839 = vadd.f32 %v279, %v838
      %v840 = vpop.f32.mrb[0].mxu0
      %841 = vmatprep.mubr.bf16.mxu0 %v502
      %842 = vmatmul.mubr.bf16.gmra.mrb[0].mxu0 %v501
      %v843 = vpop.f32.mrb[0].mxu0
      %v844 = vadd.f32 %v279, %v843
      %v845 = vpop.f32.mrb[0].mxu0
      %v846 = vpop.f32.mrb[0].mxu0
      %v847 = vadd.f32 %v279, %v846
      %v848 = vpop.f32.mrb[0].mxu0
      %849 = vmatprep.mubr.bf16.mxu0 %v504
      %850 = vmatmul.mubr.bf16.gmra.mrb[0].mxu0 %v503
      %v851 = vpop.f32.mrb[0].mxu0
      %v852 = vadd.f32 %v279, %v851
      %v853 = vpop.f32.mrb[0].mxu0
      %v854 = vpop.f32.mrb[0].mxu0
      %v855 = vadd.f32 %v279, %v854
      %v856 = vpop.f32.mrb[0].mxu0
      %857 = vmatprep.mubr.bf16.mxu0 %v506
      %858 = vmatmul.mubr.bf16.gmra.mrb[0].mxu0 %v505
      %v859 = vpop.f32.mrb[0].mxu0
      %v860 = vadd.f32 %v279, %v859
      %v861 = vpop.f32.mrb[0].mxu0
      %v862 = vpop.f32.mrb[0].mxu0
      %v863 = vadd.f32 %v279, %v862
      %v864 = vpop.f32.mrb[0].mxu0
      %865 = vmatprep.mubr.bf16.mxu0 %v508
      %866 = vmatmul.mubr.bf16.gmra.mrb[0].mxu0 %v507
      %v867 = vpop.f32.mrb[0].mxu0
      %v868 = vadd.f32 %v279, %v867
      %v869 = vpop.f32.mrb[0].mxu0
      %v870 = vpop.f32.mrb[0].mxu0
      %v871 = vadd.f32 %v279, %v870
      %v872 = vpop.f32.mrb[0].mxu0
      %873 = vmatprep.mubr.bf16.mxu0 %v510
      %874 = vmatmul.mubr.bf16.gmra.mrb[0].mxu0 %v509
      %v875 = vpop.f32.mrb[0].mxu0
      %v876 = vadd.f32 %v279, %v875
      %v877 = vpop.f32.mrb[0].mxu0
      %v878 = vpop.f32.mrb[0].mxu0
      %v879 = vadd.f32 %v279, %v878
      %v880 = vpop.f32.mrb[0].mxu0
      %881 = vmatprep.mubr.bf16.mxu0 %v512
      %882 = vmatmul.mubr.bf16.gmra.mrb[0].mxu0 %v511
      %v883 = vpop.f32.mrb[0].mxu0
      %v884 = vadd.f32 %v279, %v883
      %v885 = vpop.f32.mrb[0].mxu0
      %v886 = vpop.f32.mrb[0].mxu0
      %v887 = vadd.f32 %v279, %v886
      %v888 = vpop.f32.mrb[0].mxu0
      %889 = vmatprep.mubr.bf16.mxu0 %v514
      %890 = vmatmul.mubr.bf16.gmra.mrb[0].mxu0 %v513
      %v891 = vpop.f32.mrb[0].mxu0
      %v892 = vadd.f32 %v279, %v891
      %v893 = vpop.f32.mrb[0].mxu0
      %v894 = vpop.f32.mrb[0].mxu0
      %v895 = vadd.f32 %v279, %v894
      %v896 = vpop.f32.mrb[0].mxu0
      %897 = vmatprep.mubr.bf16.mxu0 %v516
      %898 = vmatmul.mubr.bf16.gmra.mrb[0].mxu0 %v515
      %v899 = vpop.f32.mrb[0].mxu0
      %v900 = vadd.f32 %v279, %v899
      %v901 = vpop.f32.mrb[0].mxu0
      %v902 = vpop.f32.mrb[0].mxu0
      %v903 = vadd.f32 %v279, %v902
      %v904 = vpop.f32.mrb[0].mxu0
      %905 = vmatprep.mubr.bf16.mxu0 %v518
      %906 = vmatmul.mubr.bf16.gmra.mrb[0].mxu0 %v517
      %v907 = vpop.f32.mrb[0].mxu0
      %v908 = vadd.f32 %v279, %v907
      %v909 = vpop.f32.mrb[0].mxu0
      %v910 = vpop.f32.mrb[0].mxu0
      %v911 = vadd.f32 %v279, %v910
      %v912 = vpop.f32.mrb[0].mxu0
      %913 = vmatprep.mubr.bf16.mxu0 %v520
      %914 = vmatmul.mubr.bf16.gmra.mrb[0].mxu0 %v519
      %v915 = vpop.f32.mrb[0].mxu0
      %v916 = vadd.f32 %v279, %v915
      %v917 = vpop.f32.mrb[0].mxu0
      %v918 = vpop.f32.mrb[0].mxu0
      %v919 = vadd.f32 %v279, %v918
      %v920 = vpop.f32.mrb[0].mxu0
      %921 = vmatprep.mubr.bf16.mxu0 %v522
      %922 = vmatmul.mubr.bf16.gmra.mrb[0].mxu0 %v521
      %v923 = vpop.f32.mrb[0].mxu0
      %v924 = vadd.f32 %v279, %v923
      %v925 = vpop.f32.mrb[0].mxu0
      %v926 = vpop.f32.mrb[0].mxu0
      %v927 = vadd.f32 %v279, %v926
      %v928 = vpop.f32.mrb[0].mxu0
      %929 = vmatprep.mubr.bf16.mxu0 %v524
      %930 = vmatmul.mubr.bf16.gmra.mrb[0].mxu0 %v523
      %v931 = vpop.f32.mrb[0].mxu0
      %v932 = vadd.f32 %v279, %v931
      %v933 = vpop.f32.mrb[0].mxu0
      %v934 = vpop.f32.mrb[0].mxu0
      %v935 = vadd.f32 %v279, %v934
      %v936 = vpop.f32.mrb[0].mxu0
      %937 = vmatprep.mubr.bf16.mxu0 %v526
      %938 = vmatmul.mubr.bf16.gmra.mrb[0].mxu0 %v525
      %v939 = vpop.f32.mrb[0].mxu0
      %v940 = vadd.f32 %v279, %v939
      %v941 = vpop.f32.mrb[0].mxu0
      %v942 = vpop.f32.mrb[0].mxu0
      %v943 = vadd.f32 %v279, %v942
      %v944 = vpop.f32.mrb[0].mxu0
      %945 = vmatprep.mubr.bf16.mxu0 %v528
      %946 = vmatmul.mubr.bf16.gmra.mrb[0].mxu0 %v527
      %v947 = vpop.f32.mrb[0].mxu0
      %v948 = vadd.f32 %v279, %v947
      %v949 = vpop.f32.mrb[0].mxu0
      %v950 = vpop.f32.mrb[0].mxu0
      %v951 = vadd.f32 %v279, %v950
      %v952 = vpop.f32.mrb[0].mxu0
      %953 = vmatprep.mubr.bf16.mxu0 %v530
      %954 = vmatmul.mubr.bf16.gmra.mrb[0].mxu0 %v529
      %v955 = vpop.f32.mrb[0].mxu0
      %v956 = vadd.f32 %v279, %v955
      %v957 = vpop.f32.mrb[0].mxu0
      %v958 = vpop.f32.mrb[0].mxu0
      %v959 = vadd.f32 %v279, %v958
      %v960 = vpop.f32.mrb[0].mxu0
      %961 = vmatprep.mubr.bf16.mxu0 %v532
      %962 = vmatmul.mubr.bf16.gmra.mrb[0].mxu0 %v531
      %v963 = vpop.f32.mrb[0].mxu0
      %v964 = vadd.f32 %v279, %v963
      %v965 = vpop.f32.mrb[0].mxu0
      %v966 = vpop.f32.mrb[0].mxu0
      %v967 = vadd.f32 %v279, %v966
      %v968 = vpop.f32.mrb[0].mxu0
      %969 = vmatprep.mubr.bf16.mxu0 %v534
      %970 = vmatmul.mubr.bf16.gmra.mrb[0].mxu0 %v533
      %v971 = vpop.f32.mrb[0].mxu0
      %v972 = vadd.f32 %v279, %v971
      %v973 = vpop.f32.mrb[0].mxu0
      %v974 = vpop.f32.mrb[0].mxu0
      %v975 = vadd.f32 %v279, %v974
      %v976 = vpop.f32.mrb[0].mxu0
      %977 = vmatprep.mubr.bf16.mxu0 %v536
      %978 = vmatmul.mubr.bf16.gmra.mrb[0].mxu0 %v535
      %v979 = vpop.f32.mrb[0].mxu0
      %v980 = vadd.f32 %v279, %v979
      %v981 = vpop.f32.mrb[0].mxu0
      %v982 = vpop.f32.mrb[0].mxu0
      %v983 = vadd.f32 %v279, %v982
      %v984 = vpop.f32.mrb[0].mxu0
      %985 = vdwg.mxu0
      %v986 = vmax.f32 %v732, 0.0
      %v987 = vmax.f32 %v735, 0.0
      %v988 = vmax.f32 %v740, 0.0
      %v989 = vmax.f32 %v743, 0.0
      %v990 = vmax.f32 %v748, 0.0
      %v991 = vmax.f32 %v751, 0.0
      %v992 = vmax.f32 %v756, 0.0
      %v993 = vmax.f32 %v759, 0.0
      %v994 = vmax.f32 %v764, 0.0
      %v995 = vmax.f32 %v767, 0.0
      %v996 = vmax.f32 %v772, 0.0
      %v997 = vmax.f32 %v775, 0.0
      %v998 = vmax.f32 %v780, 0.0
      %v999 = vmax.f32 %v783, 0.0
      %v1000 = vmax.f32 %v788, 0.0
      %v1001 = vmax.f32 %v791, 0.0
      %v1002 = vmax.f32 %v796, 0.0
      %v1003 = vmax.f32 %v799, 0.0
      %v1004 = vmax.f32 %v804, 0.0
      %v1005 = vmax.f32 %v807, 0.0
      %v1006 = vmax.f32 %v812, 0.0
      %v1007 = vmax.f32 %v815, 0.0
      %v1008 = vmax.f32 %v820, 0.0
      %v1009 = vmax.f32 %v823, 0.0
      %v1010 = vmax.f32 %v828, 0.0
      %v1011 = vmax.f32 %v831, 0.0
      %v1012 = vmax.f32 %v836, 0.0
      %v1013 = vmax.f32 %v839, 0.0
      %v1014 = vmax.f32 %v844, 0.0
      %v1015 = vmax.f32 %v847, 0.0
      %v1016 = vmax.f32 %v852, 0.0
      %v1017 = vmax.f32 %v855, 0.0
      %v1018 = vmax.f32 %v860, 0.0
      %v1019 = vmax.f32 %v863, 0.0
      %v1020 = vmax.f32 %v868, 0.0
      %v1021 = vmax.f32 %v871, 0.0
      %v1022 = vmax.f32 %v876, 0.0
      %v1023 = vmax.f32 %v879, 0.0
      %v1024 = vmax.f32 %v884, 0.0
      %v1025 = vmax.f32 %v887, 0.0
      %v1026 = vmax.f32 %v892, 0.0
      %v1027 = vmax.f32 %v895, 0.0
      %v1028 = vmax.f32 %v900, 0.0
      %v1029 = vmax.f32 %v903, 0.0
      %v1030 = vmax.f32 %v908, 0.0
      %v1031 = vmax.f32 %v911, 0.0
      %v1032 = vmax.f32 %v916, 0.0
      %v1033 = vmax.f32 %v919, 0.0
      %v1034 = vmax.f32 %v924, 0.0
      %v1035 = vmax.f32 %v927, 0.0
      %v1036 = vmax.f32 %v932, 0.0
      %v1037 = vmax.f32 %v935, 0.0
      %v1038 = vmax.f32 %v940, 0.0
      %v1039 = vmax.f32 %v943, 0.0
      %v1040 = vmax.f32 %v948, 0.0
      %v1041 = vmax.f32 %v951, 0.0
      %v1042 = vmax.f32 %v956, 0.0
      %v1043 = vmax.f32 %v959, 0.0
      %v1044 = vmax.f32 %v964, 0.0
      %v1045 = vmax.f32 %v967, 0.0
      %v1046 = vmax.f32 %v972, 0.0
      %v1047 = vmax.f32 %v975, 0.0
      %v1048 = vmax.f32 %v980, 0.0
      %v1049 = vmax.f32 %v983, 0.0
      %v1050 = vpack.c.bf16 %v987, %v986
      %v1051 = vpack.c.bf16 %v989, %v988
      %v1052 = vpack.c.bf16 %v991, %v990
      %v1053 = vpack.c.bf16 %v993, %v992
      %v1054 = vpack.c.bf16 %v995, %v994
      %v1055 = vpack.c.bf16 %v997, %v996
      %v1056 = vpack.c.bf16 %v999, %v998
      %v1057 = vpack.c.bf16 %v1001, %v1000
      %v1058 = vpack.c.bf16 %v1003, %v1002
      %v1059 = vpack.c.bf16 %v1005, %v1004
      %v1060 = vpack.c.bf16 %v1007, %v1006
      %v1061 = vpack.c.bf16 %v1009, %v1008
      %v1062 = vpack.c.bf16 %v1011, %v1010
      %v1063 = vpack.c.bf16 %v1013, %v1012
      %v1064 = vpack.c.bf16 %v1015, %v1014
      %v1065 = vpack.c.bf16 %v1017, %v1016
      %v1066 = vpack.c.bf16 %v1019, %v1018
      %v1067 = vpack.c.bf16 %v1021, %v1020
      %v1068 = vpack.c.bf16 %v1023, %v1022
      %v1069 = vpack.c.bf16 %v1025, %v1024
      %v1070 = vpack.c.bf16 %v1027, %v1026
      %v1071 = vpack.c.bf16 %v1029, %v1028
      %v1072 = vpack.c.bf16 %v1031, %v1030
      %v1073 = vpack.c.bf16 %v1033, %v1032
      %v1074 = vpack.c.bf16 %v1035, %v1034
      %v1075 = vpack.c.bf16 %v1037, %v1036
      %v1076 = vpack.c.bf16 %v1039, %v1038
      %v1077 = vpack.c.bf16 %v1041, %v1040
      %v1078 = vpack.c.bf16 %v1043, %v1042
      %v1079 = vpack.c.bf16 %v1045, %v1044
      %v1080 = vpack.c.bf16 %v1047, %v1046
      %v1081 = vpack.c.bf16 %v1049, %v1048
      %v1114 = vunpack.c.l.b16 %v1050
      %v1115 = vunpack.c.h.b16 %v1050
      %v1116 = vunpack.c.l.b16 %v1051
      %v1117 = vunpack.c.h.b16 %v1051
      %v1118 = vunpack.c.l.b16 %v1052
      %v1119 = vunpack.c.h.b16 %v1052
      %v1120 = vunpack.c.l.b16 %v1053
      %v1121 = vunpack.c.h.b16 %v1053
      %v1122 = vunpack.c.l.b16 %v1054
      %v1123 = vunpack.c.h.b16 %v1054
      %v1124 = vunpack.c.l.b16 %v1055
      %v1125 = vunpack.c.h.b16 %v1055
      %v1126 = vunpack.c.l.b16 %v1056
      %v1127 = vunpack.c.h.b16 %v1056
      %v1128 = vunpack.c.l.b16 %v1057
      %v1129 = vunpack.c.h.b16 %v1057
      %v1130 = vunpack.c.l.b16 %v1058
      %v1131 = vunpack.c.h.b16 %v1058
      %v1132 = vunpack.c.l.b16 %v1059
      %v1133 = vunpack.c.h.b16 %v1059
      %v1134 = vunpack.c.l.b16 %v1060
      %v1135 = vunpack.c.h.b16 %v1060
      %v1136 = vunpack.c.l.b16 %v1061
      %v1137 = vunpack.c.h.b16 %v1061
      %v1138 = vunpack.c.l.b16 %v1062
      %v1139 = vunpack.c.h.b16 %v1062
      %v1140 = vunpack.c.l.b16 %v1063
      %v1141 = vunpack.c.h.b16 %v1063
      %v1142 = vunpack.c.l.b16 %v1064
      %v1143 = vunpack.c.h.b16 %v1064
      %v1144 = vunpack.c.l.b16 %v1065
      %v1145 = vunpack.c.h.b16 %v1065
      %v1146 = vunpack.c.l.b16 %v1066
      %v1147 = vunpack.c.h.b16 %v1066
      %v1148 = vunpack.c.l.b16 %v1067
      %v1149 = vunpack.c.h.b16 %v1067
      %v1150 = vunpack.c.l.b16 %v1068
      %v1151 = vunpack.c.h.b16 %v1068
      %v1152 = vunpack.c.l.b16 %v1069
      %v1153 = vunpack.c.h.b16 %v1069
      %v1154 = vunpack.c.l.b16 %v1070
      %v1155 = vunpack.c.h.b16 %v1070
      %v1156 = vunpack.c.l.b16 %v1071
      %v1157 = vunpack.c.h.b16 %v1071
      %v1158 = vunpack.c.l.b16 %v1072
      %v1159 = vunpack.c.h.b16 %v1072
      %v1160 = vunpack.c.l.b16 %v1073
      %v1161 = vunpack.c.h.b16 %v1073
      %v1162 = vunpack.c.l.b16 %v1074
      %v1163 = vunpack.c.h.b16 %v1074
      %v1164 = vunpack.c.l.b16 %v1075
      %v1165 = vunpack.c.h.b16 %v1075
      %v1166 = vunpack.c.l.b16 %v1076
      %v1167 = vunpack.c.h.b16 %v1076
      %v1168 = vunpack.c.l.b16 %v1077
      %v1169 = vunpack.c.h.b16 %v1077
      %v1170 = vunpack.c.l.b16 %v1078
      %v1171 = vunpack.c.h.b16 %v1078
      %v1172 = vunpack.c.l.b16 %v1079
      %v1173 = vunpack.c.h.b16 %v1079
      %v1174 = vunpack.c.l.b16 %v1080
      %v1175 = vunpack.c.h.b16 %v1080
      %v1176 = vunpack.c.l.b16 %v1081
      %v1177 = vunpack.c.h.b16 %v1081
      %v1178 = vpack.c.b16 %v1114, %v1114
      %v1179 = vpack.c.b16 %v1115, %v1115
      %v1180 = vpack.c.b16 %v1116, %v1116
      %v1181 = vpack.c.b16 %v1117, %v1117
      %v1182 = vpack.c.b16 %v1118, %v1118
      %v1183 = vpack.c.b16 %v1119, %v1119
      %v1184 = vpack.c.b16 %v1120, %v1120
      %v1185 = vpack.c.b16 %v1121, %v1121
      %v1186 = vpack.c.b16 %v1122, %v1122
      %v1187 = vpack.c.b16 %v1123, %v1123
      %v1188 = vpack.c.b16 %v1124, %v1124
      %v1189 = vpack.c.b16 %v1125, %v1125
      %v1190 = vpack.c.b16 %v1126, %v1126
      %v1191 = vpack.c.b16 %v1127, %v1127
      %v1192 = vpack.c.b16 %v1128, %v1128
      %v1193 = vpack.c.b16 %v1129, %v1129
      %v1194 = vpack.c.b16 %v1130, %v1130
      %v1195 = vpack.c.b16 %v1131, %v1131
      %v1196 = vpack.c.b16 %v1132, %v1132
      %v1197 = vpack.c.b16 %v1133, %v1133
      %v1198 = vpack.c.b16 %v1134, %v1134
      %v1199 = vpack.c.b16 %v1135, %v1135
      %v1200 = vpack.c.b16 %v1136, %v1136
      %v1201 = vpack.c.b16 %v1137, %v1137
      %v1202 = vpack.c.b16 %v1138, %v1138
      %v1203 = vpack.c.b16 %v1139, %v1139
      %v1204 = vpack.c.b16 %v1140, %v1140
      %v1205 = vpack.c.b16 %v1141, %v1141
      %v1206 = vpack.c.b16 %v1142, %v1142
      %v1207 = vpack.c.b16 %v1143, %v1143
      %v1208 = vpack.c.b16 %v1144, %v1144
      %v1209 = vpack.c.b16 %v1145, %v1145
      %v1210 = vpack.c.b16 %v1146, %v1146
      %v1211 = vpack.c.b16 %v1147, %v1147
      %v1212 = vpack.c.b16 %v1148, %v1148
      %v1213 = vpack.c.b16 %v1149, %v1149
      %v1214 = vpack.c.b16 %v1150, %v1150
      %v1215 = vpack.c.b16 %v1151, %v1151
      %v1216 = vpack.c.b16 %v1152, %v1152
      %v1217 = vpack.c.b16 %v1153, %v1153
      %v1218 = vpack.c.b16 %v1154, %v1154
      %v1219 = vpack.c.b16 %v1155, %v1155
      %v1220 = vpack.c.b16 %v1156, %v1156
      %v1221 = vpack.c.b16 %v1157, %v1157
      %v1222 = vpack.c.b16 %v1158, %v1158
      %v1223 = vpack.c.b16 %v1159, %v1159
      %v1224 = vpack.c.b16 %v1160, %v1160
      %v1225 = vpack.c.b16 %v1161, %v1161
      %v1226 = vpack.c.b16 %v1162, %v1162
      %v1227 = vpack.c.b16 %v1163, %v1163
      %v1228 = vpack.c.b16 %v1164, %v1164
      %v1229 = vpack.c.b16 %v1165, %v1165
      %v1230 = vpack.c.b16 %v1166, %v1166
      %v1231 = vpack.c.b16 %v1167, %v1167
      %v1232 = vpack.c.b16 %v1168, %v1168
      %v1233 = vpack.c.b16 %v1169, %v1169
      %v1234 = vpack.c.b16 %v1170, %v1170
      %v1235 = vpack.c.b16 %v1171, %v1171
      %v1236 = vpack.c.b16 %v1172, %v1172
      %v1237 = vpack.c.b16 %v1173, %v1173
      %v1238 = vpack.c.b16 %v1174, %v1174
      %v1239 = vpack.c.b16 %v1175, %v1175
      %v1240 = vpack.c.b16 %v1176, %v1176
      %v1241 = vpack.c.b16 %v1177, %v1177
      %vm1306 = vcmask 257024
      %1307 = vst.msk [vmem:[%s175] sm:$0xf] %vm1306, %v1178
      %1308 = vst.msk [vmem:[%s175 + $0x4] sm:$0xf] %vm1306, %v1179
      %1309 = vst.msk [vmem:[%s175 + $0x8] sm:$0xf] %vm1306, %v1180
      %1310 = vst.msk [vmem:[%s175 + $0xc] sm:$0xf] %vm1306, %v1181
      %1311 = vst.msk [vmem:[%s175 + $0x10] sm:$0xf] %vm1306, %v1182
      %1312 = vst.msk [vmem:[%s175 + $0x14] sm:$0xf] %vm1306, %v1183
      %1313 = vst.msk [vmem:[%s175 + $0x18] sm:$0xf] %vm1306, %v1184
      %1314 = vst.msk [vmem:[%s175 + $0x1c] sm:$0xf] %vm1306, %v1185
      %1315 = vst.msk [vmem:[%s175 + $0x20] sm:$0xf] %vm1306, %v1186
      %1316 = vst.msk [vmem:[%s175 + $0x24] sm:$0xf] %vm1306, %v1187
      %1317 = vst.msk [vmem:[%s175 + $0x28] sm:$0xf] %vm1306, %v1188
      %1318 = vst.msk [vmem:[%s175 + $0x2c] sm:$0xf] %vm1306, %v1189
      %1319 = vst.msk [vmem:[%s175 + $0x30] sm:$0xf] %vm1306, %v1190
      %1320 = vst.msk [vmem:[%s175 + $0x34] sm:$0xf] %vm1306, %v1191
      %1321 = vst.msk [vmem:[%s175 + $0x38] sm:$0xf] %vm1306, %v1192
      %1322 = vst.msk [vmem:[%s175 + $0x3c] sm:$0xf] %vm1306, %v1193
      %1323 = vst.msk [vmem:[%s175 + $0x40] sm:$0xf] %vm1306, %v1194
      %1324 = vst.msk [vmem:[%s175 + $0x44] sm:$0xf] %vm1306, %v1195
      %1325 = vst.msk [vmem:[%s175 + $0x48] sm:$0xf] %vm1306, %v1196
      %1326 = vst.msk [vmem:[%s175 + $0x4c] sm:$0xf] %vm1306, %v1197
      %1327 = vst.msk [vmem:[%s175 + $0x50] sm:$0xf] %vm1306, %v1198
      %1328 = vst.msk [vmem:[%s175 + $0x54] sm:$0xf] %vm1306, %v1199
      %1329 = vst.msk [vmem:[%s175 + $0x58] sm:$0xf] %vm1306, %v1200
      %1330 = vst.msk [vmem:[%s175 + $0x5c] sm:$0xf] %vm1306, %v1201
      %1331 = vst.msk [vmem:[%s175 + $0x60] sm:$0xf] %vm1306, %v1202
      %1332 = vst.msk [vmem:[%s175 + $0x64] sm:$0xf] %vm1306, %v1203
      %1333 = vst.msk [vmem:[%s175 + $0x68] sm:$0xf] %vm1306, %v1204
      %1334 = vst.msk [vmem:[%s175 + $0x6c] sm:$0xf] %vm1306, %v1205
      %1335 = vst.msk [vmem:[%s175 + $0x70] sm:$0xf] %vm1306, %v1206
      %1336 = vst.msk [vmem:[%s175 + $0x74] sm:$0xf] %vm1306, %v1207
      %1337 = vst.msk [vmem:[%s175 + $0x78] sm:$0xf] %vm1306, %v1208
      %1338 = vst.msk [vmem:[%s175 + $0x7c] sm:$0xf] %vm1306, %v1209
      %1339 = vst.msk [vmem:[%s175 + $0x80] sm:$0xf] %vm1306, %v1210
      %1340 = vst.msk [vmem:[%s175 + $0x84] sm:$0xf] %vm1306, %v1211
      %1341 = vst.msk [vmem:[%s175 + $0x88] sm:$0xf] %vm1306, %v1212
      %1342 = vst.msk [vmem:[%s175 + $0x8c] sm:$0xf] %vm1306, %v1213
      %1343 = vst.msk [vmem:[%s175 + $0x90] sm:$0xf] %vm1306, %v1214
      %1344 = vst.msk [vmem:[%s175 + $0x94] sm:$0xf] %vm1306, %v1215
      %1345 = vst.msk [vmem:[%s175 + $0x98] sm:$0xf] %vm1306, %v1216
      %1346 = vst.msk [vmem:[%s175 + $0x9c] sm:$0xf] %vm1306, %v1217
      %1347 = vst.msk [vmem:[%s175 + $0xa0] sm:$0xf] %vm1306, %v1218
      %1348 = vst.msk [vmem:[%s175 + $0xa4] sm:$0xf] %vm1306, %v1219
      %1349 = vst.msk [vmem:[%s175 + $0xa8] sm:$0xf] %vm1306, %v1220
      %1350 = vst.msk [vmem:[%s175 + $0xac] sm:$0xf] %vm1306, %v1221
      %1351 = vst.msk [vmem:[%s175 + $0xb0] sm:$0xf] %vm1306, %v1222
      %1352 = vst.msk [vmem:[%s175 + $0xb4] sm:$0xf] %vm1306, %v1223
      %1353 = vst.msk [vmem:[%s175 + $0xb8] sm:$0xf] %vm1306, %v1224
      %1354 = vst.msk [vmem:[%s175 + $0xbc] sm:$0xf] %vm1306, %v1225
      %1355 = vst.msk [vmem:[%s175 + $0xc0] sm:$0xf] %vm1306, %v1226
      %1356 = vst.msk [vmem:[%s175 + $0xc4] sm:$0xf] %vm1306, %v1227
      %1357 = vst.msk [vmem:[%s175 + $0xc8] sm:$0xf] %vm1306, %v1228
      %1358 = vst.msk [vmem:[%s175 + $0xcc] sm:$0xf] %vm1306, %v1229
      %1359 = vst.msk [vmem:[%s175 + $0xd0] sm:$0xf] %vm1306, %v1230
      %1360 = vst.msk [vmem:[%s175 + $0xd4] sm:$0xf] %vm1306, %v1231
      %1361 = vst.msk [vmem:[%s175 + $0xd8] sm:$0xf] %vm1306, %v1232
      %1362 = vst.msk [vmem:[%s175 + $0xdc] sm:$0xf] %vm1306, %v1233
      %1363 = vst.msk [vmem:[%s175 + $0xe0] sm:$0xf] %vm1306, %v1234
      %1364 = vst.msk [vmem:[%s175 + $0xe4] sm:$0xf] %vm1306, %v1235
      %1365 = vst.msk [vmem:[%s175 + $0xe8] sm:$0xf] %vm1306, %v1236
      %1366 = vst.msk [vmem:[%s175 + $0xec] sm:$0xf] %vm1306, %v1237
      %1367 = vst.msk [vmem:[%s175 + $0xf0] sm:$0xf] %vm1306, %v1238
      %1368 = vst.msk [vmem:[%s175 + $0xf4] sm:$0xf] %vm1306, %v1239
      %1369 = vst.msk [vmem:[%s175 + $0xf8] sm:$0xf] %vm1306, %v1240
      %1370 = vst.msk [vmem:[%s175 + $0xfc] sm:$0xf] %vm1306, %v1241
      %s1371 = smul.u32 64, %s14
      %p1372 = scmp.lt.s32.totalorder %s1371, 127
      %s1373 = scalar_select %p1372, %s1371, 127
      %s1374 = smul.addr %s1373, 4
      %s1375 = scalar_lea.vmem %s3, %s1374
      // Predicated region
      $region33: #{cnn_policy_forward.4} parent=31 // pred_check
        %p1376 = pneg %p100
      $region34: #{cnn_policy_forward.4} parent=31 // pred_check_branch
        %1378 = sbr.rel (%p1376) target = $region36
      $region35: #{cnn_policy_forward.4} parent=31 // pred_region
        %s1379 = smul.u32 64, %s14
      $region36: #{cnn_policy_forward.4} parent=31 // pred_fallthru
        _
    $region32: #{cnn_policy_forward.4} parent=5 // pred_fallthru
      _
    %p1380 = scmp.le.s32.totalorder 2, %s9
    // Predicated region
    $region37: #{cnn_policy_forward.4} parent=5 // pred_check
      %p1381 = pneg %p1380
    $region38: #{cnn_policy_forward.4} parent=5 // pred_check_branch
      %1383 = sbr.rel (%p1381) target = $region40
    $region39: #{cnn_policy_forward.4} parent=5 // pred_region
      %s1384 = ssub.s32 %s9, 2
      // Predicated region
      $region41: #{cnn_policy_forward.4} parent=39 // pred_check
        %p1385 = pneg %p106
      $region42: #{cnn_policy_forward.4} parent=39 // pred_check_branch
        %1387 = sbr.rel (%p1385) target = $region44
      $region43: #{cnn_policy_forward.4} parent=39 // pred_region
        %s1388 = smul.u32 64, %s15
        %p1389 = scmp.lt.s32.totalorder %s1388, 127
        %s1390 = scalar_select %p1389, %s1388, 127
        %s1391 = smul.addr %s1390, 4
        %s1392 = scalar_lea.vmem %s3, %s1391
      $region44: #{cnn_policy_forward.4} parent=39 // pred_fallthru
        _
    $region40: #{cnn_policy_forward.4} parent=5 // pred_fallthru
      _
  $region6: #{cnn_policy_forward.4} parent=0 // loop_footer
    %s13 = sadd.s32 1, %s9
  $region7: #{cnn_policy_forward.4} parent=0 // loop_footer_branch
    %8 = sbr.rel target = $region3
  $region8: #{cnn_policy_forward.4} parent=0 // loop_exit
    _

// kernel: cnn_policy_forward.5
$region0: #{cnn_policy_forward.5}
  #allocation0 [shape = 'u32[]', space=smem, size = 0x4, offset = 0x4, fixed_abs, tag = 'smem constant byte address 0x4 - core index']
  #allocation1 [shape = 'u32[144,128]{1,0:T(1,128)}', space=vmem, size = 0x12000, scoped, tag = 'internal scratch']
  %s0 = inlined_call_operand.vmem [shape: bf16[176,512], index: 0, kind: input, shape index: {}]
  %s1 = inlined_call_operand.vmem [shape: bf16[512,64], index: 1, kind: input, shape index: {}]
  %s2 = inlined_call_operand.vmem [shape: f32[1,64], index: 2, kind: input, shape index: {}]
  %s3 = inlined_call_operand.vmem [shape: bf16[176,64], index: 3, kind: output, shape index: {}]
  %s4 = sld [smem:[#allocation0]]
  $region22: #{cnn_policy_forward.5} parent=0
    _
  %s6 = ssub.s32 1, %s4
  %s7 = scalar_select 0, %s6, %s4
  // Predicated region
  $region2: #{cnn_policy_forward.5} parent=0 // pred_check
    _
  $region3: #{cnn_policy_forward.5} parent=0 // pred_check_branch
    %9 = sbr.rel (0) target = $region5
  $region4: #{cnn_policy_forward.5} parent=0 // pred_region
    _
  $region5: #{cnn_policy_forward.5} parent=0 // pred_fallthru
    _
  // Predicated region
  $region6: #{cnn_policy_forward.5} parent=0 // pred_check
    _
  $region7: #{cnn_policy_forward.5} parent=0 // pred_check_branch
    %11 = sbr.rel (0) target = $region9
  $region8: #{cnn_policy_forward.5} parent=0 // pred_region
    _
  $region9: #{cnn_policy_forward.5} parent=0 // pred_fallthru
    _
  // Predicated region
  $region10: #{cnn_policy_forward.5} parent=0 // pred_check
    _
  $region11: #{cnn_policy_forward.5} parent=0 // pred_check_branch
    %13 = sbr.rel (0) target = $region13
  $region12: #{cnn_policy_forward.5} parent=0 // pred_region
    _
  $region13: #{cnn_policy_forward.5} parent=0 // pred_fallthru
    _
  %v15 = vld [vmem:[%s0] sm:$0xff]
  %v16 = vld [vmem:[%s0 + $0x8] sm:$0xff]
  %v17 = vld [vmem:[%s0 + $0x10] sm:$0xff]
  %v18 = vld [vmem:[%s0 + $0x18] sm:$0xff]
  %v19 = vld [vmem:[%s0 + $0x20] sm:$0xff]
  %v20 = vld [vmem:[%s0 + $0x28] sm:$0xff]
  %v21 = vld [vmem:[%s0 + $0x30] sm:$0xff]
  %v22 = vld [vmem:[%s0 + $0x38] sm:$0xff]
  %v23 = vld [vmem:[%s0 + $0x40] sm:$0xff]
  %v24 = vld [vmem:[%s0 + $0x48] sm:$0xff]
  %v25 = vld [vmem:[%s0 + $0x50] sm:$0xff]
  %v26 = vld [vmem:[%s0 + $0x58] sm:$0xff]
  %v27 = vld [vmem:[%s0 + $0x60] sm:$0xff]
  %v28 = vld [vmem:[%s0 + $0x68] sm:$0xff]
  %v29 = vld [vmem:[%s0 + $0x70] sm:$0xff]
  %v30 = vld [vmem:[%s0 + $0x78] sm:$0xff]
  %v31 = vld [vmem:[%s0 + $0x80] sm:$0xff]
  %v32 = vld [vmem:[%s0 + $0x88] sm:$0xff]
  %v33 = vld [vmem:[%s0 + $0x90] sm:$0xff]
  %v34 = vld [vmem:[%s0 + $0x98] sm:$0xff]
  %v35 = vld [vmem:[%s0 + $0xa0] sm:$0xff]
  %v36 = vld [vmem:[%s0 + $0xa8] sm:$0xff]
  %v37 = vld [vmem:[%s0 + $0xb0] sm:$0xff]
  %v38 = vld [vmem:[%s0 + $0xb8] sm:$0xff]
  %v39 = vld [vmem:[%s0 + $0xc0] sm:$0xff]
  %v40 = vld [vmem:[%s0 + $0xc8] sm:$0xff]
  %v41 = vld [vmem:[%s0 + $0xd0] sm:$0xff]
  %v42 = vld [vmem:[%s0 + $0xd8] sm:$0xff]
  %v43 = vld [vmem:[%s0 + $0xe0] sm:$0xff]
  %v44 = vld [vmem:[%s0 + $0xe8] sm:$0xff]
  %v45 = vld [vmem:[%s0 + $0xf0] sm:$0xff]
  %v46 = vld [vmem:[%s0 + $0xf8] sm:$0xff]
  %v47 = vld [vmem:[%s0 + $0x100] sm:$0xff]
  %v48 = vld [vmem:[%s0 + $0x108] sm:$0xff]
  %v49 = vld [vmem:[%s0 + $0x110] sm:$0xff]
  %v50 = vld [vmem:[%s0 + $0x118] sm:$0xff]
  %v51 = vld [vmem:[%s0 + $0x120] sm:$0xff]
  %v52 = vld [vmem:[%s0 + $0x128] sm:$0xff]
  %v53 = vld [vmem:[%s0 + $0x130] sm:$0xff]
  %v54 = vld [vmem:[%s0 + $0x138] sm:$0xff]
  %v55 = vld [vmem:[%s0 + $0x140] sm:$0xff]
  %v56 = vld [vmem:[%s0 + $0x148] sm:$0xff]
  %v57 = vld [vmem:[%s0 + $0x150] sm:$0xff]
  %v58 = vld [vmem:[%s0 + $0x158] sm:$0xff]
  %v59 = vld [vmem:[%s1] sm:$0xf]
  %v60 = vld [vmem:[%s1 + $0x4] sm:$0xf]
  %v61 = vld [vmem:[%s1 + $0x8] sm:$0xf]
  %v62 = vld [vmem:[%s1 + $0xc] sm:$0xf]
  %v63 = vld [vmem:[%s1 + $0x10] sm:$0xf]
  %v64 = vld [vmem:[%s1 + $0x14] sm:$0xf]
  %v65 = vld [vmem:[%s1 + $0x18] sm:$0xf]
  %v66 = vld [vmem:[%s1 + $0x1c] sm:$0xf]
  %v67 = vld [vmem:[%s1 + $0x20] sm:$0xf]
  %v68 = vld [vmem:[%s1 + $0x24] sm:$0xf]
  %v69 = vld [vmem:[%s1 + $0x28] sm:$0xf]
  %v70 = vld [vmem:[%s1 + $0x2c] sm:$0xf]
  %v71 = vld [vmem:[%s1 + $0x30] sm:$0xf]
  %v72 = vld [vmem:[%s1 + $0x34] sm:$0xf]
  %v73 = vld [vmem:[%s1 + $0x38] sm:$0xf]
  %v74 = vld [vmem:[%s1 + $0x3c] sm:$0xf]
  %v75 = vld [vmem:[%s1 + $0x40] sm:$0xf]
  %v76 = vld [vmem:[%s1 + $0x44] sm:$0xf]
  %v77 = vld [vmem:[%s1 + $0x48] sm:$0xf]
  %v78 = vld [vmem:[%s1 + $0x4c] sm:$0xf]
  %v79 = vld [vmem:[%s1 + $0x50] sm:$0xf]
  %v80 = vld [vmem:[%s1 + $0x54] sm:$0xf]
  %v81 = vld [vmem:[%s1 + $0x58] sm:$0xf]
  %v82 = vld [vmem:[%s1 + $0x5c] sm:$0xf]
  %v83 = vld [vmem:[%s1 + $0x60] sm:$0xf]
  %v84 = vld [vmem:[%s1 + $0x64] sm:$0xf]
  %v85 = vld [vmem:[%s1 + $0x68] sm:$0xf]
  %v86 = vld [vmem:[%s1 + $0x6c] sm:$0xf]
  %v87 = vld [vmem:[%s1 + $0x70] sm:$0xf]
  %v88 = vld [vmem:[%s1 + $0x74] sm:$0xf]
  %v89 = vld [vmem:[%s1 + $0x78] sm:$0xf]
  %v90 = vld [vmem:[%s1 + $0x7c] sm:$0xf]
  %v91 = vld [vmem:[%s1 + $0x80] sm:$0xf]
  %v92 = vld [vmem:[%s1 + $0x84] sm:$0xf]
  %v93 = vld [vmem:[%s1 + $0x88] sm:$0xf]
  %v94 = vld [vmem:[%s1 + $0x8c] sm:$0xf]
  %v95 = vld [vmem:[%s1 + $0x90] sm:$0xf]
  %v96 = vld [vmem:[%s1 + $0x94] sm:$0xf]
  %v97 = vld [vmem:[%s1 + $0x98] sm:$0xf]
  %v98 = vld [vmem:[%s1 + $0x9c] sm:$0xf]
  %v99 = vld [vmem:[%s1 + $0xa0] sm:$0xf]
  %v100 = vld [vmem:[%s1 + $0xa4] sm:$0xf]
  %v101 = vld [vmem:[%s1 + $0xa8] sm:$0xf]
  %v102 = vld [vmem:[%s1 + $0xac] sm:$0xf]
  %v103 = vld [vmem:[%s1 + $0xb0] sm:$0xf]
  %v104 = vld [vmem:[%s1 + $0xb4] sm:$0xf]
  %v105 = vld [vmem:[%s1 + $0xb8] sm:$0xf]
  %v106 = vld [vmem:[%s1 + $0xbc] sm:$0xf]
  %v107 = vld [vmem:[%s1 + $0xc0] sm:$0xf]
  %v108 = vld [vmem:[%s1 + $0xc4] sm:$0xf]
  %v109 = vld [vmem:[%s1 + $0xc8] sm:$0xf]
  %v110 = vld [vmem:[%s1 + $0xcc] sm:$0xf]
  %v111 = vld [vmem:[%s1 + $0xd0] sm:$0xf]
  %v112 = vld [vmem:[%s1 + $0xd4] sm:$0xf]
  %v113 = vld [vmem:[%s1 + $0xd8] sm:$0xf]
  %v114 = vld [vmem:[%s1 + $0xdc] sm:$0xf]
  %v115 = vld [vmem:[%s1 + $0xe0] sm:$0xf]
  %v116 = vld [vmem:[%s1 + $0xe4] sm:$0xf]
  %v117 = vld [vmem:[%s1 + $0xe8] sm:$0xf]
  %v118 = vld [vmem:[%s1 + $0xec] sm:$0xf]
  %v119 = vld [vmem:[%s1 + $0xf0] sm:$0xf]
  %v120 = vld [vmem:[%s1 + $0xf4] sm:$0xf]
  %v121 = vld [vmem:[%s1 + $0xf8] sm:$0xf]
  %v122 = vld [vmem:[%s1 + $0xfc] sm:$0xf]
  %v123 = vld [vmem:[%s2] sm:$0x1]
  %v125 = vlaneseq
  %v126 = vshrl.u32 %v125, 7
  %v127 = vsub.s32 0, %v126
  %v128 = vrot.slane %v123, %v127
  %v174 = vunpack.c.l.b16 %v15
  %v175 = vunpack.c.h.b16 %v15
  %v176 = vunpack.c.l.b16 %v16
  %v177 = vunpack.c.h.b16 %v16
  %v178 = vunpack.c.l.b16 %v17
  %v179 = vunpack.c.h.b16 %v17
  %v180 = vunpack.c.l.b16 %v18
  %v181 = vunpack.c.h.b16 %v18
  %v182 = vunpack.c.l.b16 %v19
  %v183 = vunpack.c.h.b16 %v19
  %v184 = vunpack.c.l.b16 %v20
  %v185 = vunpack.c.h.b16 %v20
  %v186 = vunpack.c.l.b16 %v21
  %v187 = vunpack.c.h.b16 %v21
  %v188 = vunpack.c.l.b16 %v22
  %v189 = vunpack.c.h.b16 %v22
  %v190 = vunpack.c.l.b16 %v23
  %v191 = vunpack.c.h.b16 %v23
  %v192 = vunpack.c.l.b16 %v24
  %v193 = vunpack.c.h.b16 %v24
  %v194 = vunpack.c.l.b16 %v25
  %v195 = vunpack.c.h.b16 %v25
  %v196 = vunpack.c.l.b16 %v26
  %v197 = vunpack.c.h.b16 %v26
  %v198 = vunpack.c.l.b16 %v27
  %v199 = vunpack.c.h.b16 %v27
  %v200 = vunpack.c.l.b16 %v28
  %v201 = vunpack.c.h.b16 %v28
  %v202 = vunpack.c.l.b16 %v29
  %v203 = vunpack.c.h.b16 %v29
  %v204 = vunpack.c.l.b16 %v30
  %v205 = vunpack.c.h.b16 %v30
  %v206 = vunpack.c.l.b16 %v31
  %v207 = vunpack.c.h.b16 %v31
  %v208 = vunpack.c.l.b16 %v32
  %v209 = vunpack.c.h.b16 %v32
  %v210 = vunpack.c.l.b16 %v33
  %v211 = vunpack.c.h.b16 %v33
  %v212 = vunpack.c.l.b16 %v34
  %v213 = vunpack.c.h.b16 %v34
  %v214 = vunpack.c.l.b16 %v35
  %v215 = vunpack.c.h.b16 %v35
  %v216 = vunpack.c.l.b16 %v36
  %v217 = vunpack.c.h.b16 %v36
  %v218 = vunpack.c.l.b16 %v37
  %v219 = vunpack.c.h.b16 %v37
  %v220 = vunpack.c.l.b16 %v38
  %v221 = vunpack.c.h.b16 %v38
  %v222 = vunpack.c.l.b16 %v39
  %v223 = vunpack.c.h.b16 %v39
  %v224 = vunpack.c.l.b16 %v40
  %v225 = vunpack.c.h.b16 %v40
  %v226 = vunpack.c.l.b16 %v41
  %v227 = vunpack.c.h.b16 %v41
  %v228 = vunpack.c.l.b16 %v42
  %v229 = vunpack.c.h.b16 %v42
  %v230 = vunpack.c.l.b16 %v43
  %v231 = vunpack.c.h.b16 %v43
  %v232 = vunpack.c.l.b16 %v44
  %v233 = vunpack.c.h.b16 %v44
  %v234 = vunpack.c.l.b16 %v45
  %v235 = vunpack.c.h.b16 %v45
  %v236 = vunpack.c.l.b16 %v46
  %v237 = vunpack.c.h.b16 %v46
  %v238 = vunpack.c.l.b16 %v47
  %v239 = vunpack.c.h.b16 %v47
  %v240 = vunpack.c.l.b16 %v48
  %v241 = vunpack.c.h.b16 %v48
  %v242 = vunpack.c.l.b16 %v49
  %v243 = vunpack.c.h.b16 %v49
  %v244 = vunpack.c.l.b16 %v50
  %v245 = vunpack.c.h.b16 %v50
  %v246 = vunpack.c.l.b16 %v51
  %v247 = vunpack.c.h.b16 %v51
  %v248 = vunpack.c.l.b16 %v52
  %v249 = vunpack.c.h.b16 %v52
  %v250 = vunpack.c.l.b16 %v53
  %v251 = vunpack.c.h.b16 %v53
  %v252 = vunpack.c.l.b16 %v54
  %v253 = vunpack.c.h.b16 %v54
  %v254 = vunpack.c.l.b16 %v55
  %v255 = vunpack.c.h.b16 %v55
  %v256 = vunpack.c.l.b16 %v56
  %v257 = vunpack.c.h.b16 %v56
  %v258 = vunpack.c.l.b16 %v57
  %v259 = vunpack.c.h.b16 %v57
  %v260 = vunpack.c.l.b16 %v58
  %v261 = vunpack.c.h.b16 %v58
  %v262 = vpack.c.b16 %v178, %v174
  %v263 = vpack.c.b16 %v179, %v175
  %v264 = vpack.c.b16 %v180, %v176
  %v265 = vpack.c.b16 %v181, %v177
  %v266 = vpack.c.b16 %v186, %v182
  %v267 = vpack.c.b16 %v187, %v183
  %v268 = vpack.c.b16 %v188, %v184
  %v269 = vpack.c.b16 %v189, %v185
  %v270 = vpack.c.b16 %v194, %v190
  %v271 = vpack.c.b16 %v195, %v191
  %v272 = vpack.c.b16 %v196, %v192
  %v273 = vpack.c.b16 %v197, %v193
  %v274 = vpack.c.b16 %v202, %v198
  %v275 = vpack.c.b16 %v203, %v199
  %v276 = vpack.c.b16 %v204, %v200
  %v277 = vpack.c.b16 %v205, %v201
  %v278 = vpack.c.b16 %v210, %v206
  %v279 = vpack.c.b16 %v211, %v207
  %v280 = vpack.c.b16 %v212, %v208
  %v281 = vpack.c.b16 %v213, %v209
  %v282 = vpack.c.b16 %v218, %v214
  %v283 = vpack.c.b16 %v219, %v215
  %v284 = vpack.c.b16 %v220, %v216
  %v285 = vpack.c.b16 %v221, %v217
  %v286 = vpack.c.b16 %v226, %v222
  %v287 = vpack.c.b16 %v227, %v223
  %v288 = vpack.c.b16 %v228, %v224
  %v289 = vpack.c.b16 %v229, %v225
  %v290 = vpack.c.b16 %v234, %v230
  %v291 = vpack.c.b16 %v235, %v231
  %v292 = vpack.c.b16 %v236, %v232
  %v293 = vpack.c.b16 %v237, %v233
  %v294 = vpack.c.b16 %v242, %v238
  %v295 = vpack.c.b16 %v243, %v239
  %v296 = vpack.c.b16 %v244, %v240
  %v297 = vpack.c.b16 %v245, %v241
  %v298 = vpack.c.b16 %v250, %v246
  %v299 = vpack.c.b16 %v251, %v247
  %v300 = vpack.c.b16 %v252, %v248
  %v301 = vpack.c.b16 %v253, %v249
  %v302 = vpack.c.b16 %v258, %v254
  %v303 = vpack.c.b16 %v259, %v255
  %v304 = vpack.c.b16 %v260, %v256
  %v305 = vpack.c.b16 %v261, %v257
  %v414 = vunpack.c.l.b16 %v59
  %v415 = vunpack.c.l.b16 %v60
  %v416 = vunpack.c.l.b16 %v61
  %v417 = vunpack.c.l.b16 %v62
  %v418 = vunpack.c.l.b16 %v63
  %v419 = vunpack.c.l.b16 %v64
  %v420 = vunpack.c.l.b16 %v65
  %v421 = vunpack.c.l.b16 %v66
  %v422 = vunpack.c.l.b16 %v67
  %v423 = vunpack.c.l.b16 %v68
  %v424 = vunpack.c.l.b16 %v69
  %v425 = vunpack.c.l.b16 %v70
  %v426 = vunpack.c.l.b16 %v71
  %v427 = vunpack.c.l.b16 %v72
  %v428 = vunpack.c.l.b16 %v73
  %v429 = vunpack.c.l.b16 %v74
  %v430 = vunpack.c.l.b16 %v75
  %v431 = vunpack.c.l.b16 %v76
  %v432 = vunpack.c.l.b16 %v77
  %v433 = vunpack.c.l.b16 %v78
  %v434 = vunpack.c.l.b16 %v79
  %v435 = vunpack.c.l.b16 %v80
  %v436 = vunpack.c.l.b16 %v81
  %v437 = vunpack.c.l.b16 %v82
  %v438 = vunpack.c.l.b16 %v83
  %v439 = vunpack.c.l.b16 %v84
  %v440 = vunpack.c.l.b16 %v85
  %v441 = vunpack.c.l.b16 %v86
  %v442 = vunpack.c.l.b16 %v87
  %v443 = vunpack.c.l.b16 %v88
  %v444 = vunpack.c.l.b16 %v89
  %v445 = vunpack.c.l.b16 %v90
  %v446 = vunpack.c.l.b16 %v91
  %v447 = vunpack.c.l.b16 %v92
  %v448 = vunpack.c.l.b16 %v93
  %v449 = vunpack.c.l.b16 %v94
  %v450 = vunpack.c.l.b16 %v95
  %v451 = vunpack.c.l.b16 %v96
  %v452 = vunpack.c.l.b16 %v97
  %v453 = vunpack.c.l.b16 %v98
  %v454 = vunpack.c.l.b16 %v99
  %v455 = vunpack.c.l.b16 %v100
  %v456 = vunpack.c.l.b16 %v101
  %v457 = vunpack.c.l.b16 %v102
  %v458 = vunpack.c.l.b16 %v103
  %v459 = vunpack.c.l.b16 %v104
  %v460 = vunpack.c.l.b16 %v105
  %v461 = vunpack.c.l.b16 %v106
  %v462 = vunpack.c.l.b16 %v107
  %v463 = vunpack.c.l.b16 %v108
  %v464 = vunpack.c.l.b16 %v109
  %v465 = vunpack.c.l.b16 %v110
  %v466 = vunpack.c.l.b16 %v111
  %v467 = vunpack.c.l.b16 %v112
  %v468 = vunpack.c.l.b16 %v113
  %v469 = vunpack.c.l.b16 %v114
  %v470 = vunpack.c.l.b16 %v115
  %v471 = vunpack.c.l.b16 %v116
  %v472 = vunpack.c.l.b16 %v117
  %v473 = vunpack.c.l.b16 %v118
  %v474 = vunpack.c.l.b16 %v119
  %v475 = vunpack.c.l.b16 %v120
  %v476 = vunpack.c.l.b16 %v121
  %v477 = vunpack.c.l.b16 %v122
  %v478 = vpack.c.b16 %v415, %v414
  %v479 = vpack.c.b16 %v417, %v416
  %v480 = vpack.c.b16 %v419, %v418
  %v481 = vpack.c.b16 %v421, %v420
  %v482 = vpack.c.b16 %v423, %v422
  %v483 = vpack.c.b16 %v425, %v424
  %v484 = vpack.c.b16 %v427, %v426
  %v485 = vpack.c.b16 %v429, %v428
  %v486 = vpack.c.b16 %v431, %v430
  %v487 = vpack.c.b16 %v433, %v432
  %v488 = vpack.c.b16 %v435, %v434
  %v489 = vpack.c.b16 %v437, %v436
  %v490 = vpack.c.b16 %v439, %v438
  %v491 = vpack.c.b16 %v441, %v440
  %v492 = vpack.c.b16 %v443, %v442
  %v493 = vpack.c.b16 %v445, %v444
  %v494 = vpack.c.b16 %v447, %v446
  %v495 = vpack.c.b16 %v449, %v448
  %v496 = vpack.c.b16 %v451, %v450
  %v497 = vpack.c.b16 %v453, %v452
  %v498 = vpack.c.b16 %v455, %v454
  %v499 = vpack.c.b16 %v457, %v456
  %v500 = vpack.c.b16 %v459, %v458
  %v501 = vpack.c.b16 %v461, %v460
  %v502 = vpack.c.b16 %v463, %v462
  %v503 = vpack.c.b16 %v465, %v464
  %v504 = vpack.c.b16 %v467, %v466
  %v505 = vpack.c.b16 %v469, %v468
  %v506 = vpack.c.b16 %v471, %v470
  %v507 = vpack.c.b16 %v473, %v472
  %v508 = vpack.c.b16 %v475, %v474
  %v509 = vpack.c.b16 %v477, %v476
  %542 = vmatprep.subr.bf16.mxu0 0
  %543 = vmatpush1.bf16.msra.mxu0 %v478
  %544 = vmatprep.subr.bf16.mxu0 0
  %545 = vmatpush1.bf16.msra.mxu0 %v479
  %546 = vmatprep.subr.bf16.mxu0 0
  %547 = vmatpush1.bf16.msra.mxu0 %v480
  %548 = vmatprep.subr.bf16.mxu0 0
  %549 = vmatpush1.bf16.msra.mxu0 %v481
  %550 = vmatprep.subr.bf16.mxu0 0
  %551 = vmatpush1.bf16.msra.mxu0 %v482
  %552 = vmatprep.subr.bf16.mxu0 0
  %553 = vmatpush1.bf16.msra.mxu0 %v483
  %554 = vmatprep.subr.bf16.mxu0 0
  %555 = vmatpush1.bf16.msra.mxu0 %v484
  %556 = vmatprep.subr.bf16.mxu0 0
  %557 = vmatpush1.bf16.msra.mxu0 %v485
  %558 = vmatprep.subr.bf16.mxu0 0
  %559 = vmatpush1.bf16.msra.mxu0 %v486
  %560 = vmatprep.subr.bf16.mxu0 0
  %561 = vmatpush1.bf16.msra.mxu0 %v487
  %562 = vmatprep.subr.bf16.mxu0 0
  %563 = vmatpush1.bf16.msra.mxu0 %v488
  %564 = vmatprep.subr.bf16.mxu0 0
  %565 = vmatpush1.bf16.msra.mxu0 %v489
  %566 = vmatprep.subr.bf16.mxu0 0
  %567 = vmatpush1.bf16.msra.mxu0 %v490
  %568 = vmatprep.subr.bf16.mxu0 0
  %569 = vmatpush1.bf16.msra.mxu0 %v491
  %570 = vmatprep.subr.bf16.mxu0 0
  %571 = vmatpush1.bf16.msra.mxu0 %v492
  %572 = vmatprep.subr.bf16.mxu0 0
  %573 = vmatpush1.bf16.msra.mxu0 %v493
  %574 = vmatprep.mubr.bf16.mxu0 %v263
  %575 = vmatmul.mubr.bf16.gmra.mrb[0].mxu0 %v262
  %v576 = vpop.f32.mrb[0].mxu0
  %v577 = vadd.f32 %v128, %v576
  %v578 = vpop.f32.mrb[0].mxu0
  %v579 = vpop.f32.mrb[0].mxu0
  %v580 = vadd.f32 %v128, %v579
  %v581 = vpop.f32.mrb[0].mxu0
  %582 = vmatprep.mubr.bf16.mxu0 %v267
  %583 = vmatmul.mubr.bf16.gmra.mrb[0].mxu0 %v266
  %v584 = vpop.f32.mrb[0].mxu0
  %v585 = vadd.f32 %v128, %v584
  %v586 = vpop.f32.mrb[0].mxu0
  %v587 = vpop.f32.mrb[0].mxu0
  %v588 = vadd.f32 %v128, %v587
  %v589 = vpop.f32.mrb[0].mxu0
  %590 = vmatprep.mubr.bf16.mxu0 %v271
  %591 = vmatmul.mubr.bf16.gmra.mrb[0].mxu0 %v270
  %v592 = vpop.f32.mrb[0].mxu0
  %v593 = vadd.f32 %v128, %v592
  %v594 = vpop.f32.mrb[0].mxu0
  %v595 = vpop.f32.mrb[0].mxu0
  %v596 = vadd.f32 %v128, %v595
  %v597 = vpop.f32.mrb[0].mxu0
  %598 = vmatprep.mubr.bf16.mxu0 %v275
  %599 = vmatmul.mubr.bf16.gmra.mrb[0].mxu0 %v274
  %v600 = vpop.f32.mrb[0].mxu0
  %v601 = vadd.f32 %v128, %v600
  %v602 = vpop.f32.mrb[0].mxu0
  %v603 = vpop.f32.mrb[0].mxu0
  %v604 = vadd.f32 %v128, %v603
  %v605 = vpop.f32.mrb[0].mxu0
  %606 = vmatprep.mubr.bf16.mxu0 %v279
  %607 = vmatmul.mubr.bf16.gmra.mrb[0].mxu0 %v278
  %v608 = vpop.f32.mrb[0].mxu0
  %v609 = vadd.f32 %v128, %v608
  %v610 = vpop.f32.mrb[0].mxu0
  %v611 = vpop.f32.mrb[0].mxu0
  %v612 = vadd.f32 %v128, %v611
  %v613 = vpop.f32.mrb[0].mxu0
  %614 = vmatprep.mubr.bf16.mxu0 %v283
  %615 = vmatmul.mubr.bf16.gmra.mrb[0].mxu0 %v282
  %v616 = vpop.f32.mrb[0].mxu0
  %v617 = vadd.f32 %v128, %v616
  %v618 = vpop.f32.mrb[0].mxu0
  %v619 = vpop.f32.mrb[0].mxu0
  %v620 = vadd.f32 %v128, %v619
  %v621 = vpop.f32.mrb[0].mxu0
  %622 = vmatprep.mubr.bf16.mxu0 %v287
  %623 = vmatmul.mubr.bf16.gmra.mrb[0].mxu0 %v286
  %v624 = vpop.f32.mrb[0].mxu0
  %v625 = vadd.f32 %v128, %v624
  %v626 = vpop.f32.mrb[0].mxu0
  %v627 = vpop.f32.mrb[0].mxu0
  %v628 = vadd.f32 %v128, %v627
  %v629 = vpop.f32.mrb[0].mxu0
  %630 = vmatprep.mubr.bf16.mxu0 %v291
  %631 = vmatmul.mubr.bf16.gmra.mrb[0].mxu0 %v290
  %v632 = vpop.f32.mrb[0].mxu0
  %v633 = vadd.f32 %v128, %v632
  %v634 = vpop.f32.mrb[0].mxu0
  %v635 = vpop.f32.mrb[0].mxu0
  %v636 = vadd.f32 %v128, %v635
  %v637 = vpop.f32.mrb[0].mxu0
  %638 = vmatprep.mubr.bf16.mxu0 %v295
  %639 = vmatmul.mubr.bf16.gmra.mrb[0].mxu0 %v294
  %v640 = vpop.f32.mrb[0].mxu0
  %v641 = vadd.f32 %v128, %v640
  %v642 = vpop.f32.mrb[0].mxu0
  %v643 = vpop.f32.mrb[0].mxu0
  %v644 = vadd.f32 %v128, %v643
  %v645 = vpop.f32.mrb[0].mxu0
  %646 = vmatprep.mubr.bf16.mxu0 %v299
  %647 = vmatmul.mubr.bf16.gmra.mrb[0].mxu0 %v298
  %v648 = vpop.f32.mrb[0].mxu0
  %v649 = vadd.f32 %v128, %v648
  %v650 = vpop.f32.mrb[0].mxu0
  %v651 = vpop.f32.mrb[0].mxu0
  %v652 = vadd.f32 %v128, %v651
  %v653 = vpop.f32.mrb[0].mxu0
  %654 = vmatprep.mubr.bf16.mxu0 %v303
  %655 = vmatmul.mubr.bf16.gmra.mrb[0].mxu0 %v302
  %v656 = vpop.f32.mrb[0].mxu0
  %v657 = vadd.f32 %v128, %v656
  %v658 = vpop.f32.mrb[0].mxu0
  %v659 = vpop.f32.mrb[0].mxu0
  %v660 = vadd.f32 %v128, %v659
  %v661 = vpop.f32.mrb[0].mxu0
  %662 = vdwg.mxu0
  %663 = vmatprep.subr.bf16.mxu0 0
  %664 = vmatpush1.bf16.msra.mxu0 %v494
  %665 = vmatprep.subr.bf16.mxu0 0
  %666 = vmatpush1.bf16.msra.mxu0 %v495
  %667 = vmatprep.subr.bf16.mxu0 0
  %668 = vmatpush1.bf16.msra.mxu0 %v496
  %669 = vmatprep.subr.bf16.mxu0 0
  %670 = vmatpush1.bf16.msra.mxu0 %v497
  %671 = vmatprep.subr.bf16.mxu0 0
  %672 = vmatpush1.bf16.msra.mxu0 %v498
  %673 = vmatprep.subr.bf16.mxu0 0
  %674 = vmatpush1.bf16.msra.mxu0 %v499
  %675 = vmatprep.subr.bf16.mxu0 0
  %676 = vmatpush1.bf16.msra.mxu0 %v500
  %677 = vmatprep.subr.bf16.mxu0 0
  %678 = vmatpush1.bf16.msra.mxu0 %v501
  %679 = vmatprep.subr.bf16.mxu0 0
  %680 = vmatpush1.bf16.msra.mxu0 %v502
  %681 = vmatprep.subr.bf16.mxu0 0
  %682 = vmatpush1.bf16.msra.mxu0 %v503
  %683 = vmatprep.subr.bf16.mxu0 0
  %684 = vmatpush1.bf16.msra.mxu0 %v504
  %685 = vmatprep.subr.bf16.mxu0 0
  %686 = vmatpush1.bf16.msra.mxu0 %v505
  %687 = vmatprep.subr.bf16.mxu0 0
  %688 = vmatpush1.bf16.msra.mxu0 %v506
  %689 = vmatprep.subr.bf16.mxu0 0
  %690 = vmatpush1.bf16.msra.mxu0 %v507
  %691 = vmatprep.subr.bf16.mxu0 0
  %692 = vmatpush1.bf16.msra.mxu0 %v508
  %693 = vmatprep.subr.bf16.mxu0 0
  %694 = vmatpush1.bf16.msra.mxu0 %v509
  %695 = vmatprep.mubr.bf16.mxu0 %v265
  %696 = vmatmul.mubr.bf16.gmra.mrb[0].mxu0 %v264
  %v697 = vpop.f32.mrb[0].mxu0
  %v698 = vadd.f32 %v577, %v697
  %v699 = vpop.f32.mrb[0].mxu0
  %v700 = vpop.f32.mrb[0].mxu0
  %v701 = vadd.f32 %v580, %v700
  %v702 = vpop.f32.mrb[0].mxu0
  %703 = vmatprep.mubr.bf16.mxu0 %v269
  %704 = vmatmul.mubr.bf16.gmra.mrb[0].mxu0 %v268
  %v705 = vpop.f32.mrb[0].mxu0
  %v706 = vadd.f32 %v585, %v705
  %v707 = vpop.f32.mrb[0].mxu0
  %v708 = vpop.f32.mrb[0].mxu0
  %v709 = vadd.f32 %v588, %v708
  %v710 = vpop.f32.mrb[0].mxu0
  %711 = vmatprep.mubr.bf16.mxu0 %v273
  %712 = vmatmul.mubr.bf16.gmra.mrb[0].mxu0 %v272
  %v713 = vpop.f32.mrb[0].mxu0
  %v714 = vadd.f32 %v593, %v713
  %v715 = vpop.f32.mrb[0].mxu0
  %v716 = vpop.f32.mrb[0].mxu0
  %v717 = vadd.f32 %v596, %v716
  %v718 = vpop.f32.mrb[0].mxu0
  %719 = vmatprep.mubr.bf16.mxu0 %v277
  %720 = vmatmul.mubr.bf16.gmra.mrb[0].mxu0 %v276
  %v721 = vpop.f32.mrb[0].mxu0
  %v722 = vadd.f32 %v601, %v721
  %v723 = vpop.f32.mrb[0].mxu0
  %v724 = vpop.f32.mrb[0].mxu0
  %v725 = vadd.f32 %v604, %v724
  %v726 = vpop.f32.mrb[0].mxu0
  %727 = vmatprep.mubr.bf16.mxu0 %v281
  %728 = vmatmul.mubr.bf16.gmra.mrb[0].mxu0 %v280
  %v729 = vpop.f32.mrb[0].mxu0
  %v730 = vadd.f32 %v609, %v729
  %v731 = vpop.f32.mrb[0].mxu0
  %v732 = vpop.f32.mrb[0].mxu0
  %v733 = vadd.f32 %v612, %v732
  %v734 = vpop.f32.mrb[0].mxu0
  %735 = vmatprep.mubr.bf16.mxu0 %v285
  %736 = vmatmul.mubr.bf16.gmra.mrb[0].mxu0 %v284
  %v737 = vpop.f32.mrb[0].mxu0
  %v738 = vadd.f32 %v617, %v737
  %v739 = vpop.f32.mrb[0].mxu0
  %v740 = vpop.f32.mrb[0].mxu0
  %v741 = vadd.f32 %v620, %v740
  %v742 = vpop.f32.mrb[0].mxu0
  %743 = vmatprep.mubr.bf16.mxu0 %v289
  %744 = vmatmul.mubr.bf16.gmra.mrb[0].mxu0 %v288
  %v745 = vpop.f32.mrb[0].mxu0
  %v746 = vadd.f32 %v625, %v745
  %v747 = vpop.f32.mrb[0].mxu0
  %v748 = vpop.f32.mrb[0].mxu0
  %v749 = vadd.f32 %v628, %v748
  %v750 = vpop.f32.mrb[0].mxu0
  %751 = vmatprep.mubr.bf16.mxu0 %v293
  %752 = vmatmul.mubr.bf16.gmra.mrb[0].mxu0 %v292
  %v753 = vpop.f32.mrb[0].mxu0
  %v754 = vadd.f32 %v633, %v753
  %v755 = vpop.f32.mrb[0].mxu0
  %v756 = vpop.f32.mrb[0].mxu0
  %v757 = vadd.f32 %v636, %v756
  %v758 = vpop.f32.mrb[0].mxu0
  %759 = vmatprep.mubr.bf16.mxu0 %v297
  %760 = vmatmul.mubr.bf16.gmra.mrb[0].mxu0 %v296
  %v761 = vpop.f32.mrb[0].mxu0
  %v762 = vadd.f32 %v641, %v761
  %v763 = vpop.f32.mrb[0].mxu0
  %v764 = vpop.f32.mrb[0].mxu0
  %v765 = vadd.f32 %v644, %v764
  %v766 = vpop.f32.mrb[0].mxu0
  %767 = vmatprep.mubr.bf16.mxu0 %v301
  %768 = vmatmul.mubr.bf16.gmra.mrb[0].mxu0 %v300
  %v769 = vpop.f32.mrb[0].mxu0
  %v770 = vadd.f32 %v649, %v769
  %v771 = vpop.f32.mrb[0].mxu0
  %v772 = vpop.f32.mrb[0].mxu0
  %v773 = vadd.f32 %v652, %v772
  %v774 = vpop.f32.mrb[0].mxu0
  %775 = vmatprep.mubr.bf16.mxu0 %v305
  %776 = vmatmul.mubr.bf16.gmra.mrb[0].mxu0 %v304
  %v777 = vpop.f32.mrb[0].mxu0
  %v778 = vadd.f32 %v657, %v777
  %v779 = vpop.f32.mrb[0].mxu0
  %v780 = vpop.f32.mrb[0].mxu0
  %v781 = vadd.f32 %v660, %v780
  %v782 = vpop.f32.mrb[0].mxu0
  %783 = vdwg.mxu0
  %v784 = vmax.f32 %v698, 0.0
  %v785 = vmax.f32 %v701, 0.0
  %v786 = vmax.f32 %v706, 0.0
  %v787 = vmax.f32 %v709, 0.0
  %v788 = vmax.f32 %v714, 0.0
  %v789 = vmax.f32 %v717, 0.0
  %v790 = vmax.f32 %v722, 0.0
  %v791 = vmax.f32 %v725, 0.0
  %v792 = vmax.f32 %v730, 0.0
  %v793 = vmax.f32 %v733, 0.0
  %v794 = vmax.f32 %v738, 0.0
  %v795 = vmax.f32 %v741, 0.0
  %v796 = vmax.f32 %v746, 0.0
  %v797 = vmax.f32 %v749, 0.0
  %v798 = vmax.f32 %v754, 0.0
  %v799 = vmax.f32 %v757, 0.0
  %v800 = vmax.f32 %v762, 0.0
  %v801 = vmax.f32 %v765, 0.0
  %v802 = vmax.f32 %v770, 0.0
  %v803 = vmax.f32 %v773, 0.0
  %v804 = vmax.f32 %v778, 0.0
  %v805 = vmax.f32 %v781, 0.0
  %v806 = vpack.c.bf16 %v785, %v784
  %v807 = vpack.c.bf16 %v787, %v786
  %v808 = vpack.c.bf16 %v789, %v788
  %v809 = vpack.c.bf16 %v791, %v790
  %v810 = vpack.c.bf16 %v793, %v792
  %v811 = vpack.c.bf16 %v795, %v794
  %v812 = vpack.c.bf16 %v797, %v796
  %v813 = vpack.c.bf16 %v799, %v798
  %v814 = vpack.c.bf16 %v801, %v800
  %v815 = vpack.c.bf16 %v803, %v802
  %v816 = vpack.c.bf16 %v805, %v804
  %v828 = vunpack.c.l.b16 %v806
  %v829 = vunpack.c.h.b16 %v806
  %v830 = vunpack.c.l.b16 %v807
  %v831 = vunpack.c.h.b16 %v807
  %v832 = vunpack.c.l.b16 %v808
  %v833 = vunpack.c.h.b16 %v808
  %v834 = vunpack.c.l.b16 %v809
  %v835 = vunpack.c.h.b16 %v809
  %v836 = vunpack.c.l.b16 %v810
  %v837 = vunpack.c.h.b16 %v810
  %v838 = vunpack.c.l.b16 %v811
  %v839 = vunpack.c.h.b16 %v811
  %v840 = vunpack.c.l.b16 %v812
  %v841 = vunpack.c.h.b16 %v812
  %v842 = vunpack.c.l.b16 %v813
  %v843 = vunpack.c.h.b16 %v813
  %v844 = vunpack.c.l.b16 %v814
  %v845 = vunpack.c.h.b16 %v814
  %v846 = vunpack.c.l.b16 %v815
  %v847 = vunpack.c.h.b16 %v815
  %v848 = vunpack.c.l.b16 %v816
  %v849 = vunpack.c.h.b16 %v816
  %v850 = vpack.c.b16 %v828, %v828
  %v851 = vpack.c.b16 %v829, %v829
  %v852 = vpack.c.b16 %v830, %v830
  %v853 = vpack.c.b16 %v831, %v831
  %v854 = vpack.c.b16 %v832, %v832
  %v855 = vpack.c.b16 %v833, %v833
  %v856 = vpack.c.b16 %v834, %v834
  %v857 = vpack.c.b16 %v835, %v835
  %v858 = vpack.c.b16 %v836, %v836
  %v859 = vpack.c.b16 %v837, %v837
  %v860 = vpack.c.b16 %v838, %v838
  %v861 = vpack.c.b16 %v839, %v839
  %v862 = vpack.c.b16 %v840, %v840
  %v863 = vpack.c.b16 %v841, %v841
  %v864 = vpack.c.b16 %v842, %v842
  %v865 = vpack.c.b16 %v843, %v843
  %v866 = vpack.c.b16 %v844, %v844
  %v867 = vpack.c.b16 %v845, %v845
  %v868 = vpack.c.b16 %v846, %v846
  %v869 = vpack.c.b16 %v847, %v847
  %v870 = vpack.c.b16 %v848, %v848
  %v871 = vpack.c.b16 %v849, %v849
  %vm894 = vcmask 519168
  %895 = vst.msk [vmem:[%s3] sm:$0xf] %vm894, %v850
  %896 = vst.msk [vmem:[%s3 + $0x4] sm:$0xf] %vm894, %v851
  %897 = vst.msk [vmem:[%s3 + $0x8] sm:$0xf] %vm894, %v852
  %898 = vst.msk [vmem:[%s3 + $0xc] sm:$0xf] %vm894, %v853
  %899 = vst.msk [vmem:[%s3 + $0x10] sm:$0xf] %vm894, %v854
  %900 = vst.msk [vmem:[%s3 + $0x14] sm:$0xf] %vm894, %v855
  %901 = vst.msk [vmem:[%s3 + $0x18] sm:$0xf] %vm894, %v856
  %902 = vst.msk [vmem:[%s3 + $0x1c] sm:$0xf] %vm894, %v857
  %903 = vst.msk [vmem:[%s3 + $0x20] sm:$0xf] %vm894, %v858
  %904 = vst.msk [vmem:[%s3 + $0x24] sm:$0xf] %vm894, %v859
  %905 = vst.msk [vmem:[%s3 + $0x28] sm:$0xf] %vm894, %v860
  %906 = vst.msk [vmem:[%s3 + $0x2c] sm:$0xf] %vm894, %v861
  %907 = vst.msk [vmem:[%s3 + $0x30] sm:$0xf] %vm894, %v862
  %908 = vst.msk [vmem:[%s3 + $0x34] sm:$0xf] %vm894, %v863
  %909 = vst.msk [vmem:[%s3 + $0x38] sm:$0xf] %vm894, %v864
  %910 = vst.msk [vmem:[%s3 + $0x3c] sm:$0xf] %vm894, %v865
  %911 = vst.msk [vmem:[%s3 + $0x40] sm:$0xf] %vm894, %v866
  %912 = vst.msk [vmem:[%s3 + $0x44] sm:$0xf] %vm894, %v867
  %913 = vst.msk [vmem:[%s3 + $0x48] sm:$0xf] %vm894, %v868
  %914 = vst.msk [vmem:[%s3 + $0x4c] sm:$0xf] %vm894, %v869
  %915 = vst.msk [vmem:[%s3 + $0x50] sm:$0xf] %vm894, %v870
  %916 = vst.msk [vmem:[%s3 + $0x54] sm:$0xf] %vm894, %v871
  // Predicated region
  $region14: #{cnn_policy_forward.5} parent=0 // pred_check
    _
  $region15: #{cnn_policy_forward.5} parent=0 // pred_check_branch
    %918 = sbr.rel (0) target = $region17
  $region16: #{cnn_policy_forward.5} parent=0 // pred_region
    _
  $region17: #{cnn_policy_forward.5} parent=0 // pred_fallthru
    _
  // Predicated region
  $region18: #{cnn_policy_forward.5} parent=0 // pred_check
    _
  $region19: #{cnn_policy_forward.5} parent=0 // pred_check_branch
    %920 = sbr.rel (0) target = $region21
  $region20: #{cnn_policy_forward.5} parent=0 // pred_region
    _
  $region21: #{cnn_policy_forward.5} parent=0 // pred_fallthru
    _

// kernel: cnn_policy_forward.6
$region0: #{cnn_policy_forward.6}
  #allocation0 [shape = 'u32[]', space=smem, size = 0x4, offset = 0x4, fixed_abs, tag = 'smem constant byte address 0x4 - core index']
  #allocation1 [shape = 'u32[144,128]{1,0:T(1,128)}', space=vmem, size = 0x12000, scoped, tag = 'internal scratch']
  %s0 = inlined_call_operand.vmem [shape: bf16[112,576], index: 0, kind: input, shape index: {}]
  %s1 = inlined_call_operand.vmem [shape: bf16[576,32], index: 1, kind: input, shape index: {}]
  %s2 = inlined_call_operand.vmem [shape: f32[1,32], index: 2, kind: input, shape index: {}]
  %s3 = inlined_call_operand.vmem [shape: bf16[112,32], index: 3, kind: output, shape index: {}]
  %s4 = sld [smem:[#allocation0]]
  $region22: #{cnn_policy_forward.6} parent=0
    _
  %s6 = ssub.s32 1, %s4
  %s7 = scalar_select 0, %s6, %s4
  // Predicated region
  $region2: #{cnn_policy_forward.6} parent=0 // pred_check
    _
  $region3: #{cnn_policy_forward.6} parent=0 // pred_check_branch
    %9 = sbr.rel (0) target = $region5
  $region4: #{cnn_policy_forward.6} parent=0 // pred_region
    _
  $region5: #{cnn_policy_forward.6} parent=0 // pred_fallthru
    _
  // Predicated region
  $region6: #{cnn_policy_forward.6} parent=0 // pred_check
    _
  $region7: #{cnn_policy_forward.6} parent=0 // pred_check_branch
    %11 = sbr.rel (0) target = $region9
  $region8: #{cnn_policy_forward.6} parent=0 // pred_region
    _
  $region9: #{cnn_policy_forward.6} parent=0 // pred_fallthru
    _
  // Predicated region
  $region10: #{cnn_policy_forward.6} parent=0 // pred_check
    _
  $region11: #{cnn_policy_forward.6} parent=0 // pred_check_branch
    %13 = sbr.rel (0) target = $region13
  $region12: #{cnn_policy_forward.6} parent=0 // pred_region
    _
  $region13: #{cnn_policy_forward.6} parent=0 // pred_fallthru
    _
  %v15 = vld [vmem:[%s0] sm:$0xff]
  %v16 = vld [vmem:[%s0 + $0x8] sm:$0xff]
  %v17 = vld [vmem:[%s0 + $0x10] sm:$0xf]
  %v18 = vld [vmem:[%s0 + $0x14] sm:$0xff]
  %v19 = vld [vmem:[%s0 + $0x1c] sm:$0xff]
  %v20 = vld [vmem:[%s0 + $0x24] sm:$0xf]
  %v21 = vld [vmem:[%s0 + $0x28] sm:$0xff]
  %v22 = vld [vmem:[%s0 + $0x30] sm:$0xff]
  %v23 = vld [vmem:[%s0 + $0x38] sm:$0xf]
  %v24 = vld [vmem:[%s0 + $0x3c] sm:$0xff]
  %v25 = vld [vmem:[%s0 + $0x44] sm:$0xff]
  %v26 = vld [vmem:[%s0 + $0x4c] sm:$0xf]
  %v27 = vld [vmem:[%s0 + $0x50] sm:$0xff]
  %v28 = vld [vmem:[%s0 + $0x58] sm:$0xff]
  %v29 = vld [vmem:[%s0 + $0x60] sm:$0xf]
  %v30 = vld [vmem:[%s0 + $0x64] sm:$0xff]
  %v31 = vld [vmem:[%s0 + $0x6c] sm:$0xff]
  %v32 = vld [vmem:[%s0 + $0x74] sm:$0xf]
  %v33 = vld [vmem:[%s0 + $0x78] sm:$0xff]
  %v34 = vld [vmem:[%s0 + $0x80] sm:$0xff]
  %v35 = vld [vmem:[%s0 + $0x88] sm:$0xf]
  %v36 = vld [vmem:[%s0 + $0x8c] sm:$0xff]
  %v37 = vld [vmem:[%s0 + $0x94] sm:$0xff]
  %v38 = vld [vmem:[%s0 + $0x9c] sm:$0xf]
  %v39 = vld [vmem:[%s0 + $0xa0] sm:$0xff]
  %v40 = vld [vmem:[%s0 + $0xa8] sm:$0xff]
  %v41 = vld [vmem:[%s0 + $0xb0] sm:$0xf]
  %v42 = vld [vmem:[%s0 + $0xb4] sm:$0xff]
  %v43 = vld [vmem:[%s0 + $0xbc] sm:$0xff]
  %v44 = vld [vmem:[%s0 + $0xc4] sm:$0xf]
  %v45 = vld [vmem:[%s0 + $0xc8] sm:$0xff]
  %v46 = vld [vmem:[%s0 + $0xd0] sm:$0xff]
  %v47 = vld [vmem:[%s0 + $0xd8] sm:$0xf]
  %v48 = vld [vmem:[%s0 + $0xdc] sm:$0xff]
  %v49 = vld [vmem:[%s0 + $0xe4] sm:$0xff]
  %v50 = vld [vmem:[%s0 + $0xec] sm:$0xf]
  %v51 = vld [vmem:[%s0 + $0xf0] sm:$0xff]
  %v52 = vld [vmem:[%s0 + $0xf8] sm:$0xff]
  %v53 = vld [vmem:[%s0 + $0x100] sm:$0xf]
  %v54 = vld [vmem:[%s0 + $0x104] sm:$0xff]
  %v55 = vld [vmem:[%s0 + $0x10c] sm:$0xff]
  %v56 = vld [vmem:[%s0 + $0x114] sm:$0xf]
  %v57 = vld [vmem:[%s1] sm:$0xf]
  %v58 = vld [vmem:[%s1 + $0x4] sm:$0xf]
  %v59 = vld [vmem:[%s1 + $0x8] sm:$0xf]
  %v60 = vld [vmem:[%s1 + $0xc] sm:$0xf]
  %v61 = vld [vmem:[%s1 + $0x10] sm:$0xf]
  %v62 = vld [vmem:[%s1 + $0x14] sm:$0xf]
  %v63 = vld [vmem:[%s1 + $0x18] sm:$0xf]
  %v64 = vld [vmem:[%s1 + $0x1c] sm:$0xf]
  %v65 = vld [vmem:[%s1 + $0x20] sm:$0xf]
  %v66 = vld [vmem:[%s1 + $0x24] sm:$0xf]
  %v67 = vld [vmem:[%s1 + $0x28] sm:$0xf]
  %v68 = vld [vmem:[%s1 + $0x2c] sm:$0xf]
  %v69 = vld [vmem:[%s1 + $0x30] sm:$0xf]
  %v70 = vld [vmem:[%s1 + $0x34] sm:$0xf]
  %v71 = vld [vmem:[%s1 + $0x38] sm:$0xf]
  %v72 = vld [vmem:[%s1 + $0x3c] sm:$0xf]
  %v73 = vld [vmem:[%s1 + $0x40] sm:$0xf]
  %v74 = vld [vmem:[%s1 + $0x44] sm:$0xf]
  %v75 = vld [vmem:[%s1 + $0x48] sm:$0xf]
  %v76 = vld [vmem:[%s1 + $0x4c] sm:$0xf]
  %v77 = vld [vmem:[%s1 + $0x50] sm:$0xf]
  %v78 = vld [vmem:[%s1 + $0x54] sm:$0xf]
  %v79 = vld [vmem:[%s1 + $0x58] sm:$0xf]
  %v80 = vld [vmem:[%s1 + $0x5c] sm:$0xf]
  %v81 = vld [vmem:[%s1 + $0x60] sm:$0xf]
  %v82 = vld [vmem:[%s1 + $0x64] sm:$0xf]
  %v83 = vld [vmem:[%s1 + $0x68] sm:$0xf]
  %v84 = vld [vmem:[%s1 + $0x6c] sm:$0xf]
  %v85 = vld [vmem:[%s1 + $0x70] sm:$0xf]
  %v86 = vld [vmem:[%s1 + $0x74] sm:$0xf]
  %v87 = vld [vmem:[%s1 + $0x78] sm:$0xf]
  %v88 = vld [vmem:[%s1 + $0x7c] sm:$0xf]
  %v89 = vld [vmem:[%s1 + $0x80] sm:$0xf]
  %v90 = vld [vmem:[%s1 + $0x84] sm:$0xf]
  %v91 = vld [vmem:[%s1 + $0x88] sm:$0xf]
  %v92 = vld [vmem:[%s1 + $0x8c] sm:$0xf]
  %v93 = vld [vmem:[%s1 + $0x90] sm:$0xf]
  %v94 = vld [vmem:[%s1 + $0x94] sm:$0xf]
  %v95 = vld [vmem:[%s1 + $0x98] sm:$0xf]
  %v96 = vld [vmem:[%s1 + $0x9c] sm:$0xf]
  %v97 = vld [vmem:[%s1 + $0xa0] sm:$0xf]
  %v98 = vld [vmem:[%s1 + $0xa4] sm:$0xf]
  %v99 = vld [vmem:[%s1 + $0xa8] sm:$0xf]
  %v100 = vld [vmem:[%s1 + $0xac] sm:$0xf]
  %v101 = vld [vmem:[%s1 + $0xb0] sm:$0xf]
  %v102 = vld [vmem:[%s1 + $0xb4] sm:$0xf]
  %v103 = vld [vmem:[%s1 + $0xb8] sm:$0xf]
  %v104 = vld [vmem:[%s1 + $0xbc] sm:$0xf]
  %v105 = vld [vmem:[%s1 + $0xc0] sm:$0xf]
  %v106 = vld [vmem:[%s1 + $0xc4] sm:$0xf]
  %v107 = vld [vmem:[%s1 + $0xc8] sm:$0xf]
  %v108 = vld [vmem:[%s1 + $0xcc] sm:$0xf]
  %v109 = vld [vmem:[%s1 + $0xd0] sm:$0xf]
  %v110 = vld [vmem:[%s1 + $0xd4] sm:$0xf]
  %v111 = vld [vmem:[%s1 + $0xd8] sm:$0xf]
  %v112 = vld [vmem:[%s1 + $0xdc] sm:$0xf]
  %v113 = vld [vmem:[%s1 + $0xe0] sm:$0xf]
  %v114 = vld [vmem:[%s1 + $0xe4] sm:$0xf]
  %v115 = vld [vmem:[%s1 + $0xe8] sm:$0xf]
  %v116 = vld [vmem:[%s1 + $0xec] sm:$0xf]
  %v117 = vld [vmem:[%s1 + $0xf0] sm:$0xf]
  %v118 = vld [vmem:[%s1 + $0xf4] sm:$0xf]
  %v119 = vld [vmem:[%s1 + $0xf8] sm:$0xf]
  %v120 = vld [vmem:[%s1 + $0xfc] sm:$0xf]
  %v121 = vld [vmem:[%s1 + $0x100] sm:$0xf]
  %v122 = vld [vmem:[%s1 + $0x104] sm:$0xf]
  %v123 = vld [vmem:[%s1 + $0x108] sm:$0xf]
  %v124 = vld [vmem:[%s1 + $0x10c] sm:$0xf]
  %v125 = vld [vmem:[%s1 + $0x110] sm:$0xf]
  %v126 = vld [vmem:[%s1 + $0x114] sm:$0xf]
  %v127 = vld [vmem:[%s1 + $0x118] sm:$0xf]
  %v128 = vld [vmem:[%s1 + $0x11c] sm:$0xf]
  %v129 = vld [vmem:[%s2] sm:$0x1]
  %v131 = vlaneseq
  %v132 = vshrl.u32 %v131, 7
  %v133 = vsub.s32 0, %v132
  %v134 = vrot.slane %v129, %v133
  %v178 = vunpack.c.l.b16 %v15
  %v179 = vunpack.c.h.b16 %v15
  %v180 = vunpack.c.l.b16 %v16
  %v181 = vunpack.c.h.b16 %v16
  %v182 = vunpack.c.l.b16 %v17
  %v183 = vunpack.c.l.b16 %v18
  %v184 = vunpack.c.h.b16 %v18
  %v185 = vunpack.c.l.b16 %v19
  %v186 = vunpack.c.h.b16 %v19
  %v187 = vunpack.c.l.b16 %v20
  %v188 = vunpack.c.l.b16 %v21
  %v189 = vunpack.c.h.b16 %v21
  %v190 = vunpack.c.l.b16 %v22
  %v191 = vunpack.c.h.b16 %v22
  %v192 = vunpack.c.l.b16 %v23
  %v193 = vunpack.c.l.b16 %v24
  %v194 = vunpack.c.h.b16 %v24
  %v195 = vunpack.c.l.b16 %v25
  %v196 = vunpack.c.h.b16 %v25
  %v197 = vunpack.c.l.b16 %v26
  %v198 = vunpack.c.l.b16 %v27
  %v199 = vunpack.c.h.b16 %v27
  %v200 = vunpack.c.l.b16 %v28
  %v201 = vunpack.c.h.b16 %v28
  %v202 = vunpack.c.l.b16 %v29
  %v203 = vunpack.c.l.b16 %v30
  %v204 = vunpack.c.h.b16 %v30
  %v205 = vunpack.c.l.b16 %v31
  %v206 = vunpack.c.h.b16 %v31
  %v207 = vunpack.c.l.b16 %v32
  %v208 = vunpack.c.l.b16 %v33
  %v209 = vunpack.c.h.b16 %v33
  %v210 = vunpack.c.l.b16 %v34
  %v211 = vunpack.c.h.b16 %v34
  %v212 = vunpack.c.l.b16 %v35
  %v213 = vunpack.c.l.b16 %v36
  %v214 = vunpack.c.h.b16 %v36
  %v215 = vunpack.c.l.b16 %v37
  %v216 = vunpack.c.h.b16 %v37
  %v217 = vunpack.c.l.b16 %v38
  %v218 = vunpack.c.l.b16 %v39
  %v219 = vunpack.c.h.b16 %v39
  %v220 = vunpack.c.l.b16 %v40
  %v221 = vunpack.c.h.b16 %v40
  %v222 = vunpack.c.l.b16 %v41
  %v223 = vunpack.c.l.b16 %v42
  %v224 = vunpack.c.h.b16 %v42
  %v225 = vunpack.c.l.b16 %v43
  %v226 = vunpack.c.h.b16 %v43
  %v227 = vunpack.c.l.b16 %v44
  %v228 = vunpack.c.l.b16 %v45
  %v229 = vunpack.c.h.b16 %v45
  %v230 = vunpack.c.l.b16 %v46
  %v231 = vunpack.c.h.b16 %v46
  %v232 = vunpack.c.l.b16 %v47
  %v233 = vunpack.c.l.b16 %v48
  %v234 = vunpack.c.h.b16 %v48
  %v235 = vunpack.c.l.b16 %v49
  %v236 = vunpack.c.h.b16 %v49
  %v237 = vunpack.c.l.b16 %v50
  %v238 = vunpack.c.l.b16 %v51
  %v239 = vunpack.c.h.b16 %v51
  %v240 = vunpack.c.l.b16 %v52
  %v241 = vunpack.c.h.b16 %v52
  %v242 = vunpack.c.l.b16 %v53
  %v243 = vunpack.c.l.b16 %v54
  %v244 = vunpack.c.h.b16 %v54
  %v245 = vunpack.c.l.b16 %v55
  %v246 = vunpack.c.h.b16 %v55
  %v247 = vunpack.c.l.b16 %v56
  %v248 = vpack.c.b16 %v183, %v178
  %v249 = vpack.c.b16 %v184, %v179
  %v250 = vpack.c.b16 %v185, %v180
  %v251 = vpack.c.b16 %v186, %v181
  %v252 = vpack.c.b16 %v187, %v182
  %v253 = vpack.c.b16 %v193, %v188
  %v254 = vpack.c.b16 %v194, %v189
  %v255 = vpack.c.b16 %v195, %v190
  %v256 = vpack.c.b16 %v196, %v191
  %v257 = vpack.c.b16 %v197, %v192
  %v258 = vpack.c.b16 %v203, %v198
  %v259 = vpack.c.b16 %v204, %v199
  %v260 = vpack.c.b16 %v205, %v200
  %v261 = vpack.c.b16 %v206, %v201
  %v262 = vpack.c.b16 %v207, %v202
  %v263 = vpack.c.b16 %v213, %v208
  %v264 = vpack.c.b16 %v214, %v209
  %v265 = vpack.c.b16 %v215, %v210
  %v266 = vpack.c.b16 %v216, %v211
  %v267 = vpack.c.b16 %v217, %v212
  %v268 = vpack.c.b16 %v223, %v218
  %v269 = vpack.c.b16 %v224, %v219
  %v270 = vpack.c.b16 %v225, %v220
  %v271 = vpack.c.b16 %v226, %v221
  %v272 = vpack.c.b16 %v227, %v222
  %v273 = vpack.c.b16 %v233, %v228
  %v274 = vpack.c.b16 %v234, %v229
  %v275 = vpack.c.b16 %v235, %v230
  %v276 = vpack.c.b16 %v236, %v231
  %v277 = vpack.c.b16 %v237, %v232
  %v278 = vpack.c.b16 %v243, %v238
  %v279 = vpack.c.b16 %v244, %v239
  %v280 = vpack.c.b16 %v245, %v240
  %v281 = vpack.c.b16 %v246, %v241
  %v282 = vpack.c.b16 %v247, %v242
  %v383 = vunpack.c.l.b16 %v57
  %v384 = vunpack.c.l.b16 %v58
  %v385 = vunpack.c.l.b16 %v59
  %v386 = vunpack.c.l.b16 %v60
  %v387 = vunpack.c.l.b16 %v61
  %v388 = vunpack.c.l.b16 %v62
  %v389 = vunpack.c.l.b16 %v63
  %v390 = vunpack.c.l.b16 %v64
  %v391 = vunpack.c.l.b16 %v65
  %v392 = vunpack.c.l.b16 %v66
  %v393 = vunpack.c.l.b16 %v67
  %v394 = vunpack.c.l.b16 %v68
  %v395 = vunpack.c.l.b16 %v69
  %v396 = vunpack.c.l.b16 %v70
  %v397 = vunpack.c.l.b16 %v71
  %v398 = vunpack.c.l.b16 %v72
  %v399 = vunpack.c.l.b16 %v73
  %v400 = vunpack.c.l.b16 %v74
  %v401 = vunpack.c.l.b16 %v75
  %v402 = vunpack.c.l.b16 %v76
  %v403 = vunpack.c.l.b16 %v77
  %v404 = vunpack.c.l.b16 %v78
  %v405 = vunpack.c.l.b16 %v79
  %v406 = vunpack.c.l.b16 %v80
  %v407 = vunpack.c.l.b16 %v81
  %v408 = vunpack.c.l.b16 %v82
  %v409 = vunpack.c.l.b16 %v83
  %v410 = vunpack.c.l.b16 %v84
  %v411 = vunpack.c.l.b16 %v85
  %v412 = vunpack.c.l.b16 %v86
  %v413 = vunpack.c.l.b16 %v87
  %v414 = vunpack.c.l.b16 %v88
  %v415 = vunpack.c.l.b16 %v89
  %v416 = vunpack.c.l.b16 %v90
  %v417 = vunpack.c.l.b16 %v91
  %v418 = vunpack.c.l.b16 %v92
  %v419 = vunpack.c.l.b16 %v93
  %v420 = vunpack.c.l.b16 %v94
  %v421 = vunpack.c.l.b16 %v95
  %v422 = vunpack.c.l.b16 %v96
  %v423 = vunpack.c.l.b16 %v97
  %v424 = vunpack.c.l.b16 %v98
  %v425 = vunpack.c.l.b16 %v99
  %v426 = vunpack.c.l.b16 %v100
  %v427 = vunpack.c.l.b16 %v101
  %v428 = vunpack.c.l.b16 %v102
  %v429 = vunpack.c.l.b16 %v103
  %v430 = vunpack.c.l.b16 %v104
  %v431 = vunpack.c.l.b16 %v105
  %v432 = vunpack.c.l.b16 %v106
  %v433 = vunpack.c.l.b16 %v107
  %v434 = vunpack.c.l.b16 %v108
  %v435 = vunpack.c.l.b16 %v109
  %v436 = vunpack.c.l.b16 %v110
  %v437 = vunpack.c.l.b16 %v111
  %v438 = vunpack.c.l.b16 %v112
  %v439 = vunpack.c.l.b16 %v113
  %v440 = vunpack.c.l.b16 %v114
  %v441 = vunpack.c.l.b16 %v115
  %v442 = vunpack.c.l.b16 %v116
  %v443 = vunpack.c.l.b16 %v117
  %v444 = vunpack.c.l.b16 %v118
  %v445 = vunpack.c.l.b16 %v119
  %v446 = vunpack.c.l.b16 %v120
  %v447 = vunpack.c.l.b16 %v121
  %v448 = vunpack.c.l.b16 %v122
  %v449 = vunpack.c.l.b16 %v123
  %v450 = vunpack.c.l.b16 %v124
  %v451 = vunpack.c.l.b16 %v125
  %v452 = vunpack.c.l.b16 %v126
  %v453 = vunpack.c.l.b16 %v127
  %v454 = vunpack.c.l.b16 %v128
  %v455 = vpack.c.b16 %v384, %v383
  %v456 = vpack.c.b16 %v386, %v385
  %v457 = vpack.c.b16 %v388, %v387
  %v458 = vpack.c.b16 %v390, %v389
  %v459 = vpack.c.b16 %v392, %v391
  %v460 = vpack.c.b16 %v394, %v393
  %v461 = vpack.c.b16 %v396, %v395
  %v462 = vpack.c.b16 %v398, %v397
  %v463 = vpack.c.b16 %v400, %v399
  %v464 = vpack.c.b16 %v402, %v401
  %v465 = vpack.c.b16 %v404, %v403
  %v466 = vpack.c.b16 %v406, %v405
  %v467 = vpack.c.b16 %v408, %v407
  %v468 = vpack.c.b16 %v410, %v409
  %v469 = vpack.c.b16 %v412, %v411
  %v470 = vpack.c.b16 %v414, %v413
  %v471 = vpack.c.b16 %v416, %v415
  %v472 = vpack.c.b16 %v418, %v417
  %v473 = vpack.c.b16 %v420, %v419
  %v474 = vpack.c.b16 %v422, %v421
  %v475 = vpack.c.b16 %v424, %v423
  %v476 = vpack.c.b16 %v426, %v425
  %v477 = vpack.c.b16 %v428, %v427
  %v478 = vpack.c.b16 %v430, %v429
  %v479 = vpack.c.b16 %v432, %v431
  %v480 = vpack.c.b16 %v434, %v433
  %v481 = vpack.c.b16 %v436, %v435
  %v482 = vpack.c.b16 %v438, %v437
  %v483 = vpack.c.b16 %v440, %v439
  %v484 = vpack.c.b16 %v442, %v441
  %v485 = vpack.c.b16 %v444, %v443
  %v486 = vpack.c.b16 %v446, %v445
  %v487 = vpack.c.b16 %v448, %v447
  %v488 = vpack.c.b16 %v450, %v449
  %v489 = vpack.c.b16 %v452, %v451
  %v490 = vpack.c.b16 %v454, %v453
  %vm527 = vcmask 523264
  %v529 = vsel %vm527, %v252, 0
  %v532 = vsel %vm527, %v257, 0
  %v535 = vsel %vm527, %v262, 0
  %v538 = vsel %vm527, %v267, 0
  %v541 = vsel %vm527, %v272, 0
  %v544 = vsel %vm527, %v277, 0
  %v547 = vsel %vm527, %v282, 0
  %549 = vmatprep.subr.bf16.mxu0 0
  %550 = vmatpush1.bf16.msra.mxu0 %v455
  %551 = vmatprep.subr.bf16.mxu0 0
  %552 = vmatpush1.bf16.msra.mxu0 %v456
  %553 = vmatprep.subr.bf16.mxu0 0
  %554 = vmatpush1.bf16.msra.mxu0 %v457
  %555 = vmatprep.subr.bf16.mxu0 0
  %556 = vmatpush1.bf16.msra.mxu0 %v458
  %557 = vmatprep.subr.bf16.mxu0 0
  %558 = vmatpush1.bf16.msra.mxu0 %v459
  %559 = vmatprep.subr.bf16.mxu0 0
  %560 = vmatpush1.bf16.msra.mxu0 %v460
  %561 = vmatprep.subr.bf16.mxu0 0
  %562 = vmatpush1.bf16.msra.mxu0 %v461
  %563 = vmatprep.subr.bf16.mxu0 0
  %564 = vmatpush1.bf16.msra.mxu0 %v462
  %565 = vmatprep.subr.bf16.mxu0 0
  %566 = vmatpush1.bf16.msra.mxu0 %v463
  %567 = vmatprep.subr.bf16.mxu0 0
  %568 = vmatpush1.bf16.msra.mxu0 %v464
  %569 = vmatprep.subr.bf16.mxu0 0
  %570 = vmatpush1.bf16.msra.mxu0 %v465
  %571 = vmatprep.subr.bf16.mxu0 0
  %572 = vmatpush1.bf16.msra.mxu0 %v466
  %573 = vmatprep.subr.bf16.mxu0 0
  %574 = vmatpush1.bf16.msra.mxu0 %v467
  %575 = vmatprep.subr.bf16.mxu0 0
  %576 = vmatpush1.bf16.msra.mxu0 %v468
  %577 = vmatprep.subr.bf16.mxu0 0
  %578 = vmatpush1.bf16.msra.mxu0 %v469
  %579 = vmatprep.subr.bf16.mxu0 0
  %580 = vmatpush1.bf16.msra.mxu0 %v470
  %581 = vmatprep.mubr.bf16.mxu0 %v249
  %582 = vmatmul.mubr.bf16.gmra.mrb[0].mxu0 %v248
  %v583 = vpop.f32.mrb[0].mxu0
  %v584 = vadd.f32 %v134, %v583
  %v585 = vpop.f32.mrb[0].mxu0
  %v586 = vpop.f32.mrb[0].mxu0
  %v587 = vadd.f32 %v134, %v586
  %v588 = vpop.f32.mrb[0].mxu0
  %589 = vmatprep.mubr.bf16.mxu0 %v254
  %590 = vmatmul.mubr.bf16.gmra.mrb[0].mxu0 %v253
  %v591 = vpop.f32.mrb[0].mxu0
  %v592 = vadd.f32 %v134, %v591
  %v593 = vpop.f32.mrb[0].mxu0
  %v594 = vpop.f32.mrb[0].mxu0
  %v595 = vadd.f32 %v134, %v594
  %v596 = vpop.f32.mrb[0].mxu0
  %597 = vmatprep.mubr.bf16.mxu0 %v259
  %598 = vmatmul.mubr.bf16.gmra.mrb[0].mxu0 %v258
  %v599 = vpop.f32.mrb[0].mxu0
  %v600 = vadd.f32 %v134, %v599
  %v601 = vpop.f32.mrb[0].mxu0
  %v602 = vpop.f32.mrb[0].mxu0
  %v603 = vadd.f32 %v134, %v602
  %v604 = vpop.f32.mrb[0].mxu0
  %605 = vmatprep.mubr.bf16.mxu0 %v264
  %606 = vmatmul.mubr.bf16.gmra.mrb[0].mxu0 %v263
  %v607 = vpop.f32.mrb[0].mxu0
  %v608 = vadd.f32 %v134, %v607
  %v609 = vpop.f32.mrb[0].mxu0
  %v610 = vpop.f32.mrb[0].mxu0
  %v611 = vadd.f32 %v134, %v610
  %v612 = vpop.f32.mrb[0].mxu0
  %613 = vmatprep.mubr.bf16.mxu0 %v269
  %614 = vmatmul.mubr.bf16.gmra.mrb[0].mxu0 %v268
  %v615 = vpop.f32.mrb[0].mxu0
  %v616 = vadd.f32 %v134, %v615
  %v617 = vpop.f32.mrb[0].mxu0
  %v618 = vpop.f32.mrb[0].mxu0
  %v619 = vadd.f32 %v134, %v618
  %v620 = vpop.f32.mrb[0].mxu0
  %621 = vmatprep.mubr.bf16.mxu0 %v274
  %622 = vmatmul.mubr.bf16.gmra.mrb[0].mxu0 %v273
  %v623 = vpop.f32.mrb[0].mxu0
  %v624 = vadd.f32 %v134, %v623
  %v625 = vpop.f32.mrb[0].mxu0
  %v626 = vpop.f32.mrb[0].mxu0
  %v627 = vadd.f32 %v134, %v626
  %v628 = vpop.f32.mrb[0].mxu0
  %629 = vmatprep.mubr.bf16.mxu0 %v279
  %630 = vmatmul.mubr.bf16.gmra.mrb[0].mxu0 %v278
  %v631 = vpop.f32.mrb[0].mxu0
  %v632 = vadd.f32 %v134, %v631
  %v633 = vpop.f32.mrb[0].mxu0
  %v634 = vpop.f32.mrb[0].mxu0
  %v635 = vadd.f32 %v134, %v634
  %v636 = vpop.f32.mrb[0].mxu0
  %637 = vdwg.mxu0
  %638 = vmatprep.subr.bf16.mxu0 0
  %639 = vmatpush1.bf16.msra.mxu0 %v471
  %640 = vmatprep.subr.bf16.mxu0 0
  %641 = vmatpush1.bf16.msra.mxu0 %v472
  %642 = vmatprep.subr.bf16.mxu0 0
  %643 = vmatpush1.bf16.msra.mxu0 %v473
  %644 = vmatprep.subr.bf16.mxu0 0
  %645 = vmatpush1.bf16.msra.mxu0 %v474
  %646 = vmatprep.subr.bf16.mxu0 0
  %647 = vmatpush1.bf16.msra.mxu0 %v475
  %648 = vmatprep.subr.bf16.mxu0 0
  %649 = vmatpush1.bf16.msra.mxu0 %v476
  %650 = vmatprep.subr.bf16.mxu0 0
  %651 = vmatpush1.bf16.msra.mxu0 %v477
  %652 = vmatprep.subr.bf16.mxu0 0
  %653 = vmatpush1.bf16.msra.mxu0 %v478
  %654 = vmatprep.subr.bf16.mxu0 0
  %655 = vmatpush1.bf16.msra.mxu0 %v479
  %656 = vmatprep.subr.bf16.mxu0 0
  %657 = vmatpush1.bf16.msra.mxu0 %v480
  %658 = vmatprep.subr.bf16.mxu0 0
  %659 = vmatpush1.bf16.msra.mxu0 %v481
  %660 = vmatprep.subr.bf16.mxu0 0
  %661 = vmatpush1.bf16.msra.mxu0 %v482
  %662 = vmatprep.subr.bf16.mxu0 0
  %663 = vmatpush1.bf16.msra.mxu0 %v483
  %664 = vmatprep.subr.bf16.mxu0 0
  %665 = vmatpush1.bf16.msra.mxu0 %v484
  %666 = vmatprep.subr.bf16.mxu0 0
  %667 = vmatpush1.bf16.msra.mxu0 %v485
  %668 = vmatprep.subr.bf16.mxu0 0
  %669 = vmatpush1.bf16.msra.mxu0 %v486
  %670 = vmatprep.mubr.bf16.mxu0 %v251
  %671 = vmatmul.mubr.bf16.gmra.mrb[0].mxu0 %v250
  %v672 = vpop.f32.mrb[0].mxu0
  %v673 = vadd.f32 %v584, %v672
  %v674 = vpop.f32.mrb[0].mxu0
  %v675 = vpop.f32.mrb[0].mxu0
  %v676 = vadd.f32 %v587, %v675
  %v677 = vpop.f32.mrb[0].mxu0
  %678 = vmatprep.mubr.bf16.mxu0 %v256
  %679 = vmatmul.mubr.bf16.gmra.mrb[0].mxu0 %v255
  %v680 = vpop.f32.mrb[0].mxu0
  %v681 = vadd.f32 %v592, %v680
  %v682 = vpop.f32.mrb[0].mxu0
  %v683 = vpop.f32.mrb[0].mxu0
  %v684 = vadd.f32 %v595, %v683
  %v685 = vpop.f32.mrb[0].mxu0
  %686 = vmatprep.mubr.bf16.mxu0 %v261
  %687 = vmatmul.mubr.bf16.gmra.mrb[0].mxu0 %v260
  %v688 = vpop.f32.mrb[0].mxu0
  %v689 = vadd.f32 %v600, %v688
  %v690 = vpop.f32.mrb[0].mxu0
  %v691 = vpop.f32.mrb[0].mxu0
  %v692 = vadd.f32 %v603, %v691
  %v693 = vpop.f32.mrb[0].mxu0
  %694 = vmatprep.mubr.bf16.mxu0 %v266
  %695 = vmatmul.mubr.bf16.gmra.mrb[0].mxu0 %v265
  %v696 = vpop.f32.mrb[0].mxu0
  %v697 = vadd.f32 %v608, %v696
  %v698 = vpop.f32.mrb[0].mxu0
  %v699 = vpop.f32.mrb[0].mxu0
  %v700 = vadd.f32 %v611, %v699
  %v701 = vpop.f32.mrb[0].mxu0
  %702 = vmatprep.mubr.bf16.mxu0 %v271
  %703 = vmatmul.mubr.bf16.gmra.mrb[0].mxu0 %v270
  %v704 = vpop.f32.mrb[0].mxu0
  %v705 = vadd.f32 %v616, %v704
  %v706 = vpop.f32.mrb[0].mxu0
  %v707 = vpop.f32.mrb[0].mxu0
  %v708 = vadd.f32 %v619, %v707
  %v709 = vpop.f32.mrb[0].mxu0
  %710 = vmatprep.mubr.bf16.mxu0 %v276
  %711 = vmatmul.mubr.bf16.gmra.mrb[0].mxu0 %v275
  %v712 = vpop.f32.mrb[0].mxu0
  %v713 = vadd.f32 %v624, %v712
  %v714 = vpop.f32.mrb[0].mxu0
  %v715 = vpop.f32.mrb[0].mxu0
  %v716 = vadd.f32 %v627, %v715
  %v717 = vpop.f32.mrb[0].mxu0
  %718 = vmatprep.mubr.bf16.mxu0 %v281
  %719 = vmatmul.mubr.bf16.gmra.mrb[0].mxu0 %v280
  %v720 = vpop.f32.mrb[0].mxu0
  %v721 = vadd.f32 %v632, %v720
  %v722 = vpop.f32.mrb[0].mxu0
  %v723 = vpop.f32.mrb[0].mxu0
  %v724 = vadd.f32 %v635, %v723
  %v725 = vpop.f32.mrb[0].mxu0
  %726 = vdwg.mxu0
  %727 = vmatprep.subr.bf16.mxu0 0
  %728 = vmatpush1.bf16.msra.mxu0 %v487
  %729 = vmatprep.subr.bf16.mxu0 0
  %730 = vmatpush1.bf16.msra.mxu0 %v488
  %731 = vmatprep.subr.bf16.mxu0 0
  %732 = vmatpush1.bf16.msra.mxu0 %v489
  %733 = vmatprep.subr.bf16.mxu0 0
  %734 = vmatpush1.bf16.msra.mxu0 %v490
  %735 = vmatprep.subr.bf16.mxu0 0
  %736 = vmatpush1.bf16.msra.mxu0 0
  %737 = vmatprep.subr.bf16.mxu0 0
  %738 = vmatpush1.bf16.msra.mxu0 0
  %739 = vmatprep.subr.bf16.mxu0 0
  %740 = vmatpush1.bf16.msra.mxu0 0
  %741 = vmatprep.subr.bf16.mxu0 0
  %742 = vmatpush1.bf16.msra.mxu0 0
  %743 = vmatprep.subr.bf16.mxu0 0
  %744 = vmatpush1.bf16.msra.mxu0 0
  %745 = vmatprep.subr.bf16.mxu0 0
  %746 = vmatpush1.bf16.msra.mxu0 0
  %747 = vmatprep.subr.bf16.mxu0 0
  %748 = vmatpush1.bf16.msra.mxu0 0
  %749 = vmatprep.subr.bf16.mxu0 0
  %750 = vmatpush1.bf16.msra.mxu0 0
  %751 = vmatprep.subr.bf16.mxu0 0
  %752 = vmatpush1.bf16.msra.mxu0 0
  %753 = vmatprep.subr.bf16.mxu0 0
  %754 = vmatpush1.bf16.msra.mxu0 0
  %755 = vmatprep.subr.bf16.mxu0 0
  %756 = vmatpush1.bf16.msra.mxu0 0
  %757 = vmatprep.subr.bf16.mxu0 0
  %758 = vmatpush1.bf16.msra.mxu0 0
  %759 = vmatprep.mubr.bf16.mxu0 0
  %760 = vmatmul.mubr.bf16.gmra.mrb[0].mxu0 %v529
  %v761 = vpop.f32.mrb[0].mxu0
  %v762 = vadd.f32 %v673, %v761
  %v763 = vpop.f32.mrb[0].mxu0
  %v764 = vpop.f32.mrb[0].mxu0
  %v765 = vadd.f32 %v676, %v764
  %v766 = vpop.f32.mrb[0].mxu0
  %767 = vmatprep.mubr.bf16.mxu0 0
  %768 = vmatmul.mubr.bf16.gmra.mrb[0].mxu0 %v532
  %v769 = vpop.f32.mrb[0].mxu0
  %v770 = vadd.f32 %v681, %v769
  %v771 = vpop.f32.mrb[0].mxu0
  %v772 = vpop.f32.mrb[0].mxu0
  %v773 = vadd.f32 %v684, %v772
  %v774 = vpop.f32.mrb[0].mxu0
  %775 = vmatprep.mubr.bf16.mxu0 0
  %776 = vmatmul.mubr.bf16.gmra.mrb[0].mxu0 %v535
  %v777 = vpop.f32.mrb[0].mxu0
  %v778 = vadd.f32 %v689, %v777
  %v779 = vpop.f32.mrb[0].mxu0
  %v780 = vpop.f32.mrb[0].mxu0
  %v781 = vadd.f32 %v692, %v780
  %v782 = vpop.f32.mrb[0].mxu0
  %783 = vmatprep.mubr.bf16.mxu0 0
  %784 = vmatmul.mubr.bf16.gmra.mrb[0].mxu0 %v538
  %v785 = vpop.f32.mrb[0].mxu0
  %v786 = vadd.f32 %v697, %v785
  %v787 = vpop.f32.mrb[0].mxu0
  %v788 = vpop.f32.mrb[0].mxu0
  %v789 = vadd.f32 %v700, %v788
  %v790 = vpop.f32.mrb[0].mxu0
  %791 = vmatprep.mubr.bf16.mxu0 0
  %792 = vmatmul.mubr.bf16.gmra.mrb[0].mxu0 %v541
  %v793 = vpop.f32.mrb[0].mxu0
  %v794 = vadd.f32 %v705, %v793
  %v795 = vpop.f32.mrb[0].mxu0
  %v796 = vpop.f32.mrb[0].mxu0
  %v797 = vadd.f32 %v708, %v796
  %v798 = vpop.f32.mrb[0].mxu0
  %799 = vmatprep.mubr.bf16.mxu0 0
  %800 = vmatmul.mubr.bf16.gmra.mrb[0].mxu0 %v544
  %v801 = vpop.f32.mrb[0].mxu0
  %v802 = vadd.f32 %v713, %v801
  %v803 = vpop.f32.mrb[0].mxu0
  %v804 = vpop.f32.mrb[0].mxu0
  %v805 = vadd.f32 %v716, %v804
  %v806 = vpop.f32.mrb[0].mxu0
  %807 = vmatprep.mubr.bf16.mxu0 0
  %808 = vmatmul.mubr.bf16.gmra.mrb[0].mxu0 %v547
  %v809 = vpop.f32.mrb[0].mxu0
  %v810 = vadd.f32 %v721, %v809
  %v811 = vpop.f32.mrb[0].mxu0
  %v812 = vpop.f32.mrb[0].mxu0
  %v813 = vadd.f32 %v724, %v812
  %v814 = vpop.f32.mrb[0].mxu0
  %815 = vdwg.mxu0
  %v816 = vmax.f32 %v762, 0.0
  %v817 = vmax.f32 %v765, 0.0
  %v818 = vmax.f32 %v770, 0.0
  %v819 = vmax.f32 %v773, 0.0
  %v820 = vmax.f32 %v778, 0.0
  %v821 = vmax.f32 %v781, 0.0
  %v822 = vmax.f32 %v786, 0.0
  %v823 = vmax.f32 %v789, 0.0
  %v824 = vmax.f32 %v794, 0.0
  %v825 = vmax.f32 %v797, 0.0
  %v826 = vmax.f32 %v802, 0.0
  %v827 = vmax.f32 %v805, 0.0
  %v828 = vmax.f32 %v810, 0.0
  %v829 = vmax.f32 %v813, 0.0
  %v830 = vpack.c.bf16 %v817, %v816
  %v831 = vpack.c.bf16 %v819, %v818
  %v832 = vpack.c.bf16 %v821, %v820
  %v833 = vpack.c.bf16 %v823, %v822
  %v834 = vpack.c.bf16 %v825, %v824
  %v835 = vpack.c.bf16 %v827, %v826
  %v836 = vpack.c.bf16 %v829, %v828
  %v844 = vunpack.c.l.b16 %v830
  %v845 = vunpack.c.h.b16 %v830
  %v846 = vunpack.c.l.b16 %v831
  %v847 = vunpack.c.h.b16 %v831
  %v848 = vunpack.c.l.b16 %v832
  %v849 = vunpack.c.h.b16 %v832
  %v850 = vunpack.c.l.b16 %v833
  %v851 = vunpack.c.h.b16 %v833
  %v852 = vunpack.c.l.b16 %v834
  %v853 = vunpack.c.h.b16 %v834
  %v854 = vunpack.c.l.b16 %v835
  %v855 = vunpack.c.h.b16 %v835
  %v856 = vunpack.c.l.b16 %v836
  %v857 = vunpack.c.h.b16 %v836
  %v858 = vpack.c.b16 %v844, %v844
  %v859 = vpack.c.b16 %v845, %v845
  %v860 = vpack.c.b16 %v846, %v846
  %v861 = vpack.c.b16 %v847, %v847
  %v862 = vpack.c.b16 %v848, %v848
  %v863 = vpack.c.b16 %v849, %v849
  %v864 = vpack.c.b16 %v850, %v850
  %v865 = vpack.c.b16 %v851, %v851
  %v866 = vpack.c.b16 %v852, %v852
  %v867 = vpack.c.b16 %v853, %v853
  %v868 = vpack.c.b16 %v854, %v854
  %v869 = vpack.c.b16 %v855, %v855
  %v870 = vpack.c.b16 %v856, %v856
  %v871 = vpack.c.b16 %v857, %v857
  %vm886 = vcmask 257024
  %887 = vst.msk [vmem:[%s3] sm:$0xf] %vm886, %v858
  %888 = vst.msk [vmem:[%s3 + $0x4] sm:$0xf] %vm886, %v859
  %889 = vst.msk [vmem:[%s3 + $0x8] sm:$0xf] %vm886, %v860
  %890 = vst.msk [vmem:[%s3 + $0xc] sm:$0xf] %vm886, %v861
  %891 = vst.msk [vmem:[%s3 + $0x10] sm:$0xf] %vm886, %v862
  %892 = vst.msk [vmem:[%s3 + $0x14] sm:$0xf] %vm886, %v863
  %893 = vst.msk [vmem:[%s3 + $0x18] sm:$0xf] %vm886, %v864
  %894 = vst.msk [vmem:[%s3 + $0x1c] sm:$0xf] %vm886, %v865
  %895 = vst.msk [vmem:[%s3 + $0x20] sm:$0xf] %vm886, %v866
  %896 = vst.msk [vmem:[%s3 + $0x24] sm:$0xf] %vm886, %v867
  %897 = vst.msk [vmem:[%s3 + $0x28] sm:$0xf] %vm886, %v868
  %898 = vst.msk [vmem:[%s3 + $0x2c] sm:$0xf] %vm886, %v869
  %899 = vst.msk [vmem:[%s3 + $0x30] sm:$0xf] %vm886, %v870
  %900 = vst.msk [vmem:[%s3 + $0x34] sm:$0xf] %vm886, %v871
  // Predicated region
  $region14: #{cnn_policy_forward.6} parent=0 // pred_check
    _
  $region15: #{cnn_policy_forward.6} parent=0 // pred_check_branch
    %902 = sbr.rel (0) target = $region17
  $region16: #{cnn_policy_forward.6} parent=0 // pred_region
    _
  $region17: #{cnn_policy_forward.6} parent=0 // pred_fallthru
    _
  // Predicated region
  $region18: #{cnn_policy_forward.6} parent=0 // pred_check
    _
  $region19: #{cnn_policy_forward.6} parent=0 // pred_check_branch
    %904 = sbr.rel (0) target = $region21
  $region20: #{cnn_policy_forward.6} parent=0 // pred_region
    _
  $region21: #{cnn_policy_forward.6} parent=0 // pred_fallthru
    _

// kernel: cnn_policy_forward.7
$region0: #{cnn_policy_forward.7}
  #allocation0 [shape = 'u32[]', space=smem, size = 0x4, offset = 0x4, fixed_abs, tag = 'smem constant byte address 0x4 - core index']
  #allocation1 [shape = 'u32[144,128]{1,0:T(1,128)}', space=vmem, size = 0x12000, scoped, tag = 'internal scratch']
  #allocation2 [shape = 'f32[1,1]{1,0:T(1,128)S(1)}', space=vmem, size = 0x200, scoped, tag = 'scoped memory for cnn_policy_forward.7']
  %s0 = inlined_call_operand.vmem [shape: bf16[16,1568], index: 0, kind: input, shape index: {}]
  %s1 = inlined_call_operand.vmem [shape: bf16[1568,512], index: 1, kind: input, shape index: {}]
  %s2 = inlined_call_operand.vmem [shape: f32[1,512], index: 2, kind: input, shape index: {}]
  %s3 = inlined_call_operand.vmem [shape: bf16[512,1], index: 3, kind: input, shape index: {}]
  %s4 = inlined_call_operand.<no memory space> [shape: f32[1,1], index: 4, kind: input, shape index: {}]
  %s5 = inlined_call_operand.vmem [shape: f32[16,512], index: 5, kind: output, shape index: {0}]
  %s6 = inlined_call_operand.vmem [shape: f32[16,1], index: 6, kind: output, shape index: {1}]
  %7 = xla_tuple %s5, %s6
  %s8 = sld [smem:[#allocation0]]
  $region38: #{cnn_policy_forward.7} parent=0
    _
  %s10 = ssub.s32 1, %s8
  %s11 = scalar_select 0, %s10, %s8
  %v12 = vstv %s4
  %13 = vst [vmem:[#allocation2] sm:$0x1] %v12
  // Predicated region
  $region2: #{cnn_policy_forward.7} parent=0 // pred_check
    _
  $region3: #{cnn_policy_forward.7} parent=0 // pred_check_branch
    %15 = sbr.rel (0) target = $region5
  $region4: #{cnn_policy_forward.7} parent=0 // pred_region
    _
  $region5: #{cnn_policy_forward.7} parent=0 // pred_fallthru
    _
  // Predicated region
  $region6: #{cnn_policy_forward.7} parent=0 // pred_check
    _
  $region7: #{cnn_policy_forward.7} parent=0 // pred_check_branch
    %17 = sbr.rel (0) target = $region9
  $region8: #{cnn_policy_forward.7} parent=0 // pred_region
    _
  $region9: #{cnn_policy_forward.7} parent=0 // pred_fallthru
    _
  // Predicated region
  $region10: #{cnn_policy_forward.7} parent=0 // pred_check
    _
  $region11: #{cnn_policy_forward.7} parent=0 // pred_check_branch
    %19 = sbr.rel (0) target = $region13
  $region12: #{cnn_policy_forward.7} parent=0 // pred_region
    _
  $region13: #{cnn_policy_forward.7} parent=0 // pred_fallthru
    _
  // Predicated region
  $region14: #{cnn_policy_forward.7} parent=0 // pred_check
    _
  $region15: #{cnn_policy_forward.7} parent=0 // pred_check_branch
    %21 = sbr.rel (0) target = $region17
  $region16: #{cnn_policy_forward.7} parent=0 // pred_region
    _
  $region17: #{cnn_policy_forward.7} parent=0 // pred_fallthru
    _
  // Predicated region
  $region18: #{cnn_policy_forward.7} parent=0 // pred_check
    _
  $region19: #{cnn_policy_forward.7} parent=0 // pred_check_branch
    %23 = sbr.rel (0) target = $region21
  $region20: #{cnn_policy_forward.7} parent=0 // pred_region
    _
  $region21: #{cnn_policy_forward.7} parent=0 // pred_fallthru
    _
  %v25 = vld [vmem:[%s0] sm:$0xff]
  %v26 = vld [vmem:[%s0 + $0x8] sm:$0xff]
  %v27 = vld [vmem:[%s0 + $0x10] sm:$0xff]
  %v28 = vld [vmem:[%s0 + $0x18] sm:$0xff]
  %v29 = vld [vmem:[%s0 + $0x20] sm:$0xff]
  %v30 = vld [vmem:[%s0 + $0x28] sm:$0xff]
  %v31 = vld [vmem:[%s0 + $0x30] sm:$0xf]
  %v32 = vld [vmem:[%s0 + $0x34] sm:$0xff]
  %v33 = vld [vmem:[%s0 + $0x3c] sm:$0xff]
  %v34 = vld [vmem:[%s0 + $0x44] sm:$0xff]
  %v35 = vld [vmem:[%s0 + $0x4c] sm:$0xff]
  %v36 = vld [vmem:[%s0 + $0x54] sm:$0xff]
  %v37 = vld [vmem:[%s0 + $0x5c] sm:$0xff]
  %v38 = vld [vmem:[%s0 + $0x64] sm:$0xf]
  %v39 = vld [vmem:[%s1] sm:$0xff]
  %v40 = vld [vmem:[%s1 + $0x8] sm:$0xff]
  %v41 = vld [vmem:[%s1 + $0x10] sm:$0xff]
  %v42 = vld [vmem:[%s1 + $0x18] sm:$0xff]
  %v43 = vld [vmem:[%s1 + $0x20] sm:$0xff]
  %v44 = vld [vmem:[%s1 + $0x28] sm:$0xff]
  %v45 = vld [vmem:[%s1 + $0x30] sm:$0xff]
  %v46 = vld [vmem:[%s1 + $0x38] sm:$0xff]
  %v47 = vld [vmem:[%s1 + $0x40] sm:$0xff]
  %v48 = vld [vmem:[%s1 + $0x48] sm:$0xff]
  %v49 = vld [vmem:[%s1 + $0x50] sm:$0xff]
  %v50 = vld [vmem:[%s1 + $0x58] sm:$0xff]
  %v51 = vld [vmem:[%s1 + $0x60] sm:$0xff]
  %v52 = vld [vmem:[%s1 + $0x68] sm:$0xff]
  %v53 = vld [vmem:[%s1 + $0x70] sm:$0xff]
  %v54 = vld [vmem:[%s1 + $0x78] sm:$0xff]
  %v55 = vld [vmem:[%s1 + $0x80] sm:$0xff]
  %v56 = vld [vmem:[%s1 + $0x88] sm:$0xff]
  %v57 = vld [vmem:[%s1 + $0x90] sm:$0xff]
  %v58 = vld [vmem:[%s1 + $0x98] sm:$0xff]
  %v59 = vld [vmem:[%s1 + $0xa0] sm:$0xff]
  %v60 = vld [vmem:[%s1 + $0xa8] sm:$0xff]
  %v61 = vld [vmem:[%s1 + $0xb0] sm:$0xff]
  %v62 = vld [vmem:[%s1 + $0xb8] sm:$0xff]
  %v63 = vld [vmem:[%s1 + $0xc0] sm:$0xff]
  %v64 = vld [vmem:[%s1 + $0xc8] sm:$0xff]
  %v65 = vld [vmem:[%s1 + $0xd0] sm:$0xff]
  %v66 = vld [vmem:[%s1 + $0xd8] sm:$0xff]
  %v67 = vld [vmem:[%s1 + $0xe0] sm:$0xff]
  %v68 = vld [vmem:[%s1 + $0xe8] sm:$0xff]
  %v69 = vld [vmem:[%s1 + $0xf0] sm:$0xff]
  %v70 = vld [vmem:[%s1 + $0xf8] sm:$0xff]
  %v71 = vld [vmem:[%s1 + $0x100] sm:$0xff]
  %v72 = vld [vmem:[%s1 + $0x108] sm:$0xff]
  %v73 = vld [vmem:[%s1 + $0x110] sm:$0xff]
  %v74 = vld [vmem:[%s1 + $0x118] sm:$0xff]
  %v75 = vld [vmem:[%s1 + $0x120] sm:$0xff]
  %v76 = vld [vmem:[%s1 + $0x128] sm:$0xff]
  %v77 = vld [vmem:[%s1 + $0x130] sm:$0xff]
  %v78 = vld [vmem:[%s1 + $0x138] sm:$0xff]
  %v79 = vld [vmem:[%s1 + $0x140] sm:$0xff]
  %v80 = vld [vmem:[%s1 + $0x148] sm:$0xff]
  %v81 = vld [vmem:[%s1 + $0x150] sm:$0xff]
  %v82 = vld [vmem:[%s1 + $0x158] sm:$0xff]
  %v83 = vld [vmem:[%s1 + $0x160] sm:$0xff]
  %v84 = vld [vmem:[%s1 + $0x168] sm:$0xff]
  %v85 = vld [vmem:[%s1 + $0x170] sm:$0xff]
  %v86 = vld [vmem:[%s1 + $0x178] sm:$0xff]
  %v87 = vld [vmem:[%s1 + $0x180] sm:$0xff]
  %v88 = vld [vmem:[%s1 + $0x188] sm:$0xff]
  %v89 = vld [vmem:[%s1 + $0x190] sm:$0xff]
  %v90 = vld [vmem:[%s1 + $0x198] sm:$0xff]
  %v91 = vld [vmem:[%s1 + $0x1a0] sm:$0xff]
  %v92 = vld [vmem:[%s1 + $0x1a8] sm:$0xff]
  %v93 = vld [vmem:[%s1 + $0x1b0] sm:$0xff]
  %v94 = vld [vmem:[%s1 + $0x1b8] sm:$0xff]
  %v95 = vld [vmem:[%s1 + $0x1c0] sm:$0xff]
  %v96 = vld [vmem:[%s1 + $0x1c8] sm:$0xff]
  %v97 = vld [vmem:[%s1 + $0x1d0] sm:$0xff]
  %v98 = vld [vmem:[%s1 + $0x1d8] sm:$0xff]
  %v99 = vld [vmem:[%s1 + $0x1e0] sm:$0xff]
  %v100 = vld [vmem:[%s1 + $0x1e8] sm:$0xff]
  %v101 = vld [vmem:[%s1 + $0x1f0] sm:$0xff]
  %v102 = vld [vmem:[%s1 + $0x1f8] sm:$0xff]
  %v103 = vld [vmem:[%s1 + $0x200] sm:$0xff]
  %v104 = vld [vmem:[%s1 + $0x208] sm:$0xff]
  %v105 = vld [vmem:[%s1 + $0x210] sm:$0xff]
  %v106 = vld [vmem:[%s1 + $0x218] sm:$0xff]
  %v107 = vld [vmem:[%s1 + $0x220] sm:$0xff]
  %v108 = vld [vmem:[%s1 + $0x228] sm:$0xff]
  %v109 = vld [vmem:[%s1 + $0x230] sm:$0xff]
  %v110 = vld [vmem:[%s1 + $0x238] sm:$0xff]
  %v111 = vld [vmem:[%s1 + $0x240] sm:$0xff]
  %v112 = vld [vmem:[%s1 + $0x248] sm:$0xff]
  %v113 = vld [vmem:[%s1 + $0x250] sm:$0xff]
  %v114 = vld [vmem:[%s1 + $0x258] sm:$0xff]
  %v115 = vld [vmem:[%s1 + $0x260] sm:$0xff]
  %v116 = vld [vmem:[%s1 + $0x268] sm:$0xff]
  %v117 = vld [vmem:[%s1 + $0x270] sm:$0xff]
  %v118 = vld [vmem:[%s1 + $0x278] sm:$0xff]
  %v119 = vld [vmem:[%s1 + $0x280] sm:$0xff]
  %v120 = vld [vmem:[%s1 + $0x288] sm:$0xff]
  %v121 = vld [vmem:[%s1 + $0x290] sm:$0xff]
  %v122 = vld [vmem:[%s1 + $0x298] sm:$0xff]
  %v123 = vld [vmem:[%s1 + $0x2a0] sm:$0xff]
  %v124 = vld [vmem:[%s1 + $0x2a8] sm:$0xff]
  %v125 = vld [vmem:[%s1 + $0x2b0] sm:$0xff]
  %v126 = vld [vmem:[%s1 + $0x2b8] sm:$0xff]
  %v127 = vld [vmem:[%s1 + $0x2c0] sm:$0xff]
  %v128 = vld [vmem:[%s1 + $0x2c8] sm:$0xff]
  %v129 = vld [vmem:[%s1 + $0x2d0] sm:$0xff]
  %v130 = vld [vmem:[%s1 + $0x2d8] sm:$0xff]
  %v131 = vld [vmem:[%s1 + $0x2e0] sm:$0xff]
  %v132 = vld [vmem:[%s1 + $0x2e8] sm:$0xff]
  %v133 = vld [vmem:[%s1 + $0x2f0] sm:$0xff]
  %v134 = vld [vmem:[%s1 + $0x2f8] sm:$0xff]
  %v135 = vld [vmem:[%s1 + $0x300] sm:$0xff]
  %v136 = vld [vmem:[%s1 + $0x308] sm:$0xff]
  %v137 = vld [vmem:[%s1 + $0x310] sm:$0xff]
  %v138 = vld [vmem:[%s1 + $0x318] sm:$0xff]
  %v139 = vld [vmem:[%s1 + $0x320] sm:$0xff]
  %v140 = vld [vmem:[%s1 + $0x328] sm:$0xff]
  %v141 = vld [vmem:[%s1 + $0x330] sm:$0xff]
  %v142 = vld [vmem:[%s1 + $0x338] sm:$0xff]
  %v143 = vld [vmem:[%s1 + $0x340] sm:$0xff]
  %v144 = vld [vmem:[%s1 + $0x348] sm:$0xff]
  %v145 = vld [vmem:[%s1 + $0x350] sm:$0xff]
  %v146 = vld [vmem:[%s1 + $0x358] sm:$0xff]
  %v147 = vld [vmem:[%s1 + $0x360] sm:$0xff]
  %v148 = vld [vmem:[%s1 + $0x368] sm:$0xff]
  %v149 = vld [vmem:[%s1 + $0x370] sm:$0xff]
  %v150 = vld [vmem:[%s1 + $0x378] sm:$0xff]
  %v151 = vld [vmem:[%s1 + $0x380] sm:$0xff]
  %v152 = vld [vmem:[%s1 + $0x388] sm:$0xff]
  %v153 = vld [vmem:[%s1 + $0x390] sm:$0xff]
  %v154 = vld [vmem:[%s1 + $0x398] sm:$0xff]
  %v155 = vld [vmem:[%s1 + $0x3a0] sm:$0xff]
  %v156 = vld [vmem:[%s1 + $0x3a8] sm:$0xff]
  %v157 = vld [vmem:[%s1 + $0x3b0] sm:$0xff]
  %v158 = vld [vmem:[%s1 + $0x3b8] sm:$0xff]
  %v159 = vld [vmem:[%s1 + $0x3c0] sm:$0xff]
  %v160 = vld [vmem:[%s1 + $0x3c8] sm:$0xff]
  %v161 = vld [vmem:[%s1 + $0x3d0] sm:$0xff]
  %v162 = vld [vmem:[%s1 + $0x3d8] sm:$0xff]
  %v163 = vld [vmem:[%s1 + $0x3e0] sm:$0xff]
  %v164 = vld [vmem:[%s1 + $0x3e8] sm:$0xff]
  %v165 = vld [vmem:[%s1 + $0x3f0] sm:$0xff]
  %v166 = vld [vmem:[%s1 + $0x3f8] sm:$0xff]
  %v167 = vld [vmem:[%s1 + $0x400] sm:$0xff]
  %v168 = vld [vmem:[%s1 + $0x408] sm:$0xff]
  %v169 = vld [vmem:[%s1 + $0x410] sm:$0xff]
  %v170 = vld [vmem:[%s1 + $0x418] sm:$0xff]
  %v171 = vld [vmem:[%s1 + $0x420] sm:$0xff]
  %v172 = vld [vmem:[%s1 + $0x428] sm:$0xff]
  %v173 = vld [vmem:[%s1 + $0x430] sm:$0xff]
  %v174 = vld [vmem:[%s1 + $0x438] sm:$0xff]
  %v175 = vld [vmem:[%s1 + $0x440] sm:$0xff]
  %v176 = vld [vmem:[%s1 + $0x448] sm:$0xff]
  %v177 = vld [vmem:[%s1 + $0x450] sm:$0xff]
  %v178 = vld [vmem:[%s1 + $0x458] sm:$0xff]
  %v179 = vld [vmem:[%s1 + $0x460] sm:$0xff]
  %v180 = vld [vmem:[%s1 + $0x468] sm:$0xff]
  %v181 = vld [vmem:[%s1 + $0x470] sm:$0xff]
  %v182 = vld [vmem:[%s1 + $0x478] sm:$0xff]
  %v183 = vld [vmem:[%s1 + $0x480] sm:$0xff]
  %v184 = vld [vmem:[%s1 + $0x488] sm:$0xff]
  %v185 = vld [vmem:[%s1 + $0x490] sm:$0xff]
  %v186 = vld [vmem:[%s1 + $0x498] sm:$0xff]
  %v187 = vld [vmem:[%s1 + $0x4a0] sm:$0xff]
  %v188 = vld [vmem:[%s1 + $0x4a8] sm:$0xff]
  %v189 = vld [vmem:[%s1 + $0x4b0] sm:$0xff]
  %v190 = vld [vmem:[%s1 + $0x4b8] sm:$0xff]
  %v191 = vld [vmem:[%s1 + $0x4c0] sm:$0xff]
  %v192 = vld [vmem:[%s1 + $0x4c8] sm:$0xff]
  %v193 = vld [vmem:[%s1 + $0x4d0] sm:$0xff]
  %v194 = vld [vmem:[%s1 + $0x4d8] sm:$0xff]
  %v195 = vld [vmem:[%s1 + $0x4e0] sm:$0xff]
  %v196 = vld [vmem:[%s1 + $0x4e8] sm:$0xff]
  %v197 = vld [vmem:[%s1 + $0x4f0] sm:$0xff]
  %v198 = vld [vmem:[%s1 + $0x4f8] sm:$0xff]
  %v199 = vld [vmem:[%s1 + $0x500] sm:$0xff]
  %v200 = vld [vmem:[%s1 + $0x508] sm:$0xff]
  %v201 = vld [vmem:[%s1 + $0x510] sm:$0xff]
  %v202 = vld [vmem:[%s1 + $0x518] sm:$0xff]
  %v203 = vld [vmem:[%s1 + $0x520] sm:$0xff]
  %v204 = vld [vmem:[%s1 + $0x528] sm:$0xff]
  %v205 = vld [vmem:[%s1 + $0x530] sm:$0xff]
  %v206 = vld [vmem:[%s1 + $0x538] sm:$0xff]
  %v207 = vld [vmem:[%s1 + $0x540] sm:$0xff]
  %v208 = vld [vmem:[%s1 + $0x548] sm:$0xff]
  %v209 = vld [vmem:[%s1 + $0x550] sm:$0xff]
  %v210 = vld [vmem:[%s1 + $0x558] sm:$0xff]
  %v211 = vld [vmem:[%s1 + $0x560] sm:$0xff]
  %v212 = vld [vmem:[%s1 + $0x568] sm:$0xff]
  %v213 = vld [vmem:[%s1 + $0x570] sm:$0xff]
  %v214 = vld [vmem:[%s1 + $0x578] sm:$0xff]
  %v215 = vld [vmem:[%s1 + $0x580] sm:$0xff]
  %v216 = vld [vmem:[%s1 + $0x588] sm:$0xff]
  %v217 = vld [vmem:[%s1 + $0x590] sm:$0xff]
  %v218 = vld [vmem:[%s1 + $0x598] sm:$0xff]
  %v219 = vld [vmem:[%s1 + $0x5a0] sm:$0xff]
  %v220 = vld [vmem:[%s1 + $0x5a8] sm:$0xff]
  %v221 = vld [vmem:[%s1 + $0x5b0] sm:$0xff]
  %v222 = vld [vmem:[%s1 + $0x5b8] sm:$0xff]
  %v223 = vld [vmem:[%s1 + $0x5c0] sm:$0xff]
  %v224 = vld [vmem:[%s1 + $0x5c8] sm:$0xff]
  %v225 = vld [vmem:[%s1 + $0x5d0] sm:$0xff]
  %v226 = vld [vmem:[%s1 + $0x5d8] sm:$0xff]
  %v227 = vld [vmem:[%s1 + $0x5e0] sm:$0xff]
  %v228 = vld [vmem:[%s1 + $0x5e8] sm:$0xff]
  %v229 = vld [vmem:[%s1 + $0x5f0] sm:$0xff]
  %v230 = vld [vmem:[%s1 + $0x5f8] sm:$0xff]
  %v231 = vld [vmem:[%s1 + $0x600] sm:$0xff]
  %v232 = vld [vmem:[%s1 + $0x608] sm:$0xff]
  %v233 = vld [vmem:[%s1 + $0x610] sm:$0xff]
  %v234 = vld [vmem:[%s1 + $0x618] sm:$0xff]
  %v235 = vld [vmem:[%s1 + $0x620] sm:$0xff]
  %v236 = vld [vmem:[%s1 + $0x628] sm:$0xff]
  %v237 = vld [vmem:[%s1 + $0x630] sm:$0xff]
  %v238 = vld [vmem:[%s1 + $0x638] sm:$0xff]
  %v239 = vld [vmem:[%s1 + $0x640] sm:$0xff]
  %v240 = vld [vmem:[%s1 + $0x648] sm:$0xff]
  %v241 = vld [vmem:[%s1 + $0x650] sm:$0xff]
  %v242 = vld [vmem:[%s1 + $0x658] sm:$0xff]
  %v243 = vld [vmem:[%s1 + $0x660] sm:$0xff]
  %v244 = vld [vmem:[%s1 + $0x668] sm:$0xff]
  %v245 = vld [vmem:[%s1 + $0x670] sm:$0xff]
  %v246 = vld [vmem:[%s1 + $0x678] sm:$0xff]
  %v247 = vld [vmem:[%s1 + $0x680] sm:$0xff]
  %v248 = vld [vmem:[%s1 + $0x688] sm:$0xff]
  %v249 = vld [vmem:[%s1 + $0x690] sm:$0xff]
  %v250 = vld [vmem:[%s1 + $0x698] sm:$0xff]
  %v251 = vld [vmem:[%s1 + $0x6a0] sm:$0xff]
  %v252 = vld [vmem:[%s1 + $0x6a8] sm:$0xff]
  %v253 = vld [vmem:[%s1 + $0x6b0] sm:$0xff]
  %v254 = vld [vmem:[%s1 + $0x6b8] sm:$0xff]
  %v255 = vld [vmem:[%s1 + $0x6c0] sm:$0xff]
  %v256 = vld [vmem:[%s1 + $0x6c8] sm:$0xff]
  %v257 = vld [vmem:[%s1 + $0x6d0] sm:$0xff]
  %v258 = vld [vmem:[%s1 + $0x6d8] sm:$0xff]
  %v259 = vld [vmem:[%s1 + $0x6e0] sm:$0xff]
  %v260 = vld [vmem:[%s1 + $0x6e8] sm:$0xff]
  %v261 = vld [vmem:[%s1 + $0x6f0] sm:$0xff]
  %v262 = vld [vmem:[%s1 + $0x6f8] sm:$0xff]
  %v263 = vld [vmem:[%s1 + $0x700] sm:$0xff]
  %v264 = vld [vmem:[%s1 + $0x708] sm:$0xff]
  %v265 = vld [vmem:[%s1 + $0x710] sm:$0xff]
  %v266 = vld [vmem:[%s1 + $0x718] sm:$0xff]
  %v267 = vld [vmem:[%s1 + $0x720] sm:$0xff]
  %v268 = vld [vmem:[%s1 + $0x728] sm:$0xff]
  %v269 = vld [vmem:[%s1 + $0x730] sm:$0xff]
  %v270 = vld [vmem:[%s1 + $0x738] sm:$0xff]
  %v271 = vld [vmem:[%s1 + $0x740] sm:$0xff]
  %v272 = vld [vmem:[%s1 + $0x748] sm:$0xff]
  %v273 = vld [vmem:[%s1 + $0x750] sm:$0xff]
  %v274 = vld [vmem:[%s1 + $0x758] sm:$0xff]
  %v275 = vld [vmem:[%s1 + $0x760] sm:$0xff]
  %v276 = vld [vmem:[%s1 + $0x768] sm:$0xff]
  %v277 = vld [vmem:[%s1 + $0x770] sm:$0xff]
  %v278 = vld [vmem:[%s1 + $0x778] sm:$0xff]
  %v279 = vld [vmem:[%s1 + $0x780] sm:$0xff]
  %v280 = vld [vmem:[%s1 + $0x788] sm:$0xff]
  %v281 = vld [vmem:[%s1 + $0x790] sm:$0xff]
  %v282 = vld [vmem:[%s1 + $0x798] sm:$0xff]
  %v283 = vld [vmem:[%s1 + $0x7a0] sm:$0xff]
  %v284 = vld [vmem:[%s1 + $0x7a8] sm:$0xff]
  %v285 = vld [vmem:[%s1 + $0x7b0] sm:$0xff]
  %v286 = vld [vmem:[%s1 + $0x7b8] sm:$0xff]
  %v287 = vld [vmem:[%s1 + $0x7c0] sm:$0xff]
  %v288 = vld [vmem:[%s1 + $0x7c8] sm:$0xff]
  %v289 = vld [vmem:[%s1 + $0x7d0] sm:$0xff]
  %v290 = vld [vmem:[%s1 + $0x7d8] sm:$0xff]
  %v291 = vld [vmem:[%s1 + $0x7e0] sm:$0xff]
  %v292 = vld [vmem:[%s1 + $0x7e8] sm:$0xff]
  %v293 = vld [vmem:[%s1 + $0x7f0] sm:$0xff]
  %v294 = vld [vmem:[%s1 + $0x7f8] sm:$0xff]
  %v295 = vld [vmem:[%s1 + $0x800] sm:$0xff]
  %v296 = vld [vmem:[%s1 + $0x808] sm:$0xff]
  %v297 = vld [vmem:[%s1 + $0x810] sm:$0xff]
  %v298 = vld [vmem:[%s1 + $0x818] sm:$0xff]
  %v299 = vld [vmem:[%s1 + $0x820] sm:$0xff]
  %v300 = vld [vmem:[%s1 + $0x828] sm:$0xff]
  %v301 = vld [vmem:[%s1 + $0x830] sm:$0xff]
  %v302 = vld [vmem:[%s1 + $0x838] sm:$0xff]
  %v303 = vld [vmem:[%s1 + $0x840] sm:$0xff]
  %v304 = vld [vmem:[%s1 + $0x848] sm:$0xff]
  %v305 = vld [vmem:[%s1 + $0x850] sm:$0xff]
  %v306 = vld [vmem:[%s1 + $0x858] sm:$0xff]
  %v307 = vld [vmem:[%s1 + $0x860] sm:$0xff]
  %v308 = vld [vmem:[%s1 + $0x868] sm:$0xff]
  %v309 = vld [vmem:[%s1 + $0x870] sm:$0xff]
  %v310 = vld [vmem:[%s1 + $0x878] sm:$0xff]
  %v311 = vld [vmem:[%s1 + $0x880] sm:$0xff]
  %v312 = vld [vmem:[%s1 + $0x888] sm:$0xff]
  %v313 = vld [vmem:[%s1 + $0x890] sm:$0xff]
  %v314 = vld [vmem:[%s1 + $0x898] sm:$0xff]
  %v315 = vld [vmem:[%s1 + $0x8a0] sm:$0xff]
  %v316 = vld [vmem:[%s1 + $0x8a8] sm:$0xff]
  %v317 = vld [vmem:[%s1 + $0x8b0] sm:$0xff]
  %v318 = vld [vmem:[%s1 + $0x8b8] sm:$0xff]
  %v319 = vld [vmem:[%s1 + $0x8c0] sm:$0xff]
  %v320 = vld [vmem:[%s1 + $0x8c8] sm:$0xff]
  %v321 = vld [vmem:[%s1 + $0x8d0] sm:$0xff]
  %v322 = vld [vmem:[%s1 + $0x8d8] sm:$0xff]
  %v323 = vld [vmem:[%s1 + $0x8e0] sm:$0xff]
  %v324 = vld [vmem:[%s1 + $0x8e8] sm:$0xff]
  %v325 = vld [vmem:[%s1 + $0x8f0] sm:$0xff]
  %v326 = vld [vmem:[%s1 + $0x8f8] sm:$0xff]
  %v327 = vld [vmem:[%s1 + $0x900] sm:$0xff]
  %v328 = vld [vmem:[%s1 + $0x908] sm:$0xff]
  %v329 = vld [vmem:[%s1 + $0x910] sm:$0xff]
  %v330 = vld [vmem:[%s1 + $0x918] sm:$0xff]
  %v331 = vld [vmem:[%s1 + $0x920] sm:$0xff]
  %v332 = vld [vmem:[%s1 + $0x928] sm:$0xff]
  %v333 = vld [vmem:[%s1 + $0x930] sm:$0xff]
  %v334 = vld [vmem:[%s1 + $0x938] sm:$0xff]
  %v335 = vld [vmem:[%s1 + $0x940] sm:$0xff]
  %v336 = vld [vmem:[%s1 + $0x948] sm:$0xff]
  %v337 = vld [vmem:[%s1 + $0x950] sm:$0xff]
  %v338 = vld [vmem:[%s1 + $0x958] sm:$0xff]
  %v339 = vld [vmem:[%s1 + $0x960] sm:$0xff]
  %v340 = vld [vmem:[%s1 + $0x968] sm:$0xff]
  %v341 = vld [vmem:[%s1 + $0x970] sm:$0xff]
  %v342 = vld [vmem:[%s1 + $0x978] sm:$0xff]
  %v343 = vld [vmem:[%s1 + $0x980] sm:$0xff]
  %v344 = vld [vmem:[%s1 + $0x988] sm:$0xff]
  %v345 = vld [vmem:[%s1 + $0x990] sm:$0xff]
  %v346 = vld [vmem:[%s1 + $0x998] sm:$0xff]
  %v347 = vld [vmem:[%s1 + $0x9a0] sm:$0xff]
  %v348 = vld [vmem:[%s1 + $0x9a8] sm:$0xff]
  %v349 = vld [vmem:[%s1 + $0x9b0] sm:$0xff]
  %v350 = vld [vmem:[%s1 + $0x9b8] sm:$0xff]
  %v351 = vld [vmem:[%s1 + $0x9c0] sm:$0xff]
  %v352 = vld [vmem:[%s1 + $0x9c8] sm:$0xff]
  %v353 = vld [vmem:[%s1 + $0x9d0] sm:$0xff]
  %v354 = vld [vmem:[%s1 + $0x9d8] sm:$0xff]
  %v355 = vld [vmem:[%s1 + $0x9e0] sm:$0xff]
  %v356 = vld [vmem:[%s1 + $0x9e8] sm:$0xff]
  %v357 = vld [vmem:[%s1 + $0x9f0] sm:$0xff]
  %v358 = vld [vmem:[%s1 + $0x9f8] sm:$0xff]
  %v359 = vld [vmem:[%s1 + $0xa00] sm:$0xff]
  %v360 = vld [vmem:[%s1 + $0xa08] sm:$0xff]
  %v361 = vld [vmem:[%s1 + $0xa10] sm:$0xff]
  %v362 = vld [vmem:[%s1 + $0xa18] sm:$0xff]
  %v363 = vld [vmem:[%s1 + $0xa20] sm:$0xff]
  %v364 = vld [vmem:[%s1 + $0xa28] sm:$0xff]
  %v365 = vld [vmem:[%s1 + $0xa30] sm:$0xff]
  %v366 = vld [vmem:[%s1 + $0xa38] sm:$0xff]
  %v367 = vld [vmem:[%s1 + $0xa40] sm:$0xff]
  %v368 = vld [vmem:[%s1 + $0xa48] sm:$0xff]
  %v369 = vld [vmem:[%s1 + $0xa50] sm:$0xff]
  %v370 = vld [vmem:[%s1 + $0xa58] sm:$0xff]
  %v371 = vld [vmem:[%s1 + $0xa60] sm:$0xff]
  %v372 = vld [vmem:[%s1 + $0xa68] sm:$0xff]
  %v373 = vld [vmem:[%s1 + $0xa70] sm:$0xff]
  %v374 = vld [vmem:[%s1 + $0xa78] sm:$0xff]
  %v375 = vld [vmem:[%s1 + $0xa80] sm:$0xff]
  %v376 = vld [vmem:[%s1 + $0xa88] sm:$0xff]
  %v377 = vld [vmem:[%s1 + $0xa90] sm:$0xff]
  %v378 = vld [vmem:[%s1 + $0xa98] sm:$0xff]
  %v379 = vld [vmem:[%s1 + $0xaa0] sm:$0xff]
  %v380 = vld [vmem:[%s1 + $0xaa8] sm:$0xff]
  %v381 = vld [vmem:[%s1 + $0xab0] sm:$0xff]
  %v382 = vld [vmem:[%s1 + $0xab8] sm:$0xff]
  %v383 = vld [vmem:[%s1 + $0xac0] sm:$0xff]
  %v384 = vld [vmem:[%s1 + $0xac8] sm:$0xff]
  %v385 = vld [vmem:[%s1 + $0xad0] sm:$0xff]
  %v386 = vld [vmem:[%s1 + $0xad8] sm:$0xff]
  %v387 = vld [vmem:[%s1 + $0xae0] sm:$0xff]
  %v388 = vld [vmem:[%s1 + $0xae8] sm:$0xff]
  %v389 = vld [vmem:[%s1 + $0xaf0] sm:$0xff]
  %v390 = vld [vmem:[%s1 + $0xaf8] sm:$0xff]
  %v391 = vld [vmem:[%s1 + $0xb00] sm:$0xff]
  %v392 = vld [vmem:[%s1 + $0xb08] sm:$0xff]
  %v393 = vld [vmem:[%s1 + $0xb10] sm:$0xff]
  %v394 = vld [vmem:[%s1 + $0xb18] sm:$0xff]
  %v395 = vld [vmem:[%s1 + $0xb20] sm:$0xff]
  %v396 = vld [vmem:[%s1 + $0xb28] sm:$0xff]
  %v397 = vld [vmem:[%s1 + $0xb30] sm:$0xff]
  %v398 = vld [vmem:[%s1 + $0xb38] sm:$0xff]
  %v399 = vld [vmem:[%s1 + $0xb40] sm:$0xff]
  %v400 = vld [vmem:[%s1 + $0xb48] sm:$0xff]
  %v401 = vld [vmem:[%s1 + $0xb50] sm:$0xff]
  %v402 = vld [vmem:[%s1 + $0xb58] sm:$0xff]
  %v403 = vld [vmem:[%s1 + $0xb60] sm:$0xff]
  %v404 = vld [vmem:[%s1 + $0xb68] sm:$0xff]
  %v405 = vld [vmem:[%s1 + $0xb70] sm:$0xff]
  %v406 = vld [vmem:[%s1 + $0xb78] sm:$0xff]
  %v407 = vld [vmem:[%s1 + $0xb80] sm:$0xff]
  %v408 = vld [vmem:[%s1 + $0xb88] sm:$0xff]
  %v409 = vld [vmem:[%s1 + $0xb90] sm:$0xff]
  %v410 = vld [vmem:[%s1 + $0xb98] sm:$0xff]
  %v411 = vld [vmem:[%s1 + $0xba0] sm:$0xff]
  %v412 = vld [vmem:[%s1 + $0xba8] sm:$0xff]
  %v413 = vld [vmem:[%s1 + $0xbb0] sm:$0xff]
  %v414 = vld [vmem:[%s1 + $0xbb8] sm:$0xff]
  %v415 = vld [vmem:[%s1 + $0xbc0] sm:$0xff]
  %v416 = vld [vmem:[%s1 + $0xbc8] sm:$0xff]
  %v417 = vld [vmem:[%s1 + $0xbd0] sm:$0xff]
  %v418 = vld [vmem:[%s1 + $0xbd8] sm:$0xff]
  %v419 = vld [vmem:[%s1 + $0xbe0] sm:$0xff]
  %v420 = vld [vmem:[%s1 + $0xbe8] sm:$0xff]
  %v421 = vld [vmem:[%s1 + $0xbf0] sm:$0xff]
  %v422 = vld [vmem:[%s1 + $0xbf8] sm:$0xff]
  %v423 = vld [vmem:[%s1 + $0xc00] sm:$0xff]
  %v424 = vld [vmem:[%s1 + $0xc08] sm:$0xff]
  %v425 = vld [vmem:[%s1 + $0xc10] sm:$0xff]
  %v426 = vld [vmem:[%s1 + $0xc18] sm:$0xff]
  %v427 = vld [vmem:[%s1 + $0xc20] sm:$0xff]
  %v428 = vld [vmem:[%s1 + $0xc28] sm:$0xff]
  %v429 = vld [vmem:[%s1 + $0xc30] sm:$0xff]
  %v430 = vld [vmem:[%s1 + $0xc38] sm:$0xff]
  %v431 = vld [vmem:[%s2] sm:$0xf]
  %v433 = vlaneseq
  %v434 = vshrl.u32 %v433, 7
  %v435 = vsub.s32 0, %v434
  %v436 = vrot.slane %v431, %v435
  %v437 = vlaneseq
  %v438 = vshrl.u32 %v437, 7
  %v439 = vsub.s32 1, %v438
  %v440 = vrot.slane %v431, %v439
  %v441 = vlaneseq
  %v442 = vshrl.u32 %v441, 7
  %v443 = vsub.s32 2, %v442
  %v444 = vrot.slane %v431, %v443
  %v445 = vlaneseq
  %v446 = vshrl.u32 %v445, 7
  %v447 = vsub.s32 3, %v446
  %v448 = vrot.slane %v431, %v447
  %v467 = vunpack.c.l.b16 %v25
  %v468 = vunpack.c.h.b16 %v25
  %v469 = vunpack.c.l.b16 %v26
  %v470 = vunpack.c.h.b16 %v26
  %v471 = vunpack.c.l.b16 %v27
  %v472 = vunpack.c.h.b16 %v27
  %v473 = vunpack.c.l.b16 %v28
  %v474 = vunpack.c.h.b16 %v28
  %v475 = vunpack.c.l.b16 %v29
  %v476 = vunpack.c.h.b16 %v29
  %v477 = vunpack.c.l.b16 %v30
  %v478 = vunpack.c.h.b16 %v30
  %v479 = vunpack.c.l.b16 %v31
  %v480 = vunpack.c.l.b16 %v32
  %v481 = vunpack.c.h.b16 %v32
  %v482 = vunpack.c.l.b16 %v33
  %v483 = vunpack.c.h.b16 %v33
  %v484 = vunpack.c.l.b16 %v34
  %v485 = vunpack.c.h.b16 %v34
  %v486 = vunpack.c.l.b16 %v35
  %v487 = vunpack.c.h.b16 %v35
  %v488 = vunpack.c.l.b16 %v36
  %v489 = vunpack.c.h.b16 %v36
  %v490 = vunpack.c.l.b16 %v37
  %v491 = vunpack.c.h.b16 %v37
  %v492 = vunpack.c.l.b16 %v38
  %v493 = vpack.c.b16 %v480, %v467
  %v494 = vpack.c.b16 %v481, %v468
  %v495 = vpack.c.b16 %v482, %v469
  %v496 = vpack.c.b16 %v483, %v470
  %v497 = vpack.c.b16 %v484, %v471
  %v498 = vpack.c.b16 %v485, %v472
  %v499 = vpack.c.b16 %v486, %v473
  %v500 = vpack.c.b16 %v487, %v474
  %v501 = vpack.c.b16 %v488, %v475
  %v502 = vpack.c.b16 %v489, %v476
  %v503 = vpack.c.b16 %v490, %v477
  %v504 = vpack.c.b16 %v491, %v478
  %v505 = vpack.c.b16 %v492, %v479
  %v910 = vunpack.c.l.b16 %v39
  %v911 = vunpack.c.h.b16 %v39
  %v912 = vunpack.c.l.b16 %v40
  %v913 = vunpack.c.h.b16 %v40
  %v914 = vunpack.c.l.b16 %v41
  %v915 = vunpack.c.h.b16 %v41
  %v916 = vunpack.c.l.b16 %v42
  %v917 = vunpack.c.h.b16 %v42
  %v918 = vunpack.c.l.b16 %v43
  %v919 = vunpack.c.h.b16 %v43
  %v920 = vunpack.c.l.b16 %v44
  %v921 = vunpack.c.h.b16 %v44
  %v922 = vunpack.c.l.b16 %v45
  %v923 = vunpack.c.h.b16 %v45
  %v924 = vunpack.c.l.b16 %v46
  %v925 = vunpack.c.h.b16 %v46
  %v926 = vunpack.c.l.b16 %v47
  %v927 = vunpack.c.h.b16 %v47
  %v928 = vunpack.c.l.b16 %v48
  %v929 = vunpack.c.h.b16 %v48
  %v930 = vunpack.c.l.b16 %v49
  %v931 = vunpack.c.h.b16 %v49
  %v932 = vunpack.c.l.b16 %v50
  %v933 = vunpack.c.h.b16 %v50
  %v934 = vunpack.c.l.b16 %v51
  %v935 = vunpack.c.h.b16 %v51
  %v936 = vunpack.c.l.b16 %v52
  %v937 = vunpack.c.h.b16 %v52
  %v938 = vunpack.c.l.b16 %v53
  %v939 = vunpack.c.h.b16 %v53
  %v940 = vunpack.c.l.b16 %v54
  %v941 = vunpack.c.h.b16 %v54
  %v942 = vunpack.c.l.b16 %v55
  %v943 = vunpack.c.h.b16 %v55
  %v944 = vunpack.c.l.b16 %v56
  %v945 = vunpack.c.h.b16 %v56
  %v946 = vunpack.c.l.b16 %v57
  %v947 = vunpack.c.h.b16 %v57
  %v948 = vunpack.c.l.b16 %v58
  %v949 = vunpack.c.h.b16 %v58
  %v950 = vunpack.c.l.b16 %v59
  %v951 = vunpack.c.h.b16 %v59
  %v952 = vunpack.c.l.b16 %v60
  %v953 = vunpack.c.h.b16 %v60
  %v954 = vunpack.c.l.b16 %v61
  %v955 = vunpack.c.h.b16 %v61
  %v956 = vunpack.c.l.b16 %v62
  %v957 = vunpack.c.h.b16 %v62
  %v958 = vunpack.c.l.b16 %v63
  %v959 = vunpack.c.h.b16 %v63
  %v960 = vunpack.c.l.b16 %v64
  %v961 = vunpack.c.h.b16 %v64
  %v962 = vunpack.c.l.b16 %v65
  %v963 = vunpack.c.h.b16 %v65
  %v964 = vunpack.c.l.b16 %v66
  %v965 = vunpack.c.h.b16 %v66
  %v966 = vunpack.c.l.b16 %v67
  %v967 = vunpack.c.h.b16 %v67
  %v968 = vunpack.c.l.b16 %v68
  %v969 = vunpack.c.h.b16 %v68
  %v970 = vunpack.c.l.b16 %v69
  %v971 = vunpack.c.h.b16 %v69
  %v972 = vunpack.c.l.b16 %v70
  %v973 = vunpack.c.h.b16 %v70
  %v974 = vunpack.c.l.b16 %v71
  %v975 = vunpack.c.h.b16 %v71
  %v976 = vunpack.c.l.b16 %v72
  %v977 = vunpack.c.h.b16 %v72
  %v978 = vunpack.c.l.b16 %v73
  %v979 = vunpack.c.h.b16 %v73
  %v980 = vunpack.c.l.b16 %v74
  %v981 = vunpack.c.h.b16 %v74
  %v982 = vunpack.c.l.b16 %v75
  %v983 = vunpack.c.h.b16 %v75
  %v984 = vunpack.c.l.b16 %v76
  %v985 = vunpack.c.h.b16 %v76
  %v986 = vunpack.c.l.b16 %v77
  %v987 = vunpack.c.h.b16 %v77
  %v988 = vunpack.c.l.b16 %v78
  %v989 = vunpack.c.h.b16 %v78
  %v990 = vunpack.c.l.b16 %v79
  %v991 = vunpack.c.h.b16 %v79
  %v992 = vunpack.c.l.b16 %v80
  %v993 = vunpack.c.h.b16 %v80
  %v994 = vunpack.c.l.b16 %v81
  %v995 = vunpack.c.h.b16 %v81
  %v996 = vunpack.c.l.b16 %v82
  %v997 = vunpack.c.h.b16 %v82
  %v998 = vunpack.c.l.b16 %v83
  %v999 = vunpack.c.h.b16 %v83
  %v1000 = vunpack.c.l.b16 %v84
  %v1001 = vunpack.c.h.b16 %v84
  %v1002 = vunpack.c.l.b16 %v85
  %v1003 = vunpack.c.h.b16 %v85
  %v1004 = vunpack.c.l.b16 %v86
  %v1005 = vunpack.c.h.b16 %v86
  %v1006 = vunpack.c.l.b16 %v87
  %v1007 = vunpack.c.h.b16 %v87
  %v1008 = vunpack.c.l.b16 %v88
  %v1009 = vunpack.c.h.b16 %v88
  %v1010 = vunpack.c.l.b16 %v89
  %v1011 = vunpack.c.h.b16 %v89
  %v1012 = vunpack.c.l.b16 %v90
  %v1013 = vunpack.c.h.b16 %v90
  %v1014 = vunpack.c.l.b16 %v91
  %v1015 = vunpack.c.h.b16 %v91
  %v1016 = vunpack.c.l.b16 %v92
  %v1017 = vunpack.c.h.b16 %v92
  %v1018 = vunpack.c.l.b16 %v93
  %v1019 = vunpack.c.h.b16 %v93
  %v1020 = vunpack.c.l.b16 %v94
  %v1021 = vunpack.c.h.b16 %v94
  %v1022 = vunpack.c.l.b16 %v95
  %v1023 = vunpack.c.h.b16 %v95
  %v1024 = vunpack.c.l.b16 %v96
  %v1025 = vunpack.c.h.b16 %v96
  %v1026 = vunpack.c.l.b16 %v97
  %v1027 = vunpack.c.h.b16 %v97
  %v1028 = vunpack.c.l.b16 %v98
  %v1029 = vunpack.c.h.b16 %v98
  %v1030 = vunpack.c.l.b16 %v99
  %v1031 = vunpack.c.h.b16 %v99
  %v1032 = vunpack.c.l.b16 %v100
  %v1033 = vunpack.c.h.b16 %v100
  %v1034 = vunpack.c.l.b16 %v101
  %v1035 = vunpack.c.h.b16 %v101
  %v1036 = vunpack.c.l.b16 %v102
  %v1037 = vunpack.c.h.b16 %v102
  %v1038 = vunpack.c.l.b16 %v103
  %v1039 = vunpack.c.h.b16 %v103
  %v1040 = vunpack.c.l.b16 %v104
  %v1041 = vunpack.c.h.b16 %v104
  %v1042 = vunpack.c.l.b16 %v105
  %v1043 = vunpack.c.h.b16 %v105
  %v1044 = vunpack.c.l.b16 %v106
  %v1045 = vunpack.c.h.b16 %v106
  %v1046 = vunpack.c.l.b16 %v107
  %v1047 = vunpack.c.h.b16 %v107
  %v1048 = vunpack.c.l.b16 %v108
  %v1049 = vunpack.c.h.b16 %v108
  %v1050 = vunpack.c.l.b16 %v109
  %v1051 = vunpack.c.h.b16 %v109
  %v1052 = vunpack.c.l.b16 %v110
  %v1053 = vunpack.c.h.b16 %v110
  %v1054 = vunpack.c.l.b16 %v111
  %v1055 = vunpack.c.h.b16 %v111
  %v1056 = vunpack.c.l.b16 %v112
  %v1057 = vunpack.c.h.b16 %v112
  %v1058 = vunpack.c.l.b16 %v113
  %v1059 = vunpack.c.h.b16 %v113
  %v1060 = vunpack.c.l.b16 %v114
  %v1061 = vunpack.c.h.b16 %v114
  %v1062 = vunpack.c.l.b16 %v115
  %v1063 = vunpack.c.h.b16 %v115
  %v1064 = vunpack.c.l.b16 %v116
  %v1065 = vunpack.c.h.b16 %v116
  %v1066 = vunpack.c.l.b16 %v117
  %v1067 = vunpack.c.h.b16 %v117
  %v1068 = vunpack.c.l.b16 %v118
  %v1069 = vunpack.c.h.b16 %v118
  %v1070 = vunpack.c.l.b16 %v119
  %v1071 = vunpack.c.h.b16 %v119
  %v1072 = vunpack.c.l.b16 %v120
  %v1073 = vunpack.c.h.b16 %v120
  %v1074 = vunpack.c.l.b16 %v121
  %v1075 = vunpack.c.h.b16 %v121
  %v1076 = vunpack.c.l.b16 %v122
  %v1077 = vunpack.c.h.b16 %v122
  %v1078 = vunpack.c.l.b16 %v123
  %v1079 = vunpack.c.h.b16 %v123
  %v1080 = vunpack.c.l.b16 %v124
  %v1081 = vunpack.c.h.b16 %v124
  %v1082 = vunpack.c.l.b16 %v125
  %v1083 = vunpack.c.h.b16 %v125
  %v1084 = vunpack.c.l.b16 %v126
  %v1085 = vunpack.c.h.b16 %v126
  %v1086 = vunpack.c.l.b16 %v127
  %v1087 = vunpack.c.h.b16 %v127
  %v1088 = vunpack.c.l.b16 %v128
  %v1089 = vunpack.c.h.b16 %v128
  %v1090 = vunpack.c.l.b16 %v129
  %v1091 = vunpack.c.h.b16 %v129
  %v1092 = vunpack.c.l.b16 %v130
  %v1093 = vunpack.c.h.b16 %v130
  %v1094 = vunpack.c.l.b16 %v131
  %v1095 = vunpack.c.h.b16 %v131
  %v1096 = vunpack.c.l.b16 %v132
  %v1097 = vunpack.c.h.b16 %v132
  %v1098 = vunpack.c.l.b16 %v133
  %v1099 = vunpack.c.h.b16 %v133
  %v1100 = vunpack.c.l.b16 %v134
  %v1101 = vunpack.c.h.b16 %v134
  %v1102 = vunpack.c.l.b16 %v135
  %v1103 = vunpack.c.h.b16 %v135
  %v1104 = vunpack.c.l.b16 %v136
  %v1105 = vunpack.c.h.b16 %v136
  %v1106 = vunpack.c.l.b16 %v137
  %v1107 = vunpack.c.h.b16 %v137
  %v1108 = vunpack.c.l.b16 %v138
  %v1109 = vunpack.c.h.b16 %v138
  %v1110 = vunpack.c.l.b16 %v139
  %v1111 = vunpack.c.h.b16 %v139
  %v1112 = vunpack.c.l.b16 %v140
  %v1113 = vunpack.c.h.b16 %v140
  %v1114 = vunpack.c.l.b16 %v141
  %v1115 = vunpack.c.h.b16 %v141
  %v1116 = vunpack.c.l.b16 %v142
  %v1117 = vunpack.c.h.b16 %v142
  %v1118 = vunpack.c.l.b16 %v143
  %v1119 = vunpack.c.h.b16 %v143
  %v1120 = vunpack.c.l.b16 %v144
  %v1121 = vunpack.c.h.b16 %v144
  %v1122 = vunpack.c.l.b16 %v145
  %v1123 = vunpack.c.h.b16 %v145
  %v1124 = vunpack.c.l.b16 %v146
  %v1125 = vunpack.c.h.b16 %v146
  %v1126 = vunpack.c.l.b16 %v147
  %v1127 = vunpack.c.h.b16 %v147
  %v1128 = vunpack.c.l.b16 %v148
  %v1129 = vunpack.c.h.b16 %v148
  %v1130 = vunpack.c.l.b16 %v149
  %v1131 = vunpack.c.h.b16 %v149
  %v1132 = vunpack.c.l.b16 %v150
  %v1133 = vunpack.c.h.b16 %v150
  %v1134 = vunpack.c.l.b16 %v151
  %v1135 = vunpack.c.h.b16 %v151
  %v1136 = vunpack.c.l.b16 %v152
  %v1137 = vunpack.c.h.b16 %v152
  %v1138 = vunpack.c.l.b16 %v153
  %v1139 = vunpack.c.h.b16 %v153
  %v1140 = vunpack.c.l.b16 %v154
  %v1141 = vunpack.c.h.b16 %v154
  %v1142 = vunpack.c.l.b16 %v155
  %v1143 = vunpack.c.h.b16 %v155
  %v1144 = vunpack.c.l.b16 %v156
  %v1145 = vunpack.c.h.b16 %v156
  %v1146 = vunpack.c.l.b16 %v157
  %v1147 = vunpack.c.h.b16 %v157
  %v1148 = vunpack.c.l.b16 %v158
  %v1149 = vunpack.c.h.b16 %v158
  %v1150 = vunpack.c.l.b16 %v159
  %v1151 = vunpack.c.h.b16 %v159
  %v1152 = vunpack.c.l.b16 %v160
  %v1153 = vunpack.c.h.b16 %v160
  %v1154 = vunpack.c.l.b16 %v161
  %v1155 = vunpack.c.h.b16 %v161
  %v1156 = vunpack.c.l.b16 %v162
  %v1157 = vunpack.c.h.b16 %v162
  %v1158 = vunpack.c.l.b16 %v163
  %v1159 = vunpack.c.h.b16 %v163
  %v1160 = vunpack.c.l.b16 %v164
  %v1161 = vunpack.c.h.b16 %v164
  %v1162 = vunpack.c.l.b16 %v165
  %v1163 = vunpack.c.h.b16 %v165
  %v1164 = vunpack.c.l.b16 %v166
  %v1165 = vunpack.c.h.b16 %v166
  %v1166 = vunpack.c.l.b16 %v167
  %v1167 = vunpack.c.h.b16 %v167
  %v1168 = vunpack.c.l.b16 %v168
  %v1169 = vunpack.c.h.b16 %v168
  %v1170 = vunpack.c.l.b16 %v169
  %v1171 = vunpack.c.h.b16 %v169
  %v1172 = vunpack.c.l.b16 %v170
  %v1173 = vunpack.c.h.b16 %v170
  %v1174 = vunpack.c.l.b16 %v171
  %v1175 = vunpack.c.h.b16 %v171
  %v1176 = vunpack.c.l.b16 %v172
  %v1177 = vunpack.c.h.b16 %v172
  %v1178 = vunpack.c.l.b16 %v173
  %v1179 = vunpack.c.h.b16 %v173
  %v1180 = vunpack.c.l.b16 %v174
  %v1181 = vunpack.c.h.b16 %v174
  %v1182 = vunpack.c.l.b16 %v175
  %v1183 = vunpack.c.h.b16 %v175
  %v1184 = vunpack.c.l.b16 %v176
  %v1185 = vunpack.c.h.b16 %v176
  %v1186 = vunpack.c.l.b16 %v177
  %v1187 = vunpack.c.h.b16 %v177
  %v1188 = vunpack.c.l.b16 %v178
  %v1189 = vunpack.c.h.b16 %v178
  %v1190 = vunpack.c.l.b16 %v179
  %v1191 = vunpack.c.h.b16 %v179
  %v1192 = vunpack.c.l.b16 %v180
  %v1193 = vunpack.c.h.b16 %v180
  %v1194 = vunpack.c.l.b16 %v181
  %v1195 = vunpack.c.h.b16 %v181
  %v1196 = vunpack.c.l.b16 %v182
  %v1197 = vunpack.c.h.b16 %v182
  %v1198 = vunpack.c.l.b16 %v183
  %v1199 = vunpack.c.h.b16 %v183
  %v1200 = vunpack.c.l.b16 %v184
  %v1201 = vunpack.c.h.b16 %v184
  %v1202 = vunpack.c.l.b16 %v185
  %v1203 = vunpack.c.h.b16 %v185
  %v1204 = vunpack.c.l.b16 %v186
  %v1205 = vunpack.c.h.b16 %v186
  %v1206 = vunpack.c.l.b16 %v187
  %v1207 = vunpack.c.h.b16 %v187
  %v1208 = vunpack.c.l.b16 %v188
  %v1209 = vunpack.c.h.b16 %v188
  %v1210 = vunpack.c.l.b16 %v189
  %v1211 = vunpack.c.h.b16 %v189
  %v1212 = vunpack.c.l.b16 %v190
  %v1213 = vunpack.c.h.b16 %v190
  %v1214 = vunpack.c.l.b16 %v191
  %v1215 = vunpack.c.h.b16 %v191
  %v1216 = vunpack.c.l.b16 %v192
  %v1217 = vunpack.c.h.b16 %v192
  %v1218 = vunpack.c.l.b16 %v193
  %v1219 = vunpack.c.h.b16 %v193
  %v1220 = vunpack.c.l.b16 %v194
  %v1221 = vunpack.c.h.b16 %v194
  %v1222 = vunpack.c.l.b16 %v195
  %v1223 = vunpack.c.h.b16 %v195
  %v1224 = vunpack.c.l.b16 %v196
  %v1225 = vunpack.c.h.b16 %v196
  %v1226 = vunpack.c.l.b16 %v197
  %v1227 = vunpack.c.h.b16 %v197
  %v1228 = vunpack.c.l.b16 %v198
  %v1229 = vunpack.c.h.b16 %v198
  %v1230 = vunpack.c.l.b16 %v199
  %v1231 = vunpack.c.h.b16 %v199
  %v1232 = vunpack.c.l.b16 %v200
  %v1233 = vunpack.c.h.b16 %v200
  %v1234 = vunpack.c.l.b16 %v201
  %v1235 = vunpack.c.h.b16 %v201
  %v1236 = vunpack.c.l.b16 %v202
  %v1237 = vunpack.c.h.b16 %v202
  %v1238 = vunpack.c.l.b16 %v203
  %v1239 = vunpack.c.h.b16 %v203
  %v1240 = vunpack.c.l.b16 %v204
  %v1241 = vunpack.c.h.b16 %v204
  %v1242 = vunpack.c.l.b16 %v205
  %v1243 = vunpack.c.h.b16 %v205
  %v1244 = vunpack.c.l.b16 %v206
  %v1245 = vunpack.c.h.b16 %v206
  %v1246 = vunpack.c.l.b16 %v207
  %v1247 = vunpack.c.h.b16 %v207
  %v1248 = vunpack.c.l.b16 %v208
  %v1249 = vunpack.c.h.b16 %v208
  %v1250 = vunpack.c.l.b16 %v209
  %v1251 = vunpack.c.h.b16 %v209
  %v1252 = vunpack.c.l.b16 %v210
  %v1253 = vunpack.c.h.b16 %v210
  %v1254 = vunpack.c.l.b16 %v211
  %v1255 = vunpack.c.h.b16 %v211
  %v1256 = vunpack.c.l.b16 %v212
  %v1257 = vunpack.c.h.b16 %v212
  %v1258 = vunpack.c.l.b16 %v213
  %v1259 = vunpack.c.h.b16 %v213
  %v1260 = vunpack.c.l.b16 %v214
  %v1261 = vunpack.c.h.b16 %v214
  %v1262 = vunpack.c.l.b16 %v215
  %v1263 = vunpack.c.h.b16 %v215
  %v1264 = vunpack.c.l.b16 %v216
  %v1265 = vunpack.c.h.b16 %v216
  %v1266 = vunpack.c.l.b16 %v217
  %v1267 = vunpack.c.h.b16 %v217
  %v1268 = vunpack.c.l.b16 %v218
  %v1269 = vunpack.c.h.b16 %v218
  %v1270 = vunpack.c.l.b16 %v219
  %v1271 = vunpack.c.h.b16 %v219
  %v1272 = vunpack.c.l.b16 %v220
  %v1273 = vunpack.c.h.b16 %v220
  %v1274 = vunpack.c.l.b16 %v221
  %v1275 = vunpack.c.h.b16 %v221
  %v1276 = vunpack.c.l.b16 %v222
  %v1277 = vunpack.c.h.b16 %v222
  %v1278 = vunpack.c.l.b16 %v223
  %v1279 = vunpack.c.h.b16 %v223
  %v1280 = vunpack.c.l.b16 %v224
  %v1281 = vunpack.c.h.b16 %v224
  %v1282 = vunpack.c.l.b16 %v225
  %v1283 = vunpack.c.h.b16 %v225
  %v1284 = vunpack.c.l.b16 %v226
  %v1285 = vunpack.c.h.b16 %v226
  %v1286 = vunpack.c.l.b16 %v227
  %v1287 = vunpack.c.h.b16 %v227
  %v1288 = vunpack.c.l.b16 %v228
  %v1289 = vunpack.c.h.b16 %v228
  %v1290 = vunpack.c.l.b16 %v229
  %v1291 = vunpack.c.h.b16 %v229
  %v1292 = vunpack.c.l.b16 %v230
  %v1293 = vunpack.c.h.b16 %v230
  %v1294 = vunpack.c.l.b16 %v231
  %v1295 = vunpack.c.h.b16 %v231
  %v1296 = vunpack.c.l.b16 %v232
  %v1297 = vunpack.c.h.b16 %v232
  %v1298 = vunpack.c.l.b16 %v233
  %v1299 = vunpack.c.h.b16 %v233
  %v1300 = vunpack.c.l.b16 %v234
  %v1301 = vunpack.c.h.b16 %v234
  %v1302 = vunpack.c.l.b16 %v235
  %v1303 = vunpack.c.h.b16 %v235
  %v1304 = vunpack.c.l.b16 %v236
  %v1305 = vunpack.c.h.b16 %v236
  %v1306 = vunpack.c.l.b16 %v237
  %v1307 = vunpack.c.h.b16 %v237
  %v1308 = vunpack.c.l.b16 %v238
  %v1309 = vunpack.c.h.b16 %v238
  %v1310 = vunpack.c.l.b16 %v239
  %v1311 = vunpack.c.h.b16 %v239
  %v1312 = vunpack.c.l.b16 %v240
  %v1313 = vunpack.c.h.b16 %v240
  %v1314 = vunpack.c.l.b16 %v241
  %v1315 = vunpack.c.h.b16 %v241
  %v1316 = vunpack.c.l.b16 %v242
  %v1317 = vunpack.c.h.b16 %v242
  %v1318 = vunpack.c.l.b16 %v243
  %v1319 = vunpack.c.h.b16 %v243
  %v1320 = vunpack.c.l.b16 %v244
  %v1321 = vunpack.c.h.b16 %v244
  %v1322 = vunpack.c.l.b16 %v245
  %v1323 = vunpack.c.h.b16 %v245
  %v1324 = vunpack.c.l.b16 %v246
  %v1325 = vunpack.c.h.b16 %v246
  %v1326 = vunpack.c.l.b16 %v247
  %v1327 = vunpack.c.h.b16 %v247
  %v1328 = vunpack.c.l.b16 %v248
  %v1329 = vunpack.c.h.b16 %v248
  %v1330 = vunpack.c.l.b16 %v249
  %v1331 = vunpack.c.h.b16 %v249
  %v1332 = vunpack.c.l.b16 %v250
  %v1333 = vunpack.c.h.b16 %v250
  %v1334 = vunpack.c.l.b16 %v251
  %v1335 = vunpack.c.h.b16 %v251
  %v1336 = vunpack.c.l.b16 %v252
  %v1337 = vunpack.c.h.b16 %v252
  %v1338 = vunpack.c.l.b16 %v253
  %v1339 = vunpack.c.h.b16 %v253
  %v1340 = vunpack.c.l.b16 %v254
  %v1341 = vunpack.c.h.b16 %v254
  %v1342 = vunpack.c.l.b16 %v255
  %v1343 = vunpack.c.h.b16 %v255
  %v1344 = vunpack.c.l.b16 %v256
  %v1345 = vunpack.c.h.b16 %v256
  %v1346 = vunpack.c.l.b16 %v257
  %v1347 = vunpack.c.h.b16 %v257
  %v1348 = vunpack.c.l.b16 %v258
  %v1349 = vunpack.c.h.b16 %v258
  %v1350 = vunpack.c.l.b16 %v259
  %v1351 = vunpack.c.h.b16 %v259
  %v1352 = vunpack.c.l.b16 %v260
  %v1353 = vunpack.c.h.b16 %v260
  %v1354 = vunpack.c.l.b16 %v261
  %v1355 = vunpack.c.h.b16 %v261
  %v1356 = vunpack.c.l.b16 %v262
  %v1357 = vunpack.c.h.b16 %v262
  %v1358 = vunpack.c.l.b16 %v263
  %v1359 = vunpack.c.h.b16 %v263
  %v1360 = vunpack.c.l.b16 %v264
  %v1361 = vunpack.c.h.b16 %v264
  %v1362 = vunpack.c.l.b16 %v265
  %v1363 = vunpack.c.h.b16 %v265
  %v1364 = vunpack.c.l.b16 %v266
  %v1365 = vunpack.c.h.b16 %v266
  %v1366 = vunpack.c.l.b16 %v267
  %v1367 = vunpack.c.h.b16 %v267
  %v1368 = vunpack.c.l.b16 %v268
  %v1369 = vunpack.c.h.b16 %v268
  %v1370 = vunpack.c.l.b16 %v269
  %v1371 = vunpack.c.h.b16 %v269
  %v1372 = vunpack.c.l.b16 %v270
  %v1373 = vunpack.c.h.b16 %v270
  %v1374 = vunpack.c.l.b16 %v271
  %v1375 = vunpack.c.h.b16 %v271
  %v1376 = vunpack.c.l.b16 %v272
  %v1377 = vunpack.c.h.b16 %v272
  %v1378 = vunpack.c.l.b16 %v273
  %v1379 = vunpack.c.h.b16 %v273
  %v1380 = vunpack.c.l.b16 %v274
  %v1381 = vunpack.c.h.b16 %v274
  %v1382 = vunpack.c.l.b16 %v275
  %v1383 = vunpack.c.h.b16 %v275
  %v1384 = vunpack.c.l.b16 %v276
  %v1385 = vunpack.c.h.b16 %v276
  %v1386 = vunpack.c.l.b16 %v277
  %v1387 = vunpack.c.h.b16 %v277
  %v1388 = vunpack.c.l.b16 %v278
  %v1389 = vunpack.c.h.b16 %v278
  %v1390 = vunpack.c.l.b16 %v279
  %v1391 = vunpack.c.h.b16 %v279
  %v1392 = vunpack.c.l.b16 %v280
  %v1393 = vunpack.c.h.b16 %v280
  %v1394 = vunpack.c.l.b16 %v281
  %v1395 = vunpack.c.h.b16 %v281
  %v1396 = vunpack.c.l.b16 %v282
  %v1397 = vunpack.c.h.b16 %v282
  %v1398 = vunpack.c.l.b16 %v283
  %v1399 = vunpack.c.h.b16 %v283
  %v1400 = vunpack.c.l.b16 %v284
  %v1401 = vunpack.c.h.b16 %v284
  %v1402 = vunpack.c.l.b16 %v285
  %v1403 = vunpack.c.h.b16 %v285
  %v1404 = vunpack.c.l.b16 %v286
  %v1405 = vunpack.c.h.b16 %v286
  %v1406 = vunpack.c.l.b16 %v287
  %v1407 = vunpack.c.h.b16 %v287
  %v1408 = vunpack.c.l.b16 %v288
  %v1409 = vunpack.c.h.b16 %v288
  %v1410 = vunpack.c.l.b16 %v289
  %v1411 = vunpack.c.h.b16 %v289
  %v1412 = vunpack.c.l.b16 %v290
  %v1413 = vunpack.c.h.b16 %v290
  %v1414 = vunpack.c.l.b16 %v291
  %v1415 = vunpack.c.h.b16 %v291
  %v1416 = vunpack.c.l.b16 %v292
  %v1417 = vunpack.c.h.b16 %v292
  %v1418 = vunpack.c.l.b16 %v293
  %v1419 = vunpack.c.h.b16 %v293
  %v1420 = vunpack.c.l.b16 %v294
  %v1421 = vunpack.c.h.b16 %v294
  %v1422 = vunpack.c.l.b16 %v295
  %v1423 = vunpack.c.h.b16 %v295
  %v1424 = vunpack.c.l.b16 %v296
  %v1425 = vunpack.c.h.b16 %v296
  %v1426 = vunpack.c.l.b16 %v297
  %v1427 = vunpack.c.h.b16 %v297
  %v1428 = vunpack.c.l.b16 %v298
  %v1429 = vunpack.c.h.b16 %v298
  %v1430 = vunpack.c.l.b16 %v299
  %v1431 = vunpack.c.h.b16 %v299
  %v1432 = vunpack.c.l.b16 %v300
  %v1433 = vunpack.c.h.b16 %v300
  %v1434 = vunpack.c.l.b16 %v301
  %v1435 = vunpack.c.h.b16 %v301
  %v1436 = vunpack.c.l.b16 %v302
  %v1437 = vunpack.c.h.b16 %v302
  %v1438 = vunpack.c.l.b16 %v303
  %v1439 = vunpack.c.h.b16 %v303
  %v1440 = vunpack.c.l.b16 %v304
  %v1441 = vunpack.c.h.b16 %v304
  %v1442 = vunpack.c.l.b16 %v305
  %v1443 = vunpack.c.h.b16 %v305
  %v1444 = vunpack.c.l.b16 %v306
  %v1445 = vunpack.c.h.b16 %v306
  %v1446 = vunpack.c.l.b16 %v307
  %v1447 = vunpack.c.h.b16 %v307
  %v1448 = vunpack.c.l.b16 %v308
  %v1449 = vunpack.c.h.b16 %v308
  %v1450 = vunpack.c.l.b16 %v309
  %v1451 = vunpack.c.h.b16 %v309
  %v1452 = vunpack.c.l.b16 %v310
  %v1453 = vunpack.c.h.b16 %v310
  %v1454 = vunpack.c.l.b16 %v311
  %v1455 = vunpack.c.h.b16 %v311
  %v1456 = vunpack.c.l.b16 %v312
  %v1457 = vunpack.c.h.b16 %v312
  %v1458 = vunpack.c.l.b16 %v313
  %v1459 = vunpack.c.h.b16 %v313
  %v1460 = vunpack.c.l.b16 %v314
  %v1461 = vunpack.c.h.b16 %v314
  %v1462 = vunpack.c.l.b16 %v315
  %v1463 = vunpack.c.h.b16 %v315
  %v1464 = vunpack.c.l.b16 %v316
  %v1465 = vunpack.c.h.b16 %v316
  %v1466 = vunpack.c.l.b16 %v317
  %v1467 = vunpack.c.h.b16 %v317
  %v1468 = vunpack.c.l.b16 %v318
  %v1469 = vunpack.c.h.b16 %v318
  %v1470 = vunpack.c.l.b16 %v319
  %v1471 = vunpack.c.h.b16 %v319
  %v1472 = vunpack.c.l.b16 %v320
  %v1473 = vunpack.c.h.b16 %v320
  %v1474 = vunpack.c.l.b16 %v321
  %v1475 = vunpack.c.h.b16 %v321
  %v1476 = vunpack.c.l.b16 %v322
  %v1477 = vunpack.c.h.b16 %v322
  %v1478 = vunpack.c.l.b16 %v323
  %v1479 = vunpack.c.h.b16 %v323
  %v1480 = vunpack.c.l.b16 %v324
  %v1481 = vunpack.c.h.b16 %v324
  %v1482 = vunpack.c.l.b16 %v325
  %v1483 = vunpack.c.h.b16 %v325
  %v1484 = vunpack.c.l.b16 %v326
  %v1485 = vunpack.c.h.b16 %v326
  %v1486 = vunpack.c.l.b16 %v327
  %v1487 = vunpack.c.h.b16 %v327
  %v1488 = vunpack.c.l.b16 %v328
  %v1489 = vunpack.c.h.b16 %v328
  %v1490 = vunpack.c.l.b16 %v329
  %v1491 = vunpack.c.h.b16 %v329
  %v1492 = vunpack.c.l.b16 %v330
  %v1493 = vunpack.c.h.b16 %v330
  %v1494 = vunpack.c.l.b16 %v331
  %v1495 = vunpack.c.h.b16 %v331
  %v1496 = vunpack.c.l.b16 %v332
  %v1497 = vunpack.c.h.b16 %v332
  %v1498 = vunpack.c.l.b16 %v333
  %v1499 = vunpack.c.h.b16 %v333
  %v1500 = vunpack.c.l.b16 %v334
  %v1501 = vunpack.c.h.b16 %v334
  %v1502 = vunpack.c.l.b16 %v335
  %v1503 = vunpack.c.h.b16 %v335
  %v1504 = vunpack.c.l.b16 %v336
  %v1505 = vunpack.c.h.b16 %v336
  %v1506 = vunpack.c.l.b16 %v337
  %v1507 = vunpack.c.h.b16 %v337
  %v1508 = vunpack.c.l.b16 %v338
  %v1509 = vunpack.c.h.b16 %v338
  %v1510 = vunpack.c.l.b16 %v339
  %v1511 = vunpack.c.h.b16 %v339
  %v1512 = vunpack.c.l.b16 %v340
  %v1513 = vunpack.c.h.b16 %v340
  %v1514 = vunpack.c.l.b16 %v341
  %v1515 = vunpack.c.h.b16 %v341
  %v1516 = vunpack.c.l.b16 %v342
  %v1517 = vunpack.c.h.b16 %v342
  %v1518 = vunpack.c.l.b16 %v343
  %v1519 = vunpack.c.h.b16 %v343
  %v1520 = vunpack.c.l.b16 %v344
  %v1521 = vunpack.c.h.b16 %v344
  %v1522 = vunpack.c.l.b16 %v345
  %v1523 = vunpack.c.h.b16 %v345
  %v1524 = vunpack.c.l.b16 %v346
  %v1525 = vunpack.c.h.b16 %v346
  %v1526 = vunpack.c.l.b16 %v347
  %v1527 = vunpack.c.h.b16 %v347
  %v1528 = vunpack.c.l.b16 %v348
  %v1529 = vunpack.c.h.b16 %v348
  %v1530 = vunpack.c.l.b16 %v349
  %v1531 = vunpack.c.h.b16 %v349
  %v1532 = vunpack.c.l.b16 %v350
  %v1533 = vunpack.c.h.b16 %v350
  %v1534 = vunpack.c.l.b16 %v351
  %v1535 = vunpack.c.h.b16 %v351
  %v1536 = vunpack.c.l.b16 %v352
  %v1537 = vunpack.c.h.b16 %v352
  %v1538 = vunpack.c.l.b16 %v353
  %v1539 = vunpack.c.h.b16 %v353
  %v1540 = vunpack.c.l.b16 %v354
  %v1541 = vunpack.c.h.b16 %v354
  %v1542 = vunpack.c.l.b16 %v355
  %v1543 = vunpack.c.h.b16 %v355
  %v1544 = vunpack.c.l.b16 %v356
  %v1545 = vunpack.c.h.b16 %v356
  %v1546 = vunpack.c.l.b16 %v357
  %v1547 = vunpack.c.h.b16 %v357
  %v1548 = vunpack.c.l.b16 %v358
  %v1549 = vunpack.c.h.b16 %v358
  %v1550 = vunpack.c.l.b16 %v359
  %v1551 = vunpack.c.h.b16 %v359
  %v1552 = vunpack.c.l.b16 %v360
  %v1553 = vunpack.c.h.b16 %v360
  %v1554 = vunpack.c.l.b16 %v361
  %v1555 = vunpack.c.h.b16 %v361
  %v1556 = vunpack.c.l.b16 %v362
  %v1557 = vunpack.c.h.b16 %v362
  %v1558 = vunpack.c.l.b16 %v363
  %v1559 = vunpack.c.h.b16 %v363
  %v1560 = vunpack.c.l.b16 %v364
  %v1561 = vunpack.c.h.b16 %v364
  %v1562 = vunpack.c.l.b16 %v365
  %v1563 = vunpack.c.h.b16 %v365
  %v1564 = vunpack.c.l.b16 %v366
  %v1565 = vunpack.c.h.b16 %v366
  %v1566 = vunpack.c.l.b16 %v367
  %v1567 = vunpack.c.h.b16 %v367
  %v1568 = vunpack.c.l.b16 %v368
  %v1569 = vunpack.c.h.b16 %v368
  %v1570 = vunpack.c.l.b16 %v369
  %v1571 = vunpack.c.h.b16 %v369
  %v1572 = vunpack.c.l.b16 %v370
  %v1573 = vunpack.c.h.b16 %v370
  %v1574 = vunpack.c.l.b16 %v371
  %v1575 = vunpack.c.h.b16 %v371
  %v1576 = vunpack.c.l.b16 %v372
  %v1577 = vunpack.c.h.b16 %v372
  %v1578 = vunpack.c.l.b16 %v373
  %v1579 = vunpack.c.h.b16 %v373
  %v1580 = vunpack.c.l.b16 %v374
  %v1581 = vunpack.c.h.b16 %v374
  %v1582 = vunpack.c.l.b16 %v375
  %v1583 = vunpack.c.h.b16 %v375
  %v1584 = vunpack.c.l.b16 %v376
  %v1585 = vunpack.c.h.b16 %v376
  %v1586 = vunpack.c.l.b16 %v377
  %v1587 = vunpack.c.h.b16 %v377
  %v1588 = vunpack.c.l.b16 %v378
  %v1589 = vunpack.c.h.b16 %v378
  %v1590 = vunpack.c.l.b16 %v379
  %v1591 = vunpack.c.h.b16 %v379
  %v1592 = vunpack.c.l.b16 %v380
  %v1593 = vunpack.c.h.b16 %v380
  %v1594 = vunpack.c.l.b16 %v381
  %v1595 = vunpack.c.h.b16 %v381
  %v1596 = vunpack.c.l.b16 %v382
  %v1597 = vunpack.c.h.b16 %v382
  %v1598 = vunpack.c.l.b16 %v383
  %v1599 = vunpack.c.h.b16 %v383
  %v1600 = vunpack.c.l.b16 %v384
  %v1601 = vunpack.c.h.b16 %v384
  %v1602 = vunpack.c.l.b16 %v385
  %v1603 = vunpack.c.h.b16 %v385
  %v1604 = vunpack.c.l.b16 %v386
  %v1605 = vunpack.c.h.b16 %v386
  %v1606 = vunpack.c.l.b16 %v387
  %v1607 = vunpack.c.h.b16 %v387
  %v1608 = vunpack.c.l.b16 %v388
  %v1609 = vunpack.c.h.b16 %v388
  %v1610 = vunpack.c.l.b16 %v389
  %v1611 = vunpack.c.h.b16 %v389
  %v1612 = vunpack.c.l.b16 %v390
  %v1613 = vunpack.c.h.b16 %v390
  %v1614 = vunpack.c.l.b16 %v391
  %v1615 = vunpack.c.h.b16 %v391
  %v1616 = vunpack.c.l.b16 %v392
  %v1617 = vunpack.c.h.b16 %v392
  %v1618 = vunpack.c.l.b16 %v393
  %v1619 = vunpack.c.h.b16 %v393
  %v1620 = vunpack.c.l.b16 %v394
  %v1621 = vunpack.c.h.b16 %v394
  %v1622 = vunpack.c.l.b16 %v395
  %v1623 = vunpack.c.h.b16 %v395
  %v1624 = vunpack.c.l.b16 %v396
  %v1625 = vunpack.c.h.b16 %v396
  %v1626 = vunpack.c.l.b16 %v397
  %v1627 = vunpack.c.h.b16 %v397
  %v1628 = vunpack.c.l.b16 %v398
  %v1629 = vunpack.c.h.b16 %v398
  %v1630 = vunpack.c.l.b16 %v399
  %v1631 = vunpack.c.h.b16 %v399
  %v1632 = vunpack.c.l.b16 %v400
  %v1633 = vunpack.c.h.b16 %v400
  %v1634 = vunpack.c.l.b16 %v401
  %v1635 = vunpack.c.h.b16 %v401
  %v1636 = vunpack.c.l.b16 %v402
  %v1637 = vunpack.c.h.b16 %v402
  %v1638 = vunpack.c.l.b16 %v403
  %v1639 = vunpack.c.h.b16 %v403
  %v1640 = vunpack.c.l.b16 %v404
  %v1641 = vunpack.c.h.b16 %v404
  %v1642 = vunpack.c.l.b16 %v405
  %v1643 = vunpack.c.h.b16 %v405
  %v1644 = vunpack.c.l.b16 %v406
  %v1645 = vunpack.c.h.b16 %v406
  %v1646 = vunpack.c.l.b16 %v407
  %v1647 = vunpack.c.h.b16 %v407
  %v1648 = vunpack.c.l.b16 %v408
  %v1649 = vunpack.c.h.b16 %v408
  %v1650 = vunpack.c.l.b16 %v409
  %v1651 = vunpack.c.h.b16 %v409
  %v1652 = vunpack.c.l.b16 %v410
  %v1653 = vunpack.c.h.b16 %v410
  %v1654 = vunpack.c.l.b16 %v411
  %v1655 = vunpack.c.h.b16 %v411
  %v1656 = vunpack.c.l.b16 %v412
  %v1657 = vunpack.c.h.b16 %v412
  %v1658 = vunpack.c.l.b16 %v413
  %v1659 = vunpack.c.h.b16 %v413
  %v1660 = vunpack.c.l.b16 %v414
  %v1661 = vunpack.c.h.b16 %v414
  %v1662 = vunpack.c.l.b16 %v415
  %v1663 = vunpack.c.h.b16 %v415
  %v1664 = vunpack.c.l.b16 %v416
  %v1665 = vunpack.c.h.b16 %v416
  %v1666 = vunpack.c.l.b16 %v417
  %v1667 = vunpack.c.h.b16 %v417
  %v1668 = vunpack.c.l.b16 %v418
  %v1669 = vunpack.c.h.b16 %v418
  %v1670 = vunpack.c.l.b16 %v419
  %v1671 = vunpack.c.h.b16 %v419
  %v1672 = vunpack.c.l.b16 %v420
  %v1673 = vunpack.c.h.b16 %v420
  %v1674 = vunpack.c.l.b16 %v421
  %v1675 = vunpack.c.h.b16 %v421
  %v1676 = vunpack.c.l.b16 %v422
  %v1677 = vunpack.c.h.b16 %v422
  %v1678 = vunpack.c.l.b16 %v423
  %v1679 = vunpack.c.h.b16 %v423
  %v1680 = vunpack.c.l.b16 %v424
  %v1681 = vunpack.c.h.b16 %v424
  %v1682 = vunpack.c.l.b16 %v425
  %v1683 = vunpack.c.h.b16 %v425
  %v1684 = vunpack.c.l.b16 %v426
  %v1685 = vunpack.c.h.b16 %v426
  %v1686 = vunpack.c.l.b16 %v427
  %v1687 = vunpack.c.h.b16 %v427
  %v1688 = vunpack.c.l.b16 %v428
  %v1689 = vunpack.c.h.b16 %v428
  %v1690 = vunpack.c.l.b16 %v429
  %v1691 = vunpack.c.h.b16 %v429
  %v1692 = vunpack.c.l.b16 %v430
  %v1693 = vunpack.c.h.b16 %v430
  %v1694 = vpack.c.b16 %v914, %v910
  %v1695 = vpack.c.b16 %v915, %v911
  %v1696 = vpack.c.b16 %v916, %v912
  %v1697 = vpack.c.b16 %v917, %v913
  %v1698 = vpack.c.b16 %v922, %v918
  %v1699 = vpack.c.b16 %v923, %v919
  %v1700 = vpack.c.b16 %v924, %v920
  %v1701 = vpack.c.b16 %v925, %v921
  %v1702 = vpack.c.b16 %v930, %v926
  %v1703 = vpack.c.b16 %v931, %v927
  %v1704 = vpack.c.b16 %v932, %v928
  %v1705 = vpack.c.b16 %v933, %v929
  %v1706 = vpack.c.b16 %v938, %v934
  %v1707 = vpack.c.b16 %v939, %v935
  %v1708 = vpack.c.b16 %v940, %v936
  %v1709 = vpack.c.b16 %v941, %v937
  %v1710 = vpack.c.b16 %v946, %v942
  %v1711 = vpack.c.b16 %v947, %v943
  %v1712 = vpack.c.b16 %v948, %v944
  %v1713 = vpack.c.b16 %v949, %v945
  %v1714 = vpack.c.b16 %v954, %v950
  %v1715 = vpack.c.b16 %v955, %v951
  %v1716 = vpack.c.b16 %v956, %v952
  %v1717 = vpack.c.b16 %v957, %v953
  %v1718 = vpack.c.b16 %v962, %v958
  %v1719 = vpack.c.b16 %v963, %v959
  %v1720 = vpack.c.b16 %v964, %v960
  %v1721 = vpack.c.b16 %v965, %v961
  %v1722 = vpack.c.b16 %v970, %v966
  %v1723 = vpack.c.b16 %v971, %v967
  %v1724 = vpack.c.b16 %v972, %v968
  %v1725 = vpack.c.b16 %v973, %v969
  %v1726 = vpack.c.b16 %v978, %v974
  %v1727 = vpack.c.b16 %v979, %v975
  %v1728 = vpack.c.b16 %v980, %v976
  %v1729 = vpack.c.b16 %v981, %v977
  %v1730 = vpack.c.b16 %v986, %v982
  %v1731 = vpack.c.b16 %v987, %v983
  %v1732 = vpack.c.b16 %v988, %v984
  %v1733 = vpack.c.b16 %v989, %v985
  %v1734 = vpack.c.b16 %v994, %v990
  %v1735 = vpack.c.b16 %v995, %v991
  %v1736 = vpack.c.b16 %v996, %v992
  %v1737 = vpack.c.b16 %v997, %v993
  %v1738 = vpack.c.b16 %v1002, %v998
  %v1739 = vpack.c.b16 %v1003, %v999
  %v1740 = vpack.c.b16 %v1004, %v1000
  %v1741 = vpack.c.b16 %v1005, %v1001
  %v1742 = vpack.c.b16 %v1010, %v1006
  %v1743 = vpack.c.b16 %v1011, %v1007
  %v1744 = vpack.c.b16 %v1012, %v1008
  %v1745 = vpack.c.b16 %v1013, %v1009
  %v1746 = vpack.c.b16 %v1018, %v1014
  %v1747 = vpack.c.b16 %v1019, %v1015
  %v1748 = vpack.c.b16 %v1020, %v1016
  %v1749 = vpack.c.b16 %v1021, %v1017
  %v1750 = vpack.c.b16 %v1026, %v1022
  %v1751 = vpack.c.b16 %v1027, %v1023
  %v1752 = vpack.c.b16 %v1028, %v1024
  %v1753 = vpack.c.b16 %v1029, %v1025
  %v1754 = vpack.c.b16 %v1034, %v1030
  %v1755 = vpack.c.b16 %v1035, %v1031
  %v1756 = vpack.c.b16 %v1036, %v1032
  %v1757 = vpack.c.b16 %v1037, %v1033
  %v1758 = vpack.c.b16 %v1042, %v1038
  %v1759 = vpack.c.b16 %v1043, %v1039
  %v1760 = vpack.c.b16 %v1044, %v1040
  %v1761 = vpack.c.b16 %v1045, %v1041
  %v1762 = vpack.c.b16 %v1050, %v1046
  %v1763 = vpack.c.b16 %v1051, %v1047
  %v1764 = vpack.c.b16 %v1052, %v1048
  %v1765 = vpack.c.b16 %v1053, %v1049
  %v1766 = vpack.c.b16 %v1058, %v1054
  %v1767 = vpack.c.b16 %v1059, %v1055
  %v1768 = vpack.c.b16 %v1060, %v1056
  %v1769 = vpack.c.b16 %v1061, %v1057
  %v1770 = vpack.c.b16 %v1066, %v1062
  %v1771 = vpack.c.b16 %v1067, %v1063
  %v1772 = vpack.c.b16 %v1068, %v1064
  %v1773 = vpack.c.b16 %v1069, %v1065
  %v1774 = vpack.c.b16 %v1074, %v1070
  %v1775 = vpack.c.b16 %v1075, %v1071
  %v1776 = vpack.c.b16 %v1076, %v1072
  %v1777 = vpack.c.b16 %v1077, %v1073
  %v1778 = vpack.c.b16 %v1082, %v1078
  %v1779 = vpack.c.b16 %v1083, %v1079
  %v1780 = vpack.c.b16 %v1084, %v1080
  %v1781 = vpack.c.b16 %v1085, %v1081
  %v1782 = vpack.c.b16 %v1090, %v1086
  %v1783 = vpack.c.b16 %v1091, %v1087
  %v1784 = vpack.c.b16 %v1092, %v1088
  %v1785 = vpack.c.b16 %v1093, %v1089
  %v1786 = vpack.c.b16 %v1098, %v1094
  %v1787 = vpack.c.b16 %v1099, %v1095
  %v1788 = vpack.c.b16 %v1100, %v1096
  %v1789 = vpack.c.b16 %v1101, %v1097
  %v1790 = vpack.c.b16 %v1106, %v1102
  %v1791 = vpack.c.b16 %v1107, %v1103
  %v1792 = vpack.c.b16 %v1108, %v1104
  %v1793 = vpack.c.b16 %v1109, %v1105
  %v1794 = vpack.c.b16 %v1114, %v1110
  %v1795 = vpack.c.b16 %v1115, %v1111
  %v1796 = vpack.c.b16 %v1116, %v1112
  %v1797 = vpack.c.b16 %v1117, %v1113
  %v1798 = vpack.c.b16 %v1122, %v1118
  %v1799 = vpack.c.b16 %v1123, %v1119
  %v1800 = vpack.c.b16 %v1124, %v1120
  %v1801 = vpack.c.b16 %v1125, %v1121
  %v1802 = vpack.c.b16 %v1130, %v1126
  %v1803 = vpack.c.b16 %v1131, %v1127
  %v1804 = vpack.c.b16 %v1132, %v1128
  %v1805 = vpack.c.b16 %v1133, %v1129
  %v1806 = vpack.c.b16 %v1138, %v1134
  %v1807 = vpack.c.b16 %v1139, %v1135
  %v1808 = vpack.c.b16 %v1140, %v1136
  %v1809 = vpack.c.b16 %v1141, %v1137
  %v1810 = vpack.c.b16 %v1146, %v1142
  %v1811 = vpack.c.b16 %v1147, %v1143
  %v1812 = vpack.c.b16 %v1148, %v1144
  %v1813 = vpack.c.b16 %v1149, %v1145
  %v1814 = vpack.c.b16 %v1154, %v1150
  %v1815 = vpack.c.b16 %v1155, %v1151
  %v1816 = vpack.c.b16 %v1156, %v1152
  %v1817 = vpack.c.b16 %v1157, %v1153
  %v1818 = vpack.c.b16 %v1162, %v1158
  %v1819 = vpack.c.b16 %v1163, %v1159
  %v1820 = vpack.c.b16 %v1164, %v1160
  %v1821 = vpack.c.b16 %v1165, %v1161
  %v1822 = vpack.c.b16 %v1170, %v1166
  %v1823 = vpack.c.b16 %v1171, %v1167
  %v1824 = vpack.c.b16 %v1172, %v1168
  %v1825 = vpack.c.b16 %v1173, %v1169
  %v1826 = vpack.c.b16 %v1178, %v1174
  %v1827 = vpack.c.b16 %v1179, %v1175
  %v1828 = vpack.c.b16 %v1180, %v1176
  %v1829 = vpack.c.b16 %v1181, %v1177
  %v1830 = vpack.c.b16 %v1186, %v1182
  %v1831 = vpack.c.b16 %v1187, %v1183
  %v1832 = vpack.c.b16 %v1188, %v1184
  %v1833 = vpack.c.b16 %v1189, %v1185
  %v1834 = vpack.c.b16 %v1194, %v1190
  %v1835 = vpack.c.b16 %v1195, %v1191
  %v1836 = vpack.c.b16 %v1196, %v1192
  %v1837 = vpack.c.b16 %v1197, %v1193
  %v1838 = vpack.c.b16 %v1202, %v1198
  %v1839 = vpack.c.b16 %v1203, %v1199
  %v1840 = vpack.c.b16 %v1204, %v1200
  %v1841 = vpack.c.b16 %v1205, %v1201
  %v1842 = vpack.c.b16 %v1210, %v1206
  %v1843 = vpack.c.b16 %v1211, %v1207
  %v1844 = vpack.c.b16 %v1212, %v1208
  %v1845 = vpack.c.b16 %v1213, %v1209
  %v1846 = vpack.c.b16 %v1218, %v1214
  %v1847 = vpack.c.b16 %v1219, %v1215
  %v1848 = vpack.c.b16 %v1220, %v1216
  %v1849 = vpack.c.b16 %v1221, %v1217
  %v1850 = vpack.c.b16 %v1226, %v1222
  %v1851 = vpack.c.b16 %v1227, %v1223
  %v1852 = vpack.c.b16 %v1228, %v1224
  %v1853 = vpack.c.b16 %v1229, %v1225
  %v1854 = vpack.c.b16 %v1234, %v1230
  %v1855 = vpack.c.b16 %v1235, %v1231
  %v1856 = vpack.c.b16 %v1236, %v1232
  %v1857 = vpack.c.b16 %v1237, %v1233
  %v1858 = vpack.c.b16 %v1242, %v1238
  %v1859 = vpack.c.b16 %v1243, %v1239
  %v1860 = vpack.c.b16 %v1244, %v1240
  %v1861 = vpack.c.b16 %v1245, %v1241
  %v1862 = vpack.c.b16 %v1250, %v1246
  %v1863 = vpack.c.b16 %v1251, %v1247
  %v1864 = vpack.c.b16 %v1252, %v1248
  %v1865 = vpack.c.b16 %v1253, %v1249
  %v1866 = vpack.c.b16 %v1258, %v1254
  %v1867 = vpack.c.b16 %v1259, %v1255
  %v1868 = vpack.c.b16 %v1260, %v1256
  %v1869 = vpack.c.b16 %v1261, %v1257
  %v1870 = vpack.c.b16 %v1266, %v1262
  %v1871 = vpack.c.b16 %v1267, %v1263
  %v1872 = vpack.c.b16 %v1268, %v1264
  %v1873 = vpack.c.b16 %v1269, %v1265
  %v1874 = vpack.c.b16 %v1274, %v1270
  %v1875 = vpack.c.b16 %v1275, %v1271
  %v1876 = vpack.c.b16 %v1276, %v1272
  %v1877 = vpack.c.b16 %v1277, %v1273
  %v1878 = vpack.c.b16 %v1282, %v1278
  %v1879 = vpack.c.b16 %v1283, %v1279
  %v1880 = vpack.c.b16 %v1284, %v1280
  %v1881 = vpack.c.b16 %v1285, %v1281
  %v1882 = vpack.c.b16 %v1290, %v1286
  %v1883 = vpack.c.b16 %v1291, %v1287
  %v1884 = vpack.c.b16 %v1292, %v1288
  %v1885 = vpack.c.b16 %v1293, %v1289
  %v1886 = vpack.c.b16 %v1298, %v1294
  %v1887 = vpack.c.b16 %v1299, %v1295
  %v1888 = vpack.c.b16 %v1300, %v1296
  %v1889 = vpack.c.b16 %v1301, %v1297
  %v1890 = vpack.c.b16 %v1306, %v1302
  %v1891 = vpack.c.b16 %v1307, %v1303
  %v1892 = vpack.c.b16 %v1308, %v1304
  %v1893 = vpack.c.b16 %v1309, %v1305
  %v1894 = vpack.c.b16 %v1314, %v1310
  %v1895 = vpack.c.b16 %v1315, %v1311
  %v1896 = vpack.c.b16 %v1316, %v1312
  %v1897 = vpack.c.b16 %v1317, %v1313
  %v1898 = vpack.c.b16 %v1322, %v1318
  %v1899 = vpack.c.b16 %v1323, %v1319
  %v1900 = vpack.c.b16 %v1324, %v1320
  %v1901 = vpack.c.b16 %v1325, %v1321
  %v1902 = vpack.c.b16 %v1330, %v1326
  %v1903 = vpack.c.b16 %v1331, %v1327
  %v1904 = vpack.c.b16 %v1332, %v1328
  %v1905 = vpack.c.b16 %v1333, %v1329
  %v1906 = vpack.c.b16 %v1338, %v1334
  %v1907 = vpack.c.b16 %v1339, %v1335
  %v1908 = vpack.c.b16 %v1340, %v1336
  %v1909 = vpack.c.b16 %v1341, %v1337
  %v1910 = vpack.c.b16 %v1346, %v1342
  %v1911 = vpack.c.b16 %v1347, %v1343
  %v1912 = vpack.c.b16 %v1348, %v1344
  %v1913 = vpack.c.b16 %v1349, %v1345
  %v1914 = vpack.c.b16 %v1354, %v1350
  %v1915 = vpack.c.b16 %v1355, %v1351
  %v1916 = vpack.c.b16 %v1356, %v1352
  %v1917 = vpack.c.b16 %v1357, %v1353
  %v1918 = vpack.c.b16 %v1362, %v1358
  %v1919 = vpack.c.b16 %v1363, %v1359
  %v1920 = vpack.c.b16 %v1364, %v1360
  %v1921 = vpack.c.b16 %v1365, %v1361
  %v1922 = vpack.c.b16 %v1370, %v1366
  %v1923 = vpack.c.b16 %v1371, %v1367
  %v1924 = vpack.c.b16 %v1372, %v1368
  %v1925 = vpack.c.b16 %v1373, %v1369
  %v1926 = vpack.c.b16 %v1378, %v1374
  %v1927 = vpack.c.b16 %v1379, %v1375
  %v1928 = vpack.c.b16 %v1380, %v1376
  %v1929 = vpack.c.b16 %v1381, %v1377
  %v1930 = vpack.c.b16 %v1386, %v1382
  %v1931 = vpack.c.b16 %v1387, %v1383
  %v1932 = vpack.c.b16 %v1388, %v1384
  %v1933 = vpack.c.b16 %v1389, %v1385
  %v1934 = vpack.c.b16 %v1394, %v1390
  %v1935 = vpack.c.b16 %v1395, %v1391
  %v1936 = vpack.c.b16 %v1396, %v1392
  %v1937 = vpack.c.b16 %v1397, %v1393
  %v1938 = vpack.c.b16 %v1402, %v1398
  %v1939 = vpack.c.b16 %v1403, %v1399
  %v1940 = vpack.c.b16 %v1404, %v1400
  %v1941 = vpack.c.b16 %v1405, %v1401
  %v1942 = vpack.c.b16 %v1410, %v1406
  %v1943 = vpack.c.b16 %v1411, %v1407
  %v1944 = vpack.c.b16 %v1412, %v1408
  %v1945 = vpack.c.b16 %v1413, %v1409
  %v1946 = vpack.c.b16 %v1418, %v1414
  %v1947 = vpack.c.b16 %v1419, %v1415
  %v1948 = vpack.c.b16 %v1420, %v1416
  %v1949 = vpack.c.b16 %v1421, %v1417
  %v1950 = vpack.c.b16 %v1426, %v1422
  %v1951 = vpack.c.b16 %v1427, %v1423
  %v1952 = vpack.c.b16 %v1428, %v1424
  %v1953 = vpack.c.b16 %v1429, %v1425
  %v1954 = vpack.c.b16 %v1434, %v1430
  %v1955 = vpack.c.b16 %v1435, %v1431
  %v1956 = vpack.c.b16 %v1436, %v1432
  %v1957 = vpack.c.b16 %v1437, %v1433
  %v1958 = vpack.c.b16 %v1442, %v1438
  %v1959 = vpack.c.b16 %v1443, %v1439
  %v1960 = vpack.c.b16 %v1444, %v1440
  %v1961 = vpack.c.b16 %v1445, %v1441
  %v1962 = vpack.c.b16 %v1450, %v1446
  %v1963 = vpack.c.b16 %v1451, %v1447
  %v1964 = vpack.c.b16 %v1452, %v1448
  %v1965 = vpack.c.b16 %v1453, %v1449
  %v1966 = vpack.c.b16 %v1458, %v1454
  %v1967 = vpack.c.b16 %v1459, %v1455
  %v1968 = vpack.c.b16 %v1460, %v1456
  %v1969 = vpack.c.b16 %v1461, %v1457
  %v1970 = vpack.c.b16 %v1466, %v1462
  %v1971 = vpack.c.b16 %v1467, %v1463
  %v1972 = vpack.c.b16 %v1468, %v1464
  %v1973 = vpack.c.b16 %v1469, %v1465
  %v1974 = vpack.c.b16 %v1474, %v1470
  %v1975 = vpack.c.b16 %v1475, %v1471
  %v1976 = vpack.c.b16 %v1476, %v1472
  %v1977 = vpack.c.b16 %v1477, %v1473
  %v1978 = vpack.c.b16 %v1482, %v1478
  %v1979 = vpack.c.b16 %v1483, %v1479
  %v1980 = vpack.c.b16 %v1484, %v1480
  %v1981 = vpack.c.b16 %v1485, %v1481
  %v1982 = vpack.c.b16 %v1490, %v1486
  %v1983 = vpack.c.b16 %v1491, %v1487
  %v1984 = vpack.c.b16 %v1492, %v1488
  %v1985 = vpack.c.b16 %v1493, %v1489
  %v1986 = vpack.c.b16 %v1498, %v1494
  %v1987 = vpack.c.b16 %v1499, %v1495
  %v1988 = vpack.c.b16 %v1500, %v1496
  %v1989 = vpack.c.b16 %v1501, %v1497
  %v1990 = vpack.c.b16 %v1506, %v1502
  %v1991 = vpack.c.b16 %v1507, %v1503
  %v1992 = vpack.c.b16 %v1508, %v1504
  %v1993 = vpack.c.b16 %v1509, %v1505
  %v1994 = vpack.c.b16 %v1514, %v1510
  %v1995 = vpack.c.b16 %v1515, %v1511
  %v1996 = vpack.c.b16 %v1516, %v1512
  %v1997 = vpack.c.b16 %v1517, %v1513
  %v1998 = vpack.c.b16 %v1522, %v1518
  %v1999 = vpack.c.b16 %v1523, %v1519
  %v2000 = vpack.c.b16 %v1524, %v1520
  %v2001 = vpack.c.b16 %v1525, %v1521
  %v2002 = vpack.c.b16 %v1530, %v1526
  %v2003 = vpack.c.b16 %v1531, %v1527
  %v2004 = vpack.c.b16 %v1532, %v1528
  %v2005 = vpack.c.b16 %v1533, %v1529
  %v2006 = vpack.c.b16 %v1538, %v1534
  %v2007 = vpack.c.b16 %v1539, %v1535
  %v2008 = vpack.c.b16 %v1540, %v1536
  %v2009 = vpack.c.b16 %v1541, %v1537
  %v2010 = vpack.c.b16 %v1546, %v1542
  %v2011 = vpack.c.b16 %v1547, %v1543
  %v2012 = vpack.c.b16 %v1548, %v1544
  %v2013 = vpack.c.b16 %v1549, %v1545
  %v2014 = vpack.c.b16 %v1554, %v1550
  %v2015 = vpack.c.b16 %v1555, %v1551
  %v2016 = vpack.c.b16 %v1556, %v1552
  %v2017 = vpack.c.b16 %v1557, %v1553
  %v2018 = vpack.c.b16 %v1562, %v1558
  %v2019 = vpack.c.b16 %v1563, %v1559
  %v2020 = vpack.c.b16 %v1564, %v1560
  %v2021 = vpack.c.b16 %v1565, %v1561
  %v2022 = vpack.c.b16 %v1570, %v1566
  %v2023 = vpack.c.b16 %v1571, %v1567
  %v2024 = vpack.c.b16 %v1572, %v1568
  %v2025 = vpack.c.b16 %v1573, %v1569
  %v2026 = vpack.c.b16 %v1578, %v1574
  %v2027 = vpack.c.b16 %v1579, %v1575
  %v2028 = vpack.c.b16 %v1580, %v1576
  %v2029 = vpack.c.b16 %v1581, %v1577
  %v2030 = vpack.c.b16 %v1586, %v1582
  %v2031 = vpack.c.b16 %v1587, %v1583
  %v2032 = vpack.c.b16 %v1588, %v1584
  %v2033 = vpack.c.b16 %v1589, %v1585
  %v2034 = vpack.c.b16 %v1594, %v1590
  %v2035 = vpack.c.b16 %v1595, %v1591
  %v2036 = vpack.c.b16 %v1596, %v1592
  %v2037 = vpack.c.b16 %v1597, %v1593
  %v2038 = vpack.c.b16 %v1602, %v1598
  %v2039 = vpack.c.b16 %v1603, %v1599
  %v2040 = vpack.c.b16 %v1604, %v1600
  %v2041 = vpack.c.b16 %v1605, %v1601
  %v2042 = vpack.c.b16 %v1610, %v1606
  %v2043 = vpack.c.b16 %v1611, %v1607
  %v2044 = vpack.c.b16 %v1612, %v1608
  %v2045 = vpack.c.b16 %v1613, %v1609
  %v2046 = vpack.c.b16 %v1618, %v1614
  %v2047 = vpack.c.b16 %v1619, %v1615
  %v2048 = vpack.c.b16 %v1620, %v1616
  %v2049 = vpack.c.b16 %v1621, %v1617
  %v2050 = vpack.c.b16 %v1626, %v1622
  %v2051 = vpack.c.b16 %v1627, %v1623
  %v2052 = vpack.c.b16 %v1628, %v1624
  %v2053 = vpack.c.b16 %v1629, %v1625
  %v2054 = vpack.c.b16 %v1634, %v1630
  %v2055 = vpack.c.b16 %v1635, %v1631
  %v2056 = vpack.c.b16 %v1636, %v1632
  %v2057 = vpack.c.b16 %v1637, %v1633
  %v2058 = vpack.c.b16 %v1642, %v1638
  %v2059 = vpack.c.b16 %v1643, %v1639
  %v2060 = vpack.c.b16 %v1644, %v1640
  %v2061 = vpack.c.b16 %v1645, %v1641
  %v2062 = vpack.c.b16 %v1650, %v1646
  %v2063 = vpack.c.b16 %v1651, %v1647
  %v2064 = vpack.c.b16 %v1652, %v1648
  %v2065 = vpack.c.b16 %v1653, %v1649
  %v2066 = vpack.c.b16 %v1658, %v1654
  %v2067 = vpack.c.b16 %v1659, %v1655
  %v2068 = vpack.c.b16 %v1660, %v1656
  %v2069 = vpack.c.b16 %v1661, %v1657
  %v2070 = vpack.c.b16 %v1666, %v1662
  %v2071 = vpack.c.b16 %v1667, %v1663
  %v2072 = vpack.c.b16 %v1668, %v1664
  %v2073 = vpack.c.b16 %v1669, %v1665
  %v2074 = vpack.c.b16 %v1674, %v1670
  %v2075 = vpack.c.b16 %v1675, %v1671
  %v2076 = vpack.c.b16 %v1676, %v1672
  %v2077 = vpack.c.b16 %v1677, %v1673
  %v2078 = vpack.c.b16 %v1682, %v1678
  %v2079 = vpack.c.b16 %v1683, %v1679
  %v2080 = vpack.c.b16 %v1684, %v1680
  %v2081 = vpack.c.b16 %v1685, %v1681
  %v2082 = vpack.c.b16 %v1690, %v1686
  %v2083 = vpack.c.b16 %v1691, %v1687
  %v2084 = vpack.c.b16 %v1692, %v1688
  %v2085 = vpack.c.b16 %v1693, %v1689
  %vm2478 = vcmask 261120
  %v2480 = vsel %vm2478, %v505, 0
  %2482 = vmatprep.subr.bf16.mxu0 %v1695
  %2483 = vmatpush1.bf16.msra.mxu0 %v1694
  %2484 = vmatprep.subr.bf16.mxu0 %v1699
  %2485 = vmatpush1.bf16.msra.mxu0 %v1698
  %2486 = vmatprep.subr.bf16.mxu0 %v1703
  %2487 = vmatpush1.bf16.msra.mxu0 %v1702
  %2488 = vmatprep.subr.bf16.mxu0 %v1707
  %2489 = vmatpush1.bf16.msra.mxu0 %v1706
  %2490 = vmatprep.subr.bf16.mxu0 %v1711
  %2491 = vmatpush1.bf16.msra.mxu0 %v1710
  %2492 = vmatprep.subr.bf16.mxu0 %v1715
  %2493 = vmatpush1.bf16.msra.mxu0 %v1714
  %2494 = vmatprep.subr.bf16.mxu0 %v1719
  %2495 = vmatpush1.bf16.msra.mxu0 %v1718
  %2496 = vmatprep.subr.bf16.mxu0 %v1723
  %2497 = vmatpush1.bf16.msra.mxu0 %v1722
  %2498 = vmatprep.subr.bf16.mxu0 %v1727
  %2499 = vmatpush1.bf16.msra.mxu0 %v1726
  %2500 = vmatprep.subr.bf16.mxu0 %v1731
  %2501 = vmatpush1.bf16.msra.mxu0 %v1730
  %2502 = vmatprep.subr.bf16.mxu0 %v1735
  %2503 = vmatpush1.bf16.msra.mxu0 %v1734
  %2504 = vmatprep.subr.bf16.mxu0 %v1739
  %2505 = vmatpush1.bf16.msra.mxu0 %v1738
  %2506 = vmatprep.subr.bf16.mxu0 %v1743
  %2507 = vmatpush1.bf16.msra.mxu0 %v1742
  %2508 = vmatprep.subr.bf16.mxu0 %v1747
  %2509 = vmatpush1.bf16.msra.mxu0 %v1746
  %2510 = vmatprep.subr.bf16.mxu0 %v1751
  %2511 = vmatpush1.bf16.msra.mxu0 %v1750
  %2512 = vmatprep.subr.bf16.mxu0 %v1755
  %2513 = vmatpush1.bf16.msra.mxu0 %v1754
  %2514 = vmatprep.mubr.bf16.mxu0 %v494
  %2515 = vmatmul.mubr.bf16.gmra.mrb[0].mxu0 %v493
  %v2516 = vpop.f32.mrb[0].mxu0
  %v2517 = vadd.f32 %v436, %v2516
  %v2518 = vpop.f32.mrb[0].mxu0
  %v2519 = vadd.f32 %v440, %v2518
  %v2520 = vpop.f32.mrb[0].mxu0
  %v2521 = vadd.f32 %v436, %v2520
  %v2522 = vpop.f32.mrb[0].mxu0
  %v2523 = vadd.f32 %v440, %v2522
  %2524 = vdwg.mxu0
  %2525 = vmatprep.subr.bf16.mxu0 %v1759
  %2526 = vmatpush1.bf16.msra.mxu0 %v1758
  %2527 = vmatprep.subr.bf16.mxu0 %v1763
  %2528 = vmatpush1.bf16.msra.mxu0 %v1762
  %2529 = vmatprep.subr.bf16.mxu0 %v1767
  %2530 = vmatpush1.bf16.msra.mxu0 %v1766
  %2531 = vmatprep.subr.bf16.mxu0 %v1771
  %2532 = vmatpush1.bf16.msra.mxu0 %v1770
  %2533 = vmatprep.subr.bf16.mxu0 %v1775
  %2534 = vmatpush1.bf16.msra.mxu0 %v1774
  %2535 = vmatprep.subr.bf16.mxu0 %v1779
  %2536 = vmatpush1.bf16.msra.mxu0 %v1778
  %2537 = vmatprep.subr.bf16.mxu0 %v1783
  %2538 = vmatpush1.bf16.msra.mxu0 %v1782
  %2539 = vmatprep.subr.bf16.mxu0 %v1787
  %2540 = vmatpush1.bf16.msra.mxu0 %v1786
  %2541 = vmatprep.subr.bf16.mxu0 %v1791
  %2542 = vmatpush1.bf16.msra.mxu0 %v1790
  %2543 = vmatprep.subr.bf16.mxu0 %v1795
  %2544 = vmatpush1.bf16.msra.mxu0 %v1794
  %2545 = vmatprep.subr.bf16.mxu0 %v1799
  %2546 = vmatpush1.bf16.msra.mxu0 %v1798
  %2547 = vmatprep.subr.bf16.mxu0 %v1803
  %2548 = vmatpush1.bf16.msra.mxu0 %v1802
  %2549 = vmatprep.subr.bf16.mxu0 %v1807
  %2550 = vmatpush1.bf16.msra.mxu0 %v1806
  %2551 = vmatprep.subr.bf16.mxu0 %v1811
  %2552 = vmatpush1.bf16.msra.mxu0 %v1810
  %2553 = vmatprep.subr.bf16.mxu0 %v1815
  %2554 = vmatpush1.bf16.msra.mxu0 %v1814
  %2555 = vmatprep.subr.bf16.mxu0 %v1819
  %2556 = vmatpush1.bf16.msra.mxu0 %v1818
  %2557 = vmatprep.mubr.bf16.mxu0 %v496
  %2558 = vmatmul.mubr.bf16.gmra.mrb[0].mxu0 %v495
  %v2559 = vpop.f32.mrb[0].mxu0
  %v2560 = vadd.f32 %v2517, %v2559
  %v2561 = vpop.f32.mrb[0].mxu0
  %v2562 = vadd.f32 %v2519, %v2561
  %v2563 = vpop.f32.mrb[0].mxu0
  %v2564 = vadd.f32 %v2521, %v2563
  %v2565 = vpop.f32.mrb[0].mxu0
  %v2566 = vadd.f32 %v2523, %v2565
  %2567 = vdwg.mxu0
  %2568 = vmatprep.subr.bf16.mxu0 %v1823
  %2569 = vmatpush1.bf16.msra.mxu0 %v1822
  %2570 = vmatprep.subr.bf16.mxu0 %v1827
  %2571 = vmatpush1.bf16.msra.mxu0 %v1826
  %2572 = vmatprep.subr.bf16.mxu0 %v1831
  %2573 = vmatpush1.bf16.msra.mxu0 %v1830
  %2574 = vmatprep.subr.bf16.mxu0 %v1835
  %2575 = vmatpush1.bf16.msra.mxu0 %v1834
  %2576 = vmatprep.subr.bf16.mxu0 %v1839
  %2577 = vmatpush1.bf16.msra.mxu0 %v1838
  %2578 = vmatprep.subr.bf16.mxu0 %v1843
  %2579 = vmatpush1.bf16.msra.mxu0 %v1842
  %2580 = vmatprep.subr.bf16.mxu0 %v1847
  %2581 = vmatpush1.bf16.msra.mxu0 %v1846
  %2582 = vmatprep.subr.bf16.mxu0 %v1851
  %2583 = vmatpush1.bf16.msra.mxu0 %v1850
  %2584 = vmatprep.subr.bf16.mxu0 %v1855
  %2585 = vmatpush1.bf16.msra.mxu0 %v1854
  %2586 = vmatprep.subr.bf16.mxu0 %v1859
  %2587 = vmatpush1.bf16.msra.mxu0 %v1858
  %2588 = vmatprep.subr.bf16.mxu0 %v1863
  %2589 = vmatpush1.bf16.msra.mxu0 %v1862
  %2590 = vmatprep.subr.bf16.mxu0 %v1867
  %2591 = vmatpush1.bf16.msra.mxu0 %v1866
  %2592 = vmatprep.subr.bf16.mxu0 %v1871
  %2593 = vmatpush1.bf16.msra.mxu0 %v1870
  %2594 = vmatprep.subr.bf16.mxu0 %v1875
  %2595 = vmatpush1.bf16.msra.mxu0 %v1874
  %2596 = vmatprep.subr.bf16.mxu0 %v1879
  %2597 = vmatpush1.bf16.msra.mxu0 %v1878
  %2598 = vmatprep.subr.bf16.mxu0 %v1883
  %2599 = vmatpush1.bf16.msra.mxu0 %v1882
  %2600 = vmatprep.mubr.bf16.mxu0 %v498
  %2601 = vmatmul.mubr.bf16.gmra.mrb[0].mxu0 %v497
  %v2602 = vpop.f32.mrb[0].mxu0
  %v2603 = vadd.f32 %v2560, %v2602
  %v2604 = vpop.f32.mrb[0].mxu0
  %v2605 = vadd.f32 %v2562, %v2604
  %v2606 = vpop.f32.mrb[0].mxu0
  %v2607 = vadd.f32 %v2564, %v2606
  %v2608 = vpop.f32.mrb[0].mxu0
  %v2609 = vadd.f32 %v2566, %v2608
  %2610 = vdwg.mxu0
  %2611 = vmatprep.subr.bf16.mxu0 %v1887
  %2612 = vmatpush1.bf16.msra.mxu0 %v1886
  %2613 = vmatprep.subr.bf16.mxu0 %v1891
  %2614 = vmatpush1.bf16.msra.mxu0 %v1890
  %2615 = vmatprep.subr.bf16.mxu0 %v1895
  %2616 = vmatpush1.bf16.msra.mxu0 %v1894
  %2617 = vmatprep.subr.bf16.mxu0 %v1899
  %2618 = vmatpush1.bf16.msra.mxu0 %v1898
  %2619 = vmatprep.subr.bf16.mxu0 %v1903
  %2620 = vmatpush1.bf16.msra.mxu0 %v1902
  %2621 = vmatprep.subr.bf16.mxu0 %v1907
  %2622 = vmatpush1.bf16.msra.mxu0 %v1906
  %2623 = vmatprep.subr.bf16.mxu0 %v1911
  %2624 = vmatpush1.bf16.msra.mxu0 %v1910
  %2625 = vmatprep.subr.bf16.mxu0 %v1915
  %2626 = vmatpush1.bf16.msra.mxu0 %v1914
  %2627 = vmatprep.subr.bf16.mxu0 %v1919
  %2628 = vmatpush1.bf16.msra.mxu0 %v1918
  %2629 = vmatprep.subr.bf16.mxu0 %v1923
  %2630 = vmatpush1.bf16.msra.mxu0 %v1922
  %2631 = vmatprep.subr.bf16.mxu0 %v1927
  %2632 = vmatpush1.bf16.msra.mxu0 %v1926
  %2633 = vmatprep.subr.bf16.mxu0 %v1931
  %2634 = vmatpush1.bf16.msra.mxu0 %v1930
  %2635 = vmatprep.subr.bf16.mxu0 %v1935
  %2636 = vmatpush1.bf16.msra.mxu0 %v1934
  %2637 = vmatprep.subr.bf16.mxu0 %v1939
  %2638 = vmatpush1.bf16.msra.mxu0 %v1938
  %2639 = vmatprep.subr.bf16.mxu0 %v1943
  %2640 = vmatpush1.bf16.msra.mxu0 %v1942
  %2641 = vmatprep.subr.bf16.mxu0 %v1947
  %2642 = vmatpush1.bf16.msra.mxu0 %v1946
  %2643 = vmatprep.mubr.bf16.mxu0 %v500
  %2644 = vmatmul.mubr.bf16.gmra.mrb[0].mxu0 %v499
  %v2645 = vpop.f32.mrb[0].mxu0
  %v2646 = vadd.f32 %v2603, %v2645
  %v2647 = vpop.f32.mrb[0].mxu0
  %v2648 = vadd.f32 %v2605, %v2647
  %v2649 = vpop.f32.mrb[0].mxu0
  %v2650 = vadd.f32 %v2607, %v2649
  %v2651 = vpop.f32.mrb[0].mxu0
  %v2652 = vadd.f32 %v2609, %v2651
  %2653 = vdwg.mxu0
  %2654 = vmatprep.subr.bf16.mxu0 %v1951
  %2655 = vmatpush1.bf16.msra.mxu0 %v1950
  %2656 = vmatprep.subr.bf16.mxu0 %v1955
  %2657 = vmatpush1.bf16.msra.mxu0 %v1954
  %2658 = vmatprep.subr.bf16.mxu0 %v1959
  %2659 = vmatpush1.bf16.msra.mxu0 %v1958
  %2660 = vmatprep.subr.bf16.mxu0 %v1963
  %2661 = vmatpush1.bf16.msra.mxu0 %v1962
  %2662 = vmatprep.subr.bf16.mxu0 %v1967
  %2663 = vmatpush1.bf16.msra.mxu0 %v1966
  %2664 = vmatprep.subr.bf16.mxu0 %v1971
  %2665 = vmatpush1.bf16.msra.mxu0 %v1970
  %2666 = vmatprep.subr.bf16.mxu0 %v1975
  %2667 = vmatpush1.bf16.msra.mxu0 %v1974
  %2668 = vmatprep.subr.bf16.mxu0 %v1979
  %2669 = vmatpush1.bf16.msra.mxu0 %v1978
  %2670 = vmatprep.subr.bf16.mxu0 %v1983
  %2671 = vmatpush1.bf16.msra.mxu0 %v1982
  %2672 = vmatprep.subr.bf16.mxu0 %v1987
  %2673 = vmatpush1.bf16.msra.mxu0 %v1986
  %2674 = vmatprep.subr.bf16.mxu0 %v1991
  %2675 = vmatpush1.bf16.msra.mxu0 %v1990
  %2676 = vmatprep.subr.bf16.mxu0 %v1995
  %2677 = vmatpush1.bf16.msra.mxu0 %v1994
  %2678 = vmatprep.subr.bf16.mxu0 %v1999
  %2679 = vmatpush1.bf16.msra.mxu0 %v1998
  %2680 = vmatprep.subr.bf16.mxu0 %v2003
  %2681 = vmatpush1.bf16.msra.mxu0 %v2002
  %2682 = vmatprep.subr.bf16.mxu0 %v2007
  %2683 = vmatpush1.bf16.msra.mxu0 %v2006
  %2684 = vmatprep.subr.bf16.mxu0 %v2011
  %2685 = vmatpush1.bf16.msra.mxu0 %v2010
  %2686 = vmatprep.mubr.bf16.mxu0 %v502
  %2687 = vmatmul.mubr.bf16.gmra.mrb[0].mxu0 %v501
  %v2688 = vpop.f32.mrb[0].mxu0
  %v2689 = vadd.f32 %v2646, %v2688
  %v2690 = vpop.f32.mrb[0].mxu0
  %v2691 = vadd.f32 %v2648, %v2690
  %v2692 = vpop.f32.mrb[0].mxu0
  %v2693 = vadd.f32 %v2650, %v2692
  %v2694 = vpop.f32.mrb[0].mxu0
  %v2695 = vadd.f32 %v2652, %v2694
  %2696 = vdwg.mxu0
  %2697 = vmatprep.subr.bf16.mxu0 %v2015
  %2698 = vmatpush1.bf16.msra.mxu0 %v2014
  %2699 = vmatprep.subr.bf16.mxu0 %v2019
  %2700 = vmatpush1.bf16.msra.mxu0 %v2018
  %2701 = vmatprep.subr.bf16.mxu0 %v2023
  %2702 = vmatpush1.bf16.msra.mxu0 %v2022
  %2703 = vmatprep.subr.bf16.mxu0 %v2027
  %2704 = vmatpush1.bf16.msra.mxu0 %v2026
  %2705 = vmatprep.subr.bf16.mxu0 %v2031
  %2706 = vmatpush1.bf16.msra.mxu0 %v2030
  %2707 = vmatprep.subr.bf16.mxu0 %v2035
  %2708 = vmatpush1.bf16.msra.mxu0 %v2034
  %2709 = vmatprep.subr.bf16.mxu0 %v2039
  %2710 = vmatpush1.bf16.msra.mxu0 %v2038
  %2711 = vmatprep.subr.bf16.mxu0 %v2043
  %2712 = vmatpush1.bf16.msra.mxu0 %v2042
  %2713 = vmatprep.subr.bf16.mxu0 %v2047
  %2714 = vmatpush1.bf16.msra.mxu0 %v2046
  %2715 = vmatprep.subr.bf16.mxu0 %v2051
  %2716 = vmatpush1.bf16.msra.mxu0 %v2050
  %2717 = vmatprep.subr.bf16.mxu0 %v2055
  %2718 = vmatpush1.bf16.msra.mxu0 %v2054
  %2719 = vmatprep.subr.bf16.mxu0 %v2059
  %2720 = vmatpush1.bf16.msra.mxu0 %v2058
  %2721 = vmatprep.subr.bf16.mxu0 %v2063
  %2722 = vmatpush1.bf16.msra.mxu0 %v2062
  %2723 = vmatprep.subr.bf16.mxu0 %v2067
  %2724 = vmatpush1.bf16.msra.mxu0 %v2066
  %2725 = vmatprep.subr.bf16.mxu0 %v2071
  %2726 = vmatpush1.bf16.msra.mxu0 %v2070
  %2727 = vmatprep.subr.bf16.mxu0 %v2075
  %2728 = vmatpush1.bf16.msra.mxu0 %v2074
  %2729 = vmatprep.mubr.bf16.mxu0 %v504
  %2730 = vmatmul.mubr.bf16.gmra.mrb[0].mxu0 %v503
  %v2731 = vpop.f32.mrb[0].mxu0
  %v2732 = vadd.f32 %v2689, %v2731
  %v2733 = vpop.f32.mrb[0].mxu0
  %v2734 = vadd.f32 %v2691, %v2733
  %v2735 = vpop.f32.mrb[0].mxu0
  %v2736 = vadd.f32 %v2693, %v2735
  %v2737 = vpop.f32.mrb[0].mxu0
  %v2738 = vadd.f32 %v2695, %v2737
  %2739 = vdwg.mxu0
  %2740 = vmatprep.subr.bf16.mxu0 %v2079
  %2741 = vmatpush1.bf16.msra.mxu0 %v2078
  %2742 = vmatprep.subr.bf16.mxu0 %v2083
  %2743 = vmatpush1.bf16.msra.mxu0 %v2082
  %2744 = vmatprep.subr.bf16.mxu0 0
  %2745 = vmatpush1.bf16.msra.mxu0 0
  %2746 = vmatprep.subr.bf16.mxu0 0
  %2747 = vmatpush1.bf16.msra.mxu0 0
  %2748 = vmatprep.subr.bf16.mxu0 0
  %2749 = vmatpush1.bf16.msra.mxu0 0
  %2750 = vmatprep.subr.bf16.mxu0 0
  %2751 = vmatpush1.bf16.msra.mxu0 0
  %2752 = vmatprep.subr.bf16.mxu0 0
  %2753 = vmatpush1.bf16.msra.mxu0 0
  %2754 = vmatprep.subr.bf16.mxu0 0
  %2755 = vmatpush1.bf16.msra.mxu0 0
  %2756 = vmatprep.subr.bf16.mxu0 0
  %2757 = vmatpush1.bf16.msra.mxu0 0
  %2758 = vmatprep.subr.bf16.mxu0 0
  %2759 = vmatpush1.bf16.msra.mxu0 0
  %2760 = vmatprep.subr.bf16.mxu0 0
  %2761 = vmatpush1.bf16.msra.mxu0 0
  %2762 = vmatprep.subr.bf16.mxu0 0
  %2763 = vmatpush1.bf16.msra.mxu0 0
  %2764 = vmatprep.subr.bf16.mxu0 0
  %2765 = vmatpush1.bf16.msra.mxu0 0
  %2766 = vmatprep.subr.bf16.mxu0 0
  %2767 = vmatpush1.bf16.msra.mxu0 0
  %2768 = vmatprep.subr.bf16.mxu0 0
  %2769 = vmatpush1.bf16.msra.mxu0 0
  %2770 = vmatprep.subr.bf16.mxu0 0
  %2771 = vmatpush1.bf16.msra.mxu0 0
  %2772 = vmatprep.mubr.bf16.mxu0 0
  %2773 = vmatmul.mubr.bf16.gmra.mrb[0].mxu0 %v2480
  %v2774 = vpop.f32.mrb[0].mxu0
  %v2775 = vadd.f32 %v2732, %v2774
  %v2776 = vpop.f32.mrb[0].mxu0
  %v2777 = vadd.f32 %v2734, %v2776
  %v2778 = vpop.f32.mrb[0].mxu0
  %v2779 = vadd.f32 %v2736, %v2778
  %v2780 = vpop.f32.mrb[0].mxu0
  %v2781 = vadd.f32 %v2738, %v2780
  %2782 = vdwg.mxu0
  %2783 = vmatprep.subr.bf16.mxu0 %v1697
  %2784 = vmatpush1.bf16.msra.mxu0 %v1696
  %2785 = vmatprep.subr.bf16.mxu0 %v1701
  %2786 = vmatpush1.bf16.msra.mxu0 %v1700
  %2787 = vmatprep.subr.bf16.mxu0 %v1705
  %2788 = vmatpush1.bf16.msra.mxu0 %v1704
  %2789 = vmatprep.subr.bf16.mxu0 %v1709
  %2790 = vmatpush1.bf16.msra.mxu0 %v1708
  %2791 = vmatprep.subr.bf16.mxu0 %v1713
  %2792 = vmatpush1.bf16.msra.mxu0 %v1712
  %2793 = vmatprep.subr.bf16.mxu0 %v1717
  %2794 = vmatpush1.bf16.msra.mxu0 %v1716
  %2795 = vmatprep.subr.bf16.mxu0 %v1721
  %2796 = vmatpush1.bf16.msra.mxu0 %v1720
  %2797 = vmatprep.subr.bf16.mxu0 %v1725
  %2798 = vmatpush1.bf16.msra.mxu0 %v1724
  %2799 = vmatprep.subr.bf16.mxu0 %v1729
  %2800 = vmatpush1.bf16.msra.mxu0 %v1728
  %2801 = vmatprep.subr.bf16.mxu0 %v1733
  %2802 = vmatpush1.bf16.msra.mxu0 %v1732
  %2803 = vmatprep.subr.bf16.mxu0 %v1737
  %2804 = vmatpush1.bf16.msra.mxu0 %v1736
  %2805 = vmatprep.subr.bf16.mxu0 %v1741
  %2806 = vmatpush1.bf16.msra.mxu0 %v1740
  %2807 = vmatprep.subr.bf16.mxu0 %v1745
  %2808 = vmatpush1.bf16.msra.mxu0 %v1744
  %2809 = vmatprep.subr.bf16.mxu0 %v1749
  %2810 = vmatpush1.bf16.msra.mxu0 %v1748
  %2811 = vmatprep.subr.bf16.mxu0 %v1753
  %2812 = vmatpush1.bf16.msra.mxu0 %v1752
  %2813 = vmatprep.subr.bf16.mxu0 %v1757
  %2814 = vmatpush1.bf16.msra.mxu0 %v1756
  %2815 = vmatprep.mubr.bf16.mxu0 %v494
  %2816 = vmatmul.mubr.bf16.gmra.mrb[0].mxu0 %v493
  %v2817 = vpop.f32.mrb[0].mxu0
  %v2818 = vadd.f32 %v444, %v2817
  %v2819 = vpop.f32.mrb[0].mxu0
  %v2820 = vadd.f32 %v448, %v2819
  %v2821 = vpop.f32.mrb[0].mxu0
  %v2822 = vadd.f32 %v444, %v2821
  %v2823 = vpop.f32.mrb[0].mxu0
  %v2824 = vadd.f32 %v448, %v2823
  %2825 = vdwg.mxu0
  %2826 = vmatprep.subr.bf16.mxu0 %v1761
  %2827 = vmatpush1.bf16.msra.mxu0 %v1760
  %2828 = vmatprep.subr.bf16.mxu0 %v1765
  %2829 = vmatpush1.bf16.msra.mxu0 %v1764
  %2830 = vmatprep.subr.bf16.mxu0 %v1769
  %2831 = vmatpush1.bf16.msra.mxu0 %v1768
  %2832 = vmatprep.subr.bf16.mxu0 %v1773
  %2833 = vmatpush1.bf16.msra.mxu0 %v1772
  %2834 = vmatprep.subr.bf16.mxu0 %v1777
  %2835 = vmatpush1.bf16.msra.mxu0 %v1776
  %2836 = vmatprep.subr.bf16.mxu0 %v1781
  %2837 = vmatpush1.bf16.msra.mxu0 %v1780
  %2838 = vmatprep.subr.bf16.mxu0 %v1785
  %2839 = vmatpush1.bf16.msra.mxu0 %v1784
  %2840 = vmatprep.subr.bf16.mxu0 %v1789
  %2841 = vmatpush1.bf16.msra.mxu0 %v1788
  %2842 = vmatprep.subr.bf16.mxu0 %v1793
  %2843 = vmatpush1.bf16.msra.mxu0 %v1792
  %2844 = vmatprep.subr.bf16.mxu0 %v1797
  %2845 = vmatpush1.bf16.msra.mxu0 %v1796
  %2846 = vmatprep.subr.bf16.mxu0 %v1801
  %2847 = vmatpush1.bf16.msra.mxu0 %v1800
  %2848 = vmatprep.subr.bf16.mxu0 %v1805
  %2849 = vmatpush1.bf16.msra.mxu0 %v1804
  %2850 = vmatprep.subr.bf16.mxu0 %v1809
  %2851 = vmatpush1.bf16.msra.mxu0 %v1808
  %2852 = vmatprep.subr.bf16.mxu0 %v1813
  %2853 = vmatpush1.bf16.msra.mxu0 %v1812
  %2854 = vmatprep.subr.bf16.mxu0 %v1817
  %2855 = vmatpush1.bf16.msra.mxu0 %v1816
  %2856 = vmatprep.subr.bf16.mxu0 %v1821
  %2857 = vmatpush1.bf16.msra.mxu0 %v1820
  %2858 = vmatprep.mubr.bf16.mxu0 %v496
  %2859 = vmatmul.mubr.bf16.gmra.mrb[0].mxu0 %v495
  %v2860 = vpop.f32.mrb[0].mxu0
  %v2861 = vadd.f32 %v2818, %v2860
  %v2862 = vpop.f32.mrb[0].mxu0
  %v2863 = vadd.f32 %v2820, %v2862
  %v2864 = vpop.f32.mrb[0].mxu0
  %v2865 = vadd.f32 %v2822, %v2864
  %v2866 = vpop.f32.mrb[0].mxu0
  %v2867 = vadd.f32 %v2824, %v2866
  %2868 = vdwg.mxu0
  %2869 = vmatprep.subr.bf16.mxu0 %v1825
  %2870 = vmatpush1.bf16.msra.mxu0 %v1824
  %2871 = vmatprep.subr.bf16.mxu0 %v1829
  %2872 = vmatpush1.bf16.msra.mxu0 %v1828
  %2873 = vmatprep.subr.bf16.mxu0 %v1833
  %2874 = vmatpush1.bf16.msra.mxu0 %v1832
  %2875 = vmatprep.subr.bf16.mxu0 %v1837
  %2876 = vmatpush1.bf16.msra.mxu0 %v1836
  %2877 = vmatprep.subr.bf16.mxu0 %v1841
  %2878 = vmatpush1.bf16.msra.mxu0 %v1840
  %2879 = vmatprep.subr.bf16.mxu0 %v1845
  %2880 = vmatpush1.bf16.msra.mxu0 %v1844
  %2881 = vmatprep.subr.bf16.mxu0 %v1849
  %2882 = vmatpush1.bf16.msra.mxu0 %v1848
  %2883 = vmatprep.subr.bf16.mxu0 %v1853
  %2884 = vmatpush1.bf16.msra.mxu0 %v1852
  %2885 = vmatprep.subr.bf16.mxu0 %v1857
  %2886 = vmatpush1.bf16.msra.mxu0 %v1856
  %2887 = vmatprep.subr.bf16.mxu0 %v1861
  %2888 = vmatpush1.bf16.msra.mxu0 %v1860
  %2889 = vmatprep.subr.bf16.mxu0 %v1865
  %2890 = vmatpush1.bf16.msra.mxu0 %v1864
  %2891 = vmatprep.subr.bf16.mxu0 %v1869
  %2892 = vmatpush1.bf16.msra.mxu0 %v1868
  %2893 = vmatprep.subr.bf16.mxu0 %v1873
  %2894 = vmatpush1.bf16.msra.mxu0 %v1872
  %2895 = vmatprep.subr.bf16.mxu0 %v1877
  %2896 = vmatpush1.bf16.msra.mxu0 %v1876
  %2897 = vmatprep.subr.bf16.mxu0 %v1881
  %2898 = vmatpush1.bf16.msra.mxu0 %v1880
  %2899 = vmatprep.subr.bf16.mxu0 %v1885
  %2900 = vmatpush1.bf16.msra.mxu0 %v1884
  %2901 = vmatprep.mubr.bf16.mxu0 %v498
  %2902 = vmatmul.mubr.bf16.gmra.mrb[0].mxu0 %v497
  %v2903 = vpop.f32.mrb[0].mxu0
  %v2904 = vadd.f32 %v2861, %v2903
  %v2905 = vpop.f32.mrb[0].mxu0
  %v2906 = vadd.f32 %v2863, %v2905
  %v2907 = vpop.f32.mrb[0].mxu0
  %v2908 = vadd.f32 %v2865, %v2907
  %v2909 = vpop.f32.mrb[0].mxu0
  %v2910 = vadd.f32 %v2867, %v2909
  %2911 = vdwg.mxu0
  %2912 = vmatprep.subr.bf16.mxu0 %v1889
  %2913 = vmatpush1.bf16.msra.mxu0 %v1888
  %2914 = vmatprep.subr.bf16.mxu0 %v1893
  %2915 = vmatpush1.bf16.msra.mxu0 %v1892
  %2916 = vmatprep.subr.bf16.mxu0 %v1897
  %2917 = vmatpush1.bf16.msra.mxu0 %v1896
  %2918 = vmatprep.subr.bf16.mxu0 %v1901
  %2919 = vmatpush1.bf16.msra.mxu0 %v1900
  %2920 = vmatprep.subr.bf16.mxu0 %v1905
  %2921 = vmatpush1.bf16.msra.mxu0 %v1904
  %2922 = vmatprep.subr.bf16.mxu0 %v1909
  %2923 = vmatpush1.bf16.msra.mxu0 %v1908
  %2924 = vmatprep.subr.bf16.mxu0 %v1913
  %2925 = vmatpush1.bf16.msra.mxu0 %v1912
  %2926 = vmatprep.subr.bf16.mxu0 %v1917
  %2927 = vmatpush1.bf16.msra.mxu0 %v1916
  %2928 = vmatprep.subr.bf16.mxu0 %v1921
  %2929 = vmatpush1.bf16.msra.mxu0 %v1920
  %2930 = vmatprep.subr.bf16.mxu0 %v1925
  %2931 = vmatpush1.bf16.msra.mxu0 %v1924
  %2932 = vmatprep.subr.bf16.mxu0 %v1929
  %2933 = vmatpush1.bf16.msra.mxu0 %v1928
  %2934 = vmatprep.subr.bf16.mxu0 %v1933
  %2935 = vmatpush1.bf16.msra.mxu0 %v1932
  %2936 = vmatprep.subr.bf16.mxu0 %v1937
  %2937 = vmatpush1.bf16.msra.mxu0 %v1936
  %2938 = vmatprep.subr.bf16.mxu0 %v1941
  %2939 = vmatpush1.bf16.msra.mxu0 %v1940
  %2940 = vmatprep.subr.bf16.mxu0 %v1945
  %2941 = vmatpush1.bf16.msra.mxu0 %v1944
  %2942 = vmatprep.subr.bf16.mxu0 %v1949
  %2943 = vmatpush1.bf16.msra.mxu0 %v1948
  %2944 = vmatprep.mubr.bf16.mxu0 %v500
  %2945 = vmatmul.mubr.bf16.gmra.mrb[0].mxu0 %v499
  %v2946 = vpop.f32.mrb[0].mxu0
  %v2947 = vadd.f32 %v2904, %v2946
  %v2948 = vpop.f32.mrb[0].mxu0
  %v2949 = vadd.f32 %v2906, %v2948
  %v2950 = vpop.f32.mrb[0].mxu0
  %v2951 = vadd.f32 %v2908, %v2950
  %v2952 = vpop.f32.mrb[0].mxu0
  %v2953 = vadd.f32 %v2910, %v2952
  %2954 = vdwg.mxu0
  %2955 = vmatprep.subr.bf16.mxu0 %v1953
  %2956 = vmatpush1.bf16.msra.mxu0 %v1952
  %2957 = vmatprep.subr.bf16.mxu0 %v1957
  %2958 = vmatpush1.bf16.msra.mxu0 %v1956
  %2959 = vmatprep.subr.bf16.mxu0 %v1961
  %2960 = vmatpush1.bf16.msra.mxu0 %v1960
  %2961 = vmatprep.subr.bf16.mxu0 %v1965
  %2962 = vmatpush1.bf16.msra.mxu0 %v1964
  %2963 = vmatprep.subr.bf16.mxu0 %v1969
  %2964 = vmatpush1.bf16.msra.mxu0 %v1968
  %2965 = vmatprep.subr.bf16.mxu0 %v1973
  %2966 = vmatpush1.bf16.msra.mxu0 %v1972
  %2967 = vmatprep.subr.bf16.mxu0 %v1977
  %2968 = vmatpush1.bf16.msra.mxu0 %v1976
  %2969 = vmatprep.subr.bf16.mxu0 %v1981
  %2970 = vmatpush1.bf16.msra.mxu0 %v1980
  %2971 = vmatprep.subr.bf16.mxu0 %v1985
  %2972 = vmatpush1.bf16.msra.mxu0 %v1984
  %2973 = vmatprep.subr.bf16.mxu0 %v1989
  %2974 = vmatpush1.bf16.msra.mxu0 %v1988
  %2975 = vmatprep.subr.bf16.mxu0 %v1993
  %2976 = vmatpush1.bf16.msra.mxu0 %v1992
  %2977 = vmatprep.subr.bf16.mxu0 %v1997
  %2978 = vmatpush1.bf16.msra.mxu0 %v1996
  %2979 = vmatprep.subr.bf16.mxu0 %v2001
  %2980 = vmatpush1.bf16.msra.mxu0 %v2000
  %2981 = vmatprep.subr.bf16.mxu0 %v2005
  %2982 = vmatpush1.bf16.msra.mxu0 %v2004
  %2983 = vmatprep.subr.bf16.mxu0 %v2009
  %2984 = vmatpush1.bf16.msra.mxu0 %v2008
  %2985 = vmatprep.subr.bf16.mxu0 %v2013
  %2986 = vmatpush1.bf16.msra.mxu0 %v2012
  %2987 = vmatprep.mubr.bf16.mxu0 %v502
  %2988 = vmatmul.mubr.bf16.gmra.mrb[0].mxu0 %v501
  %v2989 = vpop.f32.mrb[0].mxu0
  %v2990 = vadd.f32 %v2947, %v2989
  %v2991 = vpop.f32.mrb[0].mxu0
  %v2992 = vadd.f32 %v2949, %v2991
  %v2993 = vpop.f32.mrb[0].mxu0
  %v2994 = vadd.f32 %v2951, %v2993
  %v2995 = vpop.f32.mrb[0].mxu0
  %v2996 = vadd.f32 %v2953, %v2995
  %2997 = vdwg.mxu0
  %2998 = vmatprep.subr.bf16.mxu0 %v2017
  %2999 = vmatpush1.bf16.msra.mxu0 %v2016
  %3000 = vmatprep.subr.bf16.mxu0 %v2021
  %3001 = vmatpush1.bf16.msra.mxu0 %v2020
  %3002 = vmatprep.subr.bf16.mxu0 %v2025
  %3003 = vmatpush1.bf16.msra.mxu0 %v2024
  %3004 = vmatprep.subr.bf16.mxu0 %v2029
  %3005 = vmatpush1.bf16.msra.mxu0 %v2028
  %3006 = vmatprep.subr.bf16.mxu0 %v2033
  %3007 = vmatpush1.bf16.msra.mxu0 %v2032
  %3008 = vmatprep.subr.bf16.mxu0 %v2037
  %3009 = vmatpush1.bf16.msra.mxu0 %v2036
  %3010 = vmatprep.subr.bf16.mxu0 %v2041
  %3011 = vmatpush1.bf16.msra.mxu0 %v2040
  %3012 = vmatprep.subr.bf16.mxu0 %v2045
  %3013 = vmatpush1.bf16.msra.mxu0 %v2044
  %3014 = vmatprep.subr.bf16.mxu0 %v2049
  %3015 = vmatpush1.bf16.msra.mxu0 %v2048
  %3016 = vmatprep.subr.bf16.mxu0 %v2053
  %3017 = vmatpush1.bf16.msra.mxu0 %v2052
  %3018 = vmatprep.subr.bf16.mxu0 %v2057
  %3019 = vmatpush1.bf16.msra.mxu0 %v2056
  %3020 = vmatprep.subr.bf16.mxu0 %v2061
  %3021 = vmatpush1.bf16.msra.mxu0 %v2060
  %3022 = vmatprep.subr.bf16.mxu0 %v2065
  %3023 = vmatpush1.bf16.msra.mxu0 %v2064
  %3024 = vmatprep.subr.bf16.mxu0 %v2069
  %3025 = vmatpush1.bf16.msra.mxu0 %v2068
  %3026 = vmatprep.subr.bf16.mxu0 %v2073
  %3027 = vmatpush1.bf16.msra.mxu0 %v2072
  %3028 = vmatprep.subr.bf16.mxu0 %v2077
  %3029 = vmatpush1.bf16.msra.mxu0 %v2076
  %3030 = vmatprep.mubr.bf16.mxu0 %v504
  %3031 = vmatmul.mubr.bf16.gmra.mrb[0].mxu0 %v503
  %v3032 = vpop.f32.mrb[0].mxu0
  %v3033 = vadd.f32 %v2990, %v3032
  %v3034 = vpop.f32.mrb[0].mxu0
  %v3035 = vadd.f32 %v2992, %v3034
  %v3036 = vpop.f32.mrb[0].mxu0
  %v3037 = vadd.f32 %v2994, %v3036
  %v3038 = vpop.f32.mrb[0].mxu0
  %v3039 = vadd.f32 %v2996, %v3038
  %3040 = vdwg.mxu0
  %3041 = vmatprep.subr.bf16.mxu0 %v2081
  %3042 = vmatpush1.bf16.msra.mxu0 %v2080
  %3043 = vmatprep.subr.bf16.mxu0 %v2085
  %3044 = vmatpush1.bf16.msra.mxu0 %v2084
  %3045 = vmatprep.subr.bf16.mxu0 0
  %3046 = vmatpush1.bf16.msra.mxu0 0
  %3047 = vmatprep.subr.bf16.mxu0 0
  %3048 = vmatpush1.bf16.msra.mxu0 0
  %3049 = vmatprep.subr.bf16.mxu0 0
  %3050 = vmatpush1.bf16.msra.mxu0 0
  %3051 = vmatprep.subr.bf16.mxu0 0
  %3052 = vmatpush1.bf16.msra.mxu0 0
  %3053 = vmatprep.subr.bf16.mxu0 0
  %3054 = vmatpush1.bf16.msra.mxu0 0
  %3055 = vmatprep.subr.bf16.mxu0 0
  %3056 = vmatpush1.bf16.msra.mxu0 0
  %3057 = vmatprep.subr.bf16.mxu0 0
  %3058 = vmatpush1.bf16.msra.mxu0 0
  %3059 = vmatprep.subr.bf16.mxu0 0
  %3060 = vmatpush1.bf16.msra.mxu0 0
  %3061 = vmatprep.subr.bf16.mxu0 0
  %3062 = vmatpush1.bf16.msra.mxu0 0
  %3063 = vmatprep.subr.bf16.mxu0 0
  %3064 = vmatpush1.bf16.msra.mxu0 0
  %3065 = vmatprep.subr.bf16.mxu0 0
  %3066 = vmatpush1.bf16.msra.mxu0 0
  %3067 = vmatprep.subr.bf16.mxu0 0
  %3068 = vmatpush1.bf16.msra.mxu0 0
  %3069 = vmatprep.subr.bf16.mxu0 0
  %3070 = vmatpush1.bf16.msra.mxu0 0
  %3071 = vmatprep.subr.bf16.mxu0 0
  %3072 = vmatpush1.bf16.msra.mxu0 0
  %3073 = vmatprep.mubr.bf16.mxu0 0
  %3074 = vmatmul.mubr.bf16.gmra.mrb[0].mxu0 %v2480
  %v3075 = vpop.f32.mrb[0].mxu0
  %v3076 = vadd.f32 %v3033, %v3075
  %v3077 = vpop.f32.mrb[0].mxu0
  %v3078 = vadd.f32 %v3035, %v3077
  %v3079 = vpop.f32.mrb[0].mxu0
  %v3080 = vadd.f32 %v3037, %v3079
  %v3081 = vpop.f32.mrb[0].mxu0
  %v3082 = vadd.f32 %v3039, %v3081
  %3083 = vdwg.mxu0
  %v3084 = vmax.f32 %v2775, 0.0
  %v3085 = vmax.f32 %v2777, 0.0
  %v3086 = vmax.f32 %v3076, 0.0
  %v3087 = vmax.f32 %v3078, 0.0
  %v3088 = vmax.f32 %v2779, 0.0
  %v3089 = vmax.f32 %v2781, 0.0
  %v3090 = vmax.f32 %v3080, 0.0
  %v3091 = vmax.f32 %v3082, 0.0
  %3092 = vst [vmem:[%s5] sm:$0xff] %v3084
  %3093 = vst [vmem:[%s5 + $0x8] sm:$0xff] %v3085
  %3094 = vst [vmem:[%s5 + $0x10] sm:$0xff] %v3086
  %3095 = vst [vmem:[%s5 + $0x18] sm:$0xff] %v3087
  %3096 = vst [vmem:[%s5 + $0x20] sm:$0xff] %v3088
  %3097 = vst [vmem:[%s5 + $0x28] sm:$0xff] %v3089
  %3098 = vst [vmem:[%s5 + $0x30] sm:$0xff] %v3090
  %3099 = vst [vmem:[%s5 + $0x38] sm:$0xff] %v3091
  %v3100 = vpack.c.bf16 %v3088, %v3084
  %v3101 = vpack.c.bf16 %v3089, %v3085
  %v3102 = vpack.c.bf16 %v3090, %v3086
  %v3103 = vpack.c.bf16 %v3091, %v3087
  %v3104 = vld [vmem:[%s3] sm:$0xf]
  %v3105 = vld [vmem:[%s3 + $0x4] sm:$0xf]
  %v3106 = vld [vmem:[%s3 + $0x8] sm:$0xf]
  %v3107 = vld [vmem:[%s3 + $0xc] sm:$0xf]
  %v3108 = vld [vmem:[%s3 + $0x10] sm:$0xf]
  %v3109 = vld [vmem:[%s3 + $0x14] sm:$0xf]
  %v3110 = vld [vmem:[%s3 + $0x18] sm:$0xf]
  %v3111 = vld [vmem:[%s3 + $0x1c] sm:$0xf]
  %v3112 = vld [vmem:[%s3 + $0x20] sm:$0xf]
  %v3113 = vld [vmem:[%s3 + $0x24] sm:$0xf]
  %v3114 = vld [vmem:[%s3 + $0x28] sm:$0xf]
  %v3115 = vld [vmem:[%s3 + $0x2c] sm:$0xf]
  %v3116 = vld [vmem:[%s3 + $0x30] sm:$0xf]
  %v3117 = vld [vmem:[%s3 + $0x34] sm:$0xf]
  %v3118 = vld [vmem:[%s3 + $0x38] sm:$0xf]
  %v3119 = vld [vmem:[%s3 + $0x3c] sm:$0xf]
  %v3120 = vld [vmem:[%s3 + $0x40] sm:$0xf]
  %v3121 = vld [vmem:[%s3 + $0x44] sm:$0xf]
  %v3122 = vld [vmem:[%s3 + $0x48] sm:$0xf]
  %v3123 = vld [vmem:[%s3 + $0x4c] sm:$0xf]
  %v3124 = vld [vmem:[%s3 + $0x50] sm:$0xf]
  %v3125 = vld [vmem:[%s3 + $0x54] sm:$0xf]
  %v3126 = vld [vmem:[%s3 + $0x58] sm:$0xf]
  %v3127 = vld [vmem:[%s3 + $0x5c] sm:$0xf]
  %v3128 = vld [vmem:[%s3 + $0x60] sm:$0xf]
  %v3129 = vld [vmem:[%s3 + $0x64] sm:$0xf]
  %v3130 = vld [vmem:[%s3 + $0x68] sm:$0xf]
  %v3131 = vld [vmem:[%s3 + $0x6c] sm:$0xf]
  %v3132 = vld [vmem:[%s3 + $0x70] sm:$0xf]
  %v3133 = vld [vmem:[%s3 + $0x74] sm:$0xf]
  %v3134 = vld [vmem:[%s3 + $0x78] sm:$0xf]
  %v3135 = vld [vmem:[%s3 + $0x7c] sm:$0xf]
  %v3136 = vld [vmem:[%s3 + $0x80] sm:$0xf]
  %v3137 = vld [vmem:[%s3 + $0x84] sm:$0xf]
  %v3138 = vld [vmem:[%s3 + $0x88] sm:$0xf]
  %v3139 = vld [vmem:[%s3 + $0x8c] sm:$0xf]
  %v3140 = vld [vmem:[%s3 + $0x90] sm:$0xf]
  %v3141 = vld [vmem:[%s3 + $0x94] sm:$0xf]
  %v3142 = vld [vmem:[%s3 + $0x98] sm:$0xf]
  %v3143 = vld [vmem:[%s3 + $0x9c] sm:$0xf]
  %v3144 = vld [vmem:[%s3 + $0xa0] sm:$0xf]
  %v3145 = vld [vmem:[%s3 + $0xa4] sm:$0xf]
  %v3146 = vld [vmem:[%s3 + $0xa8] sm:$0xf]
  %v3147 = vld [vmem:[%s3 + $0xac] sm:$0xf]
  %v3148 = vld [vmem:[%s3 + $0xb0] sm:$0xf]
  %v3149 = vld [vmem:[%s3 + $0xb4] sm:$0xf]
  %v3150 = vld [vmem:[%s3 + $0xb8] sm:$0xf]
  %v3151 = vld [vmem:[%s3 + $0xbc] sm:$0xf]
  %v3152 = vld [vmem:[%s3 + $0xc0] sm:$0xf]
  %v3153 = vld [vmem:[%s3 + $0xc4] sm:$0xf]
  %v3154 = vld [vmem:[%s3 + $0xc8] sm:$0xf]
  %v3155 = vld [vmem:[%s3 + $0xcc] sm:$0xf]
  %v3156 = vld [vmem:[%s3 + $0xd0] sm:$0xf]
  %v3157 = vld [vmem:[%s3 + $0xd4] sm:$0xf]
  %v3158 = vld [vmem:[%s3 + $0xd8] sm:$0xf]
  %v3159 = vld [vmem:[%s3 + $0xdc] sm:$0xf]
  %v3160 = vld [vmem:[%s3 + $0xe0] sm:$0xf]
  %v3161 = vld [vmem:[%s3 + $0xe4] sm:$0xf]
  %v3162 = vld [vmem:[%s3 + $0xe8] sm:$0xf]
  %v3163 = vld [vmem:[%s3 + $0xec] sm:$0xf]
  %v3164 = vld [vmem:[%s3 + $0xf0] sm:$0xf]
  %v3165 = vld [vmem:[%s3 + $0xf4] sm:$0xf]
  %v3166 = vld [vmem:[%s3 + $0xf8] sm:$0xf]
  %v3167 = vld [vmem:[%s3 + $0xfc] sm:$0xf]
  %v3168 = vld [vmem:[#allocation2] sm:$0x1]
  %v3170 = vlaneseq
  %v3171 = vshrl.u32 %v3170, 7
  %v3172 = vsub.s32 0, %v3171
  %v3173 = vrot.slane %v3168, %v3172
  %v3239 = vunpack.c.l.b16 %v3104
  %v3240 = vunpack.c.l.b16 %v3105
  %v3241 = vunpack.c.l.b16 %v3106
  %v3242 = vunpack.c.l.b16 %v3107
  %v3243 = vunpack.c.l.b16 %v3108
  %v3244 = vunpack.c.l.b16 %v3109
  %v3245 = vunpack.c.l.b16 %v3110
  %v3246 = vunpack.c.l.b16 %v3111
  %v3247 = vunpack.c.l.b16 %v3112
  %v3248 = vunpack.c.l.b16 %v3113
  %v3249 = vunpack.c.l.b16 %v3114
  %v3250 = vunpack.c.l.b16 %v3115
  %v3251 = vunpack.c.l.b16 %v3116
  %v3252 = vunpack.c.l.b16 %v3117
  %v3253 = vunpack.c.l.b16 %v3118
  %v3254 = vunpack.c.l.b16 %v3119
  %v3255 = vunpack.c.l.b16 %v3120
  %v3256 = vunpack.c.l.b16 %v3121
  %v3257 = vunpack.c.l.b16 %v3122
  %v3258 = vunpack.c.l.b16 %v3123
  %v3259 = vunpack.c.l.b16 %v3124
  %v3260 = vunpack.c.l.b16 %v3125
  %v3261 = vunpack.c.l.b16 %v3126
  %v3262 = vunpack.c.l.b16 %v3127
  %v3263 = vunpack.c.l.b16 %v3128
  %v3264 = vunpack.c.l.b16 %v3129
  %v3265 = vunpack.c.l.b16 %v3130
  %v3266 = vunpack.c.l.b16 %v3131
  %v3267 = vunpack.c.l.b16 %v3132
  %v3268 = vunpack.c.l.b16 %v3133
  %v3269 = vunpack.c.l.b16 %v3134
  %v3270 = vunpack.c.l.b16 %v3135
  %v3271 = vunpack.c.l.b16 %v3136
  %v3272 = vunpack.c.l.b16 %v3137
  %v3273 = vunpack.c.l.b16 %v3138
  %v3274 = vunpack.c.l.b16 %v3139
  %v3275 = vunpack.c.l.b16 %v3140
  %v3276 = vunpack.c.l.b16 %v3141
  %v3277 = vunpack.c.l.b16 %v3142
  %v3278 = vunpack.c.l.b16 %v3143
  %v3279 = vunpack.c.l.b16 %v3144
  %v3280 = vunpack.c.l.b16 %v3145
  %v3281 = vunpack.c.l.b16 %v3146
  %v3282 = vunpack.c.l.b16 %v3147
  %v3283 = vunpack.c.l.b16 %v3148
  %v3284 = vunpack.c.l.b16 %v3149
  %v3285 = vunpack.c.l.b16 %v3150
  %v3286 = vunpack.c.l.b16 %v3151
  %v3287 = vunpack.c.l.b16 %v3152
  %v3288 = vunpack.c.l.b16 %v3153
  %v3289 = vunpack.c.l.b16 %v3154
  %v3290 = vunpack.c.l.b16 %v3155
  %v3291 = vunpack.c.l.b16 %v3156
  %v3292 = vunpack.c.l.b16 %v3157
  %v3293 = vunpack.c.l.b16 %v3158
  %v3294 = vunpack.c.l.b16 %v3159
  %v3295 = vunpack.c.l.b16 %v3160
  %v3296 = vunpack.c.l.b16 %v3161
  %v3297 = vunpack.c.l.b16 %v3162
  %v3298 = vunpack.c.l.b16 %v3163
  %v3299 = vunpack.c.l.b16 %v3164
  %v3300 = vunpack.c.l.b16 %v3165
  %v3301 = vunpack.c.l.b16 %v3166
  %v3302 = vunpack.c.l.b16 %v3167
  %v3303 = vpack.c.b16 %v3240, %v3239
  %v3304 = vpack.c.b16 %v3242, %v3241
  %v3305 = vpack.c.b16 %v3244, %v3243
  %v3306 = vpack.c.b16 %v3246, %v3245
  %v3307 = vpack.c.b16 %v3248, %v3247
  %v3308 = vpack.c.b16 %v3250, %v3249
  %v3309 = vpack.c.b16 %v3252, %v3251
  %v3310 = vpack.c.b16 %v3254, %v3253
  %v3311 = vpack.c.b16 %v3256, %v3255
  %v3312 = vpack.c.b16 %v3258, %v3257
  %v3313 = vpack.c.b16 %v3260, %v3259
  %v3314 = vpack.c.b16 %v3262, %v3261
  %v3315 = vpack.c.b16 %v3264, %v3263
  %v3316 = vpack.c.b16 %v3266, %v3265
  %v3317 = vpack.c.b16 %v3268, %v3267
  %v3318 = vpack.c.b16 %v3270, %v3269
  %v3319 = vpack.c.b16 %v3272, %v3271
  %v3320 = vpack.c.b16 %v3274, %v3273
  %v3321 = vpack.c.b16 %v3276, %v3275
  %v3322 = vpack.c.b16 %v3278, %v3277
  %v3323 = vpack.c.b16 %v3280, %v3279
  %v3324 = vpack.c.b16 %v3282, %v3281
  %v3325 = vpack.c.b16 %v3284, %v3283
  %v3326 = vpack.c.b16 %v3286, %v3285
  %v3327 = vpack.c.b16 %v3288, %v3287
  %v3328 = vpack.c.b16 %v3290, %v3289
  %v3329 = vpack.c.b16 %v3292, %v3291
  %v3330 = vpack.c.b16 %v3294, %v3293
  %v3331 = vpack.c.b16 %v3296, %v3295
  %v3332 = vpack.c.b16 %v3298, %v3297
  %v3333 = vpack.c.b16 %v3300, %v3299
  %v3334 = vpack.c.b16 %v3302, %v3301
  %3367 = vmatprep.subr.bf16.mxu0 0
  %3368 = vmatpush1.bf16.msra.mxu0 %v3303
  %3369 = vmatprep.subr.bf16.mxu0 0
  %3370 = vmatpush1.bf16.msra.mxu0 %v3304
  %3371 = vmatprep.subr.bf16.mxu0 0
  %3372 = vmatpush1.bf16.msra.mxu0 %v3305
  %3373 = vmatprep.subr.bf16.mxu0 0
  %3374 = vmatpush1.bf16.msra.mxu0 %v3306
  %3375 = vmatprep.subr.bf16.mxu0 0
  %3376 = vmatpush1.bf16.msra.mxu0 %v3307
  %3377 = vmatprep.subr.bf16.mxu0 0
  %3378 = vmatpush1.bf16.msra.mxu0 %v3308
  %3379 = vmatprep.subr.bf16.mxu0 0
  %3380 = vmatpush1.bf16.msra.mxu0 %v3309
  %3381 = vmatprep.subr.bf16.mxu0 0
  %3382 = vmatpush1.bf16.msra.mxu0 %v3310
  %3383 = vmatprep.subr.bf16.mxu0 0
  %3384 = vmatpush1.bf16.msra.mxu0 %v3311
  %3385 = vmatprep.subr.bf16.mxu0 0
  %3386 = vmatpush1.bf16.msra.mxu0 %v3312
  %3387 = vmatprep.subr.bf16.mxu0 0
  %3388 = vmatpush1.bf16.msra.mxu0 %v3313
  %3389 = vmatprep.subr.bf16.mxu0 0
  %3390 = vmatpush1.bf16.msra.mxu0 %v3314
  %3391 = vmatprep.subr.bf16.mxu0 0
  %3392 = vmatpush1.bf16.msra.mxu0 %v3315
  %3393 = vmatprep.subr.bf16.mxu0 0
  %3394 = vmatpush1.bf16.msra.mxu0 %v3316
  %3395 = vmatprep.subr.bf16.mxu0 0
  %3396 = vmatpush1.bf16.msra.mxu0 %v3317
  %3397 = vmatprep.subr.bf16.mxu0 0
  %3398 = vmatpush1.bf16.msra.mxu0 %v3318
  %3399 = vmatprep.mubr.bf16.mxu0 %v3101
  %3400 = vmatmul.mubr.bf16.gmra.mrb[0].mxu0 %v3100
  %v3401 = vpop.f32.mrb[0].mxu0
  %v3402 = vadd.f32 %v3173, %v3401
  %v3403 = vpop.f32.mrb[0].mxu0
  %v3404 = vpop.f32.mrb[0].mxu0
  %v3405 = vadd.f32 %v3173, %v3404
  %v3406 = vpop.f32.mrb[0].mxu0
  %3407 = vdwg.mxu0
  %3408 = vmatprep.subr.bf16.mxu0 0
  %3409 = vmatpush1.bf16.msra.mxu0 %v3319
  %3410 = vmatprep.subr.bf16.mxu0 0
  %3411 = vmatpush1.bf16.msra.mxu0 %v3320
  %3412 = vmatprep.subr.bf16.mxu0 0
  %3413 = vmatpush1.bf16.msra.mxu0 %v3321
  %3414 = vmatprep.subr.bf16.mxu0 0
  %3415 = vmatpush1.bf16.msra.mxu0 %v3322
  %3416 = vmatprep.subr.bf16.mxu0 0
  %3417 = vmatpush1.bf16.msra.mxu0 %v3323
  %3418 = vmatprep.subr.bf16.mxu0 0
  %3419 = vmatpush1.bf16.msra.mxu0 %v3324
  %3420 = vmatprep.subr.bf16.mxu0 0
  %3421 = vmatpush1.bf16.msra.mxu0 %v3325
  %3422 = vmatprep.subr.bf16.mxu0 0
  %3423 = vmatpush1.bf16.msra.mxu0 %v3326
  %3424 = vmatprep.subr.bf16.mxu0 0
  %3425 = vmatpush1.bf16.msra.mxu0 %v3327
  %3426 = vmatprep.subr.bf16.mxu0 0
  %3427 = vmatpush1.bf16.msra.mxu0 %v3328
  %3428 = vmatprep.subr.bf16.mxu0 0
  %3429 = vmatpush1.bf16.msra.mxu0 %v3329
  %3430 = vmatprep.subr.bf16.mxu0 0
  %3431 = vmatpush1.bf16.msra.mxu0 %v3330
  %3432 = vmatprep.subr.bf16.mxu0 0
  %3433 = vmatpush1.bf16.msra.mxu0 %v3331
  %3434 = vmatprep.subr.bf16.mxu0 0
  %3435 = vmatpush1.bf16.msra.mxu0 %v3332
  %3436 = vmatprep.subr.bf16.mxu0 0
  %3437 = vmatpush1.bf16.msra.mxu0 %v3333
  %3438 = vmatprep.subr.bf16.mxu0 0
  %3439 = vmatpush1.bf16.msra.mxu0 %v3334
  %3440 = vmatprep.mubr.bf16.mxu0 %v3103
  %3441 = vmatmul.mubr.bf16.gmra.mrb[0].mxu0 %v3102
  %v3442 = vpop.f32.mrb[0].mxu0
  %v3443 = vadd.f32 %v3402, %v3442
  %v3444 = vpop.f32.mrb[0].mxu0
  %v3445 = vpop.f32.mrb[0].mxu0
  %v3446 = vadd.f32 %v3405, %v3445
  %v3447 = vpop.f32.mrb[0].mxu0
  %3448 = vdwg.mxu0
  %vm3449 = vcmask 7168
  %3450 = vst.msk [vmem:[%s6] sm:$0xff] %vm3449, %v3443
  %3451 = vst.msk [vmem:[%s6 + $0x8] sm:$0xff] %vm3449, %v3446
  // Predicated region
  $region22: #{cnn_policy_forward.7} parent=0 // pred_check
    _
  $region23: #{cnn_policy_forward.7} parent=0 // pred_check_branch
    %3453 = sbr.rel (0) target = $region25
  $region24: #{cnn_policy_forward.7} parent=0 // pred_region
    _
  $region25: #{cnn_policy_forward.7} parent=0 // pred_fallthru
    _
  // Predicated region
  $region26: #{cnn_policy_forward.7} parent=0 // pred_check
    _
  $region27: #{cnn_policy_forward.7} parent=0 // pred_check_branch
    %3455 = sbr.rel (0) target = $region29
  $region28: #{cnn_policy_forward.7} parent=0 // pred_region
    _
  $region29: #{cnn_policy_forward.7} parent=0 // pred_fallthru
    _
  // Predicated region
  $region30: #{cnn_policy_forward.7} parent=0 // pred_check
    _
  $region31: #{cnn_policy_forward.7} parent=0 // pred_check_branch
    %3457 = sbr.rel (0) target = $region33
  $region32: #{cnn_policy_forward.7} parent=0 // pred_region
    _
  $region33: #{cnn_policy_forward.7} parent=0 // pred_fallthru
    _
  // Predicated region
  $region34: #{cnn_policy_forward.7} parent=0 // pred_check
    _
  $region35: #{cnn_policy_forward.7} parent=0 // pred_check_branch
    %3459 = sbr.rel (0) target = $region37
  $region36: #{cnn_policy_forward.7} parent=0 // pred_region
    _
  $region37: #{cnn_policy_forward.7} parent=0 // pred_fallthru
    _

</llo_original>
